<compile_context>
chip_gen: v7x
topology: tpu7x:2x2x1
jax: 0.10.0
libtpu: 0.0.40
codegen_flags: <defaults>
</compile_context>

<pallas_src>
import functools

import numpy as np
import jax
import jax.numpy as jnp
from jax.experimental import pallas as pl
from jax.experimental.pallas import tpu as pltpu

# Widths of the in-kernel padded spatial layouts (column index = row*16 + col).
_XS_W = 320   # parity-split input: 16x16 grid (256 cols) + slack for shifts <= 34
_A1_W = 256   # conv1+pool output : valid at ph*16+pw, ph,pw <= 13
_Z2_W = 176   # conv2 output      : valid at oh*16+ow, oh,ow <= 9
_M_W = 144    # anchored-max pool : fc1 only reads cols 32*ph + 2*pw <= 136


# ----------------------------------------------------------------------------
# The fused kernel (one grid step == one image)
# ----------------------------------------------------------------------------
def _lenet_kernel(x_ref, w1s_ref, b1_ref, w2s_ref, b2_ref, w1b_ref, bf1_ref,
                  wf2_ref, bf2_ref, wf3_ref, bf3_ref, o_ref):
    f32 = jnp.float32
    xs = x_ref[0]                                       # (16, 320) bf16

    # conv1 + ReLU + 2x2/2 max-pool, pool folded via the parity/shift trick.
    # z1 rows = (pool offset s = di*2+dj)*8 + oc ; cols = ph*16 + pw.
    z1 = jnp.dot(w1s_ref[0], xs[:, 0:_A1_W], preferred_element_type=f32)
    for q in range(1, 9):
        sh = (q // 3) * 16 + (q % 3)                    # shift = qh*16 + qw
        z1 = z1 + jnp.dot(w1s_ref[q], xs[:, sh:sh + _A1_W],
                          preferred_element_type=f32)
    a1 = jnp.maximum(jnp.maximum(z1[0:8], z1[8:16]),    # max over pool window
                     jnp.maximum(z1[16:24], z1[24:32]))
    a1 = jnp.maximum(a1 + b1_ref[...], 0.0).astype(jnp.bfloat16)   # (8, 256)

    # conv2: 25 per-tap GEMMs (K = padded in-channels).  cols = oh*16 + ow.
    z2 = jnp.dot(w2s_ref[0], a1[:, 0:_Z2_W], preferred_element_type=f32)
    for t in range(1, 25):
        sh = (t // 5) * 16 + (t % 5)                    # shift = i*16 + j
        z2 = z2 + jnp.dot(w2s_ref[t], a1[:, sh:sh + _Z2_W],
                          preferred_element_type=f32)

    # ReLU + 2x2/2 max-pool of conv2: anchored max of 4 shifted views; the
    # stride-2 subsample + NCHW flatten are folded into the scattered fc1 weight.
    m = jnp.maximum(jnp.maximum(z2[:, 0:_M_W], z2[:, 1:_M_W + 1]),
                    jnp.maximum(z2[:, 16:_M_W + 16], z2[:, 17:_M_W + 17]))
    m = jnp.maximum(m + b2_ref[...], 0.0).astype(jnp.bfloat16)     # (16, 144)

    # classifier: fc1 -> ReLU -> fc2 -> ReLU -> fc3 (output padded to 128 lanes)
    h = jnp.dot(m[0:1, :], w1b_ref[0], preferred_element_type=f32)
    for oc in range(1, 16):
        h = h + jnp.dot(m[oc:oc + 1, :], w1b_ref[oc],
                        preferred_element_type=f32)
    h = jnp.maximum(h + bf1_ref[...], 0.0).astype(jnp.bfloat16)
    h = jnp.dot(h, wf2_ref[...], preferred_element_type=f32)
    h = jnp.maximum(h + bf2_ref[...], 0.0).astype(jnp.bfloat16)
    h = jnp.dot(h, wf3_ref[...], preferred_element_type=f32)
    o_ref[0] = jnp.broadcast_to(h + bf3_ref[...], (8, 128))


# ----------------------------------------------------------------------------
# Forward pass (matches LeNetSequential.forward)
# ----------------------------------------------------------------------------
def lenet_forward(packed, x, *, classes):
    B = x.shape[0]
    xb = x.astype(jnp.bfloat16)
    # Mod-2 parity repack of the raw input (only XLA glue left in the forward):
    #   xs[b, (ah*2+aw)*4 + ic, 16*u + v] = x[b, ic, 2*u + ah, 2*v + aw]
    xs = xb.reshape(B, 3, 16, 2, 16, 2).transpose(0, 3, 5, 1, 2, 4)
    xs = jnp.pad(xs, ((0, 0), (0, 0), (0, 0), (0, 1), (0, 0), (0, 0)))  # ic 3->4
    xs = xs.reshape(B, 16, 256)
    xs = jnp.pad(xs, ((0, 0), (0, 0), (0, _XS_W - 256)))

    out = pl.pallas_call(
        _lenet_kernel,
        out_shape=jax.ShapeDtypeStruct((B, 8, 128), jnp.float32),
        grid=(B,),
        in_specs=[
            pl.BlockSpec((1, 16, _XS_W), lambda b: (b, 0, 0)),
            pl.BlockSpec((9, 32, 16), lambda b: (0, 0, 0)),
            pl.BlockSpec((8, 1), lambda b: (0, 0)),
            pl.BlockSpec((25, 16, 8), lambda b: (0, 0, 0)),
            pl.BlockSpec((16, 1), lambda b: (0, 0)),
            pl.BlockSpec((16, _M_W, 128), lambda b: (0, 0, 0)),
            pl.BlockSpec((1, 128), lambda b: (0, 0)),
            pl.BlockSpec((128, 128), lambda b: (0, 0)),
            pl.BlockSpec((1, 128), lambda b: (0, 0)),
            pl.BlockSpec((128, 128), lambda b: (0, 0)),
            pl.BlockSpec((1, 128), lambda b: (0, 0)),
        ],
        out_specs=pl.BlockSpec((1, 8, 128), lambda b: (b, 0, 0)),
        compiler_params=pltpu.CompilerParams(
            dimension_semantics=("parallel",)),
    )(xs, packed["w1s"], packed["b1"], packed["w2s"], packed["b2"],
      packed["w1b"], packed["bf1"], packed["wf2"], packed["bf2"],
      packed["wf3"], packed["bf3"])
    return out[:, 0, :classes]


# ----------------------------------------------------------------------------
# Parameters: PyTorch-layout init (mirrors initialize_weights) + one-time repack
# ----------------------------------------------------------------------------
def init_params(key, classes):
    ks = jax.random.split(key, 5)

    def xavier_normal(k, shape):                        # (OC, IC, KH, KW)
        fan_out = shape[0] * shape[2] * shape[3]
        fan_in = shape[1] * shape[2] * shape[3]
        std = (2.0 / (fan_in + fan_out)) ** 0.5
        return std * jax.random.normal(k, shape, jnp.float32)

    return {
        "conv1_w": xavier_normal(ks[0], (6, 3, 5, 5)),
        "conv1_b": jnp.zeros((6,), jnp.float32),
        "conv2_w": xavier_normal(ks[1], (16, 6, 5, 5)),
        "conv2_b": jnp.zeros((16,), jnp.float32),
        "fc1_w": 0.1 * jax.random.normal(ks[2], (120, 400), jnp.float32),
        "fc1_b": jnp.zeros((120,), jnp.float32),
        "fc2_w": 0.1 * jax.random.normal(ks[3], (84, 120), jnp.float32),
        "fc2_b": jnp.zeros((84,), jnp.float32),
        "fc3_w": 0.1 * jax.random.normal(ks[4], (classes, 84), jnp.float32),
        "fc3_b": jnp.zeros((classes,), jnp.float32),
    }


def pack_params(params):
    """One-time repack into the kernel's scattered / padded bf16 layouts."""
    classes = params["fc3_w"].shape[0]
    w1 = np.asarray(params["conv1_w"], np.float32)          # (6,3,5,5)
    w2 = np.asarray(params["conv2_w"], np.float32)          # (16,6,5,5)

    # conv1: scattered weights for the 9 (qh,qw) shift GEMMs.
    # rows = (pool offset di*2+dj)*8 + oc ; cols = (ah*2+aw)*4 + ic
    w1s = np.zeros((9, 32, 16), np.float32)
    for qh in range(3):
        for qw in range(3):
            for di in range(2):
                for dj in range(2):
                    for ah in range(2):
                        for aw in range(2):
                            i = 2 * qh + ah - di
                            j = 2 * qw + aw - dj
                            if 0 <= i < 5 and 0 <= j < 5:
                                r0 = (di * 2 + dj) * 8
                                c0 = (ah * 2 + aw) * 4
                                w1s[qh * 3 + qw, r0:r0 + 6, c0:c0 + 3] = w1[:, :, i, j]
    b1 = np.zeros((8, 1), np.float32)
    b1[:6, 0] = np.asarray(params["conv1_b"])

    # conv2: per-tap (i,j) weight matrices, in-channels padded 6 -> 8.
    w2s = np.zeros((25, 16, 8), np.float32)
    w2s[:, :, :6] = np.transpose(w2, (2, 3, 0, 1)).reshape(25, 16, 6)
    b2 = np.asarray(params["conv2_b"], np.float32).reshape(16, 1)

    # fc1: scatter the stride-2 pool subsample + torch NCHW flatten into (16,144,128).
    fc1 = np.asarray(params["fc1_w"], np.float32)            # (120, 400)
    w1b = np.zeros((16, _M_W, 128), np.float32)
    for oc in range(16):
        for ph in range(5):
            for pw in range(5):
                w1b[oc, 32 * ph + 2 * pw, :120] = fc1[:, oc * 25 + ph * 5 + pw]
    bf1 = np.zeros((1, 128), np.float32)
    bf1[0, :120] = np.asarray(params["fc1_b"])

    fc2 = np.asarray(params["fc2_w"], np.float32)             # (84, 120)
    wf2 = np.zeros((128, 128), np.float32)
    wf2[:120, :84] = fc2.T
    bf2 = np.zeros((1, 128), np.float32)
    bf2[0, :84] = np.asarray(params["fc2_b"])

    fc3 = np.asarray(params["fc3_w"], np.float32)             # (classes, 84)
    wf3 = np.zeros((128, 128), np.float32)                    # lane-dense output
    wf3[:84, :classes] = fc3.T
    bf3 = np.zeros((1, 128), np.float32)
    bf3[0, :classes] = np.asarray(params["fc3_b"])

    as_bf16 = lambda a: jnp.asarray(a, jnp.bfloat16)
    as_f32 = lambda a: jnp.asarray(a, jnp.float32)
    return {
        "w1s": as_bf16(w1s), "b1": as_f32(b1),
        "w2s": as_bf16(w2s), "b2": as_f32(b2),
        "w1b": as_bf16(w1b), "bf1": as_f32(bf1),
        "wf2": as_bf16(wf2), "bf2": as_f32(bf2),
        "wf3": as_bf16(wf3), "bf3": as_f32(bf3),
    }


# ----------------------------------------------------------------------------
# Pure-JAX f32 reference (the PyTorch module spec) for validation
# ----------------------------------------------------------------------------
def _maxpool2(y):
    B, C, H, W = y.shape
    return y.reshape(B, C, H // 2, 2, W // 2, 2).max(axis=(3, 5))


def lenet_reference(params, x):
    dn = ("NCHW", "OIHW", "NCHW")
    y = jax.lax.conv_general_dilated(x, params["conv1_w"], (1, 1), "VALID",
                                     dimension_numbers=dn)
    y = _maxpool2(jax.nn.relu(y + params["conv1_b"][None, :, None, None]))
    y = jax.lax.conv_general_dilated(y, params["conv2_w"], (1, 1), "VALID",
                                     dimension_numbers=dn)
    y = _maxpool2(jax.nn.relu(y + params["conv2_b"][None, :, None, None]))
    f = y.reshape(y.shape[0], -1)
    h = jax.nn.relu(f @ params["fc1_w"].T + params["fc1_b"])
    h = jax.nn.relu(h @ params["fc2_w"].T + params["fc2_b"])
    return h @ params["fc3_w"].T + params["fc3_b"]


if __name__ == "__main__":
    classes = 2  # RMB classification: 2 classes
    key = jax.random.PRNGKey(0)
    kp, kx = jax.random.split(key)
    params = init_params(kp, classes)
    packed = pack_params(params)
    # (B, 3, 32, 32): conv5->28, pool->14, conv5->10, pool->5 => 16*5*5 = 400 feats
    x = jax.random.normal(kx, (2, 3, 32, 32), jnp.float32)

    fwd = jax.jit(functools.partial(lenet_forward, classes=classes))
    out = jax.block_until_ready(fwd(packed, x))
    assert out.shape == (2, classes)

    # Loose tolerance: kernel uses bf16 MXU operands (f32 accumulation/epilogue).
    ref = lenet_reference(params, x)
    np.testing.assert_allclose(np.asarray(out), np.asarray(ref),
                               atol=5e-2, rtol=5e-2)
    print("KERNEL_OK")
</pallas_src>

<mosaic_0001>
module attributes {stable_mosaic.version = 11 : i64} {
  func.func @_lenet_kernel(%arg0: i32, %arg1: memref<1x16x320xbf16, #tpu.memory_space<vmem>>, %arg2: memref<9x32x16xbf16, #tpu.memory_space<vmem>>, %arg3: memref<8x1xf32, #tpu.memory_space<vmem>>, %arg4: memref<25x16x8xbf16, #tpu.memory_space<vmem>>, %arg5: memref<16x1xf32, #tpu.memory_space<vmem>>, %arg6: memref<16x144x128xbf16, #tpu.memory_space<vmem>>, %arg7: memref<1x128xf32, #tpu.memory_space<vmem>>, %arg8: memref<128x128xbf16, #tpu.memory_space<vmem>>, %arg9: memref<1x128xf32, #tpu.memory_space<vmem>>, %arg10: memref<128x128xbf16, #tpu.memory_space<vmem>>, %arg11: memref<1x128xf32, #tpu.memory_space<vmem>>, %arg12: memref<1x8x128xf32, #tpu.memory_space<vmem>>) attributes {dimension_semantics = [#tpu.dimension_semantics<parallel>], iteration_bounds = array<i64: 2>, scalar_prefetch = 0 : i64, scratch_operands = 0 : i64, tpu.core_type = #tpu.core_type<tc>, window_params = [{transform_indices = @transform_0, window_bounds = array<i64: 1, 16, 320>}, {pipeline_mode = #tpu.pipeline_mode<synchronous>, transform_indices = @transform_1, window_bounds = array<i64: 9, 32, 16>}, {pipeline_mode = #tpu.pipeline_mode<synchronous>, transform_indices = @transform_2, window_bounds = array<i64: 8, 1>}, {pipeline_mode = #tpu.pipeline_mode<synchronous>, transform_indices = @transform_3, window_bounds = array<i64: 25, 16, 8>}, {pipeline_mode = #tpu.pipeline_mode<synchronous>, transform_indices = @transform_4, window_bounds = array<i64: 16, 1>}, {pipeline_mode = #tpu.pipeline_mode<synchronous>, transform_indices = @transform_5, window_bounds = array<i64: 16, 144, 128>}, {pipeline_mode = #tpu.pipeline_mode<synchronous>, transform_indices = @transform_6, window_bounds = array<i64: 1, 128>}, {pipeline_mode = #tpu.pipeline_mode<synchronous>, transform_indices = @transform_7, window_bounds = array<i64: 128, 128>}, {pipeline_mode = #tpu.pipeline_mode<synchronous>, transform_indices = @transform_8, window_bounds = array<i64: 1, 128>}, {pipeline_mode = #tpu.pipeline_mode<synchronous>, transform_indices = @transform_9, window_bounds = array<i64: 128, 128>}, {pipeline_mode = #tpu.pipeline_mode<synchronous>, transform_indices = @transform_10, window_bounds = array<i64: 1, 128>}, {transform_indices = @transform_11, window_bounds = array<i64: 1, 8, 128>}]} {
    %c0 = arith.constant 0 : index
    %c0_0 = arith.constant 0 : index
    %c0_1 = arith.constant 0 : index
    %0 = vector.load %arg1[%c0, %c0_0, %c0_1] : memref<1x16x320xbf16, #tpu.memory_space<vmem>>, vector<1x16x320xbf16>
    %1 = vector.shape_cast %0 : vector<1x16x320xbf16> to vector<16x320xbf16>
    %c0_2 = arith.constant 0 : index
    %c0_3 = arith.constant 0 : index
    %c0_4 = arith.constant 0 : index
    %2 = vector.load %arg2[%c0_2, %c0_3, %c0_4] : memref<9x32x16xbf16, #tpu.memory_space<vmem>>, vector<1x32x16xbf16>
    %3 = vector.shape_cast %2 : vector<1x32x16xbf16> to vector<32x16xbf16>
    %4 = vector.extract_strided_slice %1 {offsets = [0, 0], sizes = [16, 256], strides = [1, 1]} : vector<16x320xbf16> to vector<16x256xbf16>
    %cst = arith.constant dense<0.000000e+00> : vector<32x256xf32>
    %5 = tpu.matmul %3, %4, %cst {dimension_numbers = #tpu.dot_dimension_numbers<[1], [0], [0], [1], [0, 0, 1, 1], [], []>} : vector<32x16xbf16>, vector<16x256xbf16>, vector<32x256xf32> -> vector<32x256xf32>
    %c1 = arith.constant 1 : index
    %c0_5 = arith.constant 0 : index
    %c0_6 = arith.constant 0 : index
    %6 = vector.load %arg2[%c1, %c0_5, %c0_6] : memref<9x32x16xbf16, #tpu.memory_space<vmem>>, vector<1x32x16xbf16>
    %7 = vector.shape_cast %6 : vector<1x32x16xbf16> to vector<32x16xbf16>
    %8 = vector.extract_strided_slice %1 {offsets = [0, 1], sizes = [16, 256], strides = [1, 1]} : vector<16x320xbf16> to vector<16x256xbf16>
    %cst_7 = arith.constant dense<0.000000e+00> : vector<32x256xf32>
    %9 = tpu.matmul %7, %8, %cst_7 {dimension_numbers = #tpu.dot_dimension_numbers<[1], [0], [0], [1], [0, 0, 1, 1], [], []>} : vector<32x16xbf16>, vector<16x256xbf16>, vector<32x256xf32> -> vector<32x256xf32>
    %10 = arith.addf %5, %9 : vector<32x256xf32>
    %c2 = arith.constant 2 : index
    %c0_8 = arith.constant 0 : index
    %c0_9 = arith.constant 0 : index
    %11 = vector.load %arg2[%c2, %c0_8, %c0_9] : memref<9x32x16xbf16, #tpu.memory_space<vmem>>, vector<1x32x16xbf16>
    %12 = vector.shape_cast %11 : vector<1x32x16xbf16> to vector<32x16xbf16>
    %13 = vector.extract_strided_slice %1 {offsets = [0, 2], sizes = [16, 256], strides = [1, 1]} : vector<16x320xbf16> to vector<16x256xbf16>
    %cst_10 = arith.constant dense<0.000000e+00> : vector<32x256xf32>
    %14 = tpu.matmul %12, %13, %cst_10 {dimension_numbers = #tpu.dot_dimension_numbers<[1], [0], [0], [1], [0, 0, 1, 1], [], []>} : vector<32x16xbf16>, vector<16x256xbf16>, vector<32x256xf32> -> vector<32x256xf32>
    %15 = arith.addf %10, %14 : vector<32x256xf32>
    %c3 = arith.constant 3 : index
    %c0_11 = arith.constant 0 : index
    %c0_12 = arith.constant 0 : index
    %16 = vector.load %arg2[%c3, %c0_11, %c0_12] : memref<9x32x16xbf16, #tpu.memory_space<vmem>>, vector<1x32x16xbf16>
    %17 = vector.shape_cast %16 : vector<1x32x16xbf16> to vector<32x16xbf16>
    %18 = vector.extract_strided_slice %1 {offsets = [0, 16], sizes = [16, 256], strides = [1, 1]} : vector<16x320xbf16> to vector<16x256xbf16>
    %cst_13 = arith.constant dense<0.000000e+00> : vector<32x256xf32>
    %19 = tpu.matmul %17, %18, %cst_13 {dimension_numbers = #tpu.dot_dimension_numbers<[1], [0], [0], [1], [0, 0, 1, 1], [], []>} : vector<32x16xbf16>, vector<16x256xbf16>, vector<32x256xf32> -> vector<32x256xf32>
    %20 = arith.addf %15, %19 : vector<32x256xf32>
    %c4 = arith.constant 4 : index
    %c0_14 = arith.constant 0 : index
    %c0_15 = arith.constant 0 : index
    %21 = vector.load %arg2[%c4, %c0_14, %c0_15] : memref<9x32x16xbf16, #tpu.memory_space<vmem>>, vector<1x32x16xbf16>
    %22 = vector.shape_cast %21 : vector<1x32x16xbf16> to vector<32x16xbf16>
    %23 = vector.extract_strided_slice %1 {offsets = [0, 17], sizes = [16, 256], strides = [1, 1]} : vector<16x320xbf16> to vector<16x256xbf16>
    %cst_16 = arith.constant dense<0.000000e+00> : vector<32x256xf32>
    %24 = tpu.matmul %22, %23, %cst_16 {dimension_numbers = #tpu.dot_dimension_numbers<[1], [0], [0], [1], [0, 0, 1, 1], [], []>} : vector<32x16xbf16>, vector<16x256xbf16>, vector<32x256xf32> -> vector<32x256xf32>
    %25 = arith.addf %20, %24 : vector<32x256xf32>
    %c5 = arith.constant 5 : index
    %c0_17 = arith.constant 0 : index
    %c0_18 = arith.constant 0 : index
    %26 = vector.load %arg2[%c5, %c0_17, %c0_18] : memref<9x32x16xbf16, #tpu.memory_space<vmem>>, vector<1x32x16xbf16>
    %27 = vector.shape_cast %26 : vector<1x32x16xbf16> to vector<32x16xbf16>
    %28 = vector.extract_strided_slice %1 {offsets = [0, 18], sizes = [16, 256], strides = [1, 1]} : vector<16x320xbf16> to vector<16x256xbf16>
    %cst_19 = arith.constant dense<0.000000e+00> : vector<32x256xf32>
    %29 = tpu.matmul %27, %28, %cst_19 {dimension_numbers = #tpu.dot_dimension_numbers<[1], [0], [0], [1], [0, 0, 1, 1], [], []>} : vector<32x16xbf16>, vector<16x256xbf16>, vector<32x256xf32> -> vector<32x256xf32>
    %30 = arith.addf %25, %29 : vector<32x256xf32>
    %c6 = arith.constant 6 : index
    %c0_20 = arith.constant 0 : index
    %c0_21 = arith.constant 0 : index
    %31 = vector.load %arg2[%c6, %c0_20, %c0_21] : memref<9x32x16xbf16, #tpu.memory_space<vmem>>, vector<1x32x16xbf16>
    %32 = vector.shape_cast %31 : vector<1x32x16xbf16> to vector<32x16xbf16>
    %33 = vector.extract_strided_slice %1 {offsets = [0, 32], sizes = [16, 256], strides = [1, 1]} : vector<16x320xbf16> to vector<16x256xbf16>
    %cst_22 = arith.constant dense<0.000000e+00> : vector<32x256xf32>
    %34 = tpu.matmul %32, %33, %cst_22 {dimension_numbers = #tpu.dot_dimension_numbers<[1], [0], [0], [1], [0, 0, 1, 1], [], []>} : vector<32x16xbf16>, vector<16x256xbf16>, vector<32x256xf32> -> vector<32x256xf32>
    %35 = arith.addf %30, %34 : vector<32x256xf32>
    %c7 = arith.constant 7 : index
    %c0_23 = arith.constant 0 : index
    %c0_24 = arith.constant 0 : index
    %36 = vector.load %arg2[%c7, %c0_23, %c0_24] : memref<9x32x16xbf16, #tpu.memory_space<vmem>>, vector<1x32x16xbf16>
    %37 = vector.shape_cast %36 : vector<1x32x16xbf16> to vector<32x16xbf16>
    %38 = vector.extract_strided_slice %1 {offsets = [0, 33], sizes = [16, 256], strides = [1, 1]} : vector<16x320xbf16> to vector<16x256xbf16>
    %cst_25 = arith.constant dense<0.000000e+00> : vector<32x256xf32>
    %39 = tpu.matmul %37, %38, %cst_25 {dimension_numbers = #tpu.dot_dimension_numbers<[1], [0], [0], [1], [0, 0, 1, 1], [], []>} : vector<32x16xbf16>, vector<16x256xbf16>, vector<32x256xf32> -> vector<32x256xf32>
    %40 = arith.addf %35, %39 : vector<32x256xf32>
    %c8 = arith.constant 8 : index
    %c0_26 = arith.constant 0 : index
    %c0_27 = arith.constant 0 : index
    %41 = vector.load %arg2[%c8, %c0_26, %c0_27] : memref<9x32x16xbf16, #tpu.memory_space<vmem>>, vector<1x32x16xbf16>
    %42 = vector.shape_cast %41 : vector<1x32x16xbf16> to vector<32x16xbf16>
    %43 = vector.extract_strided_slice %1 {offsets = [0, 34], sizes = [16, 256], strides = [1, 1]} : vector<16x320xbf16> to vector<16x256xbf16>
    %cst_28 = arith.constant dense<0.000000e+00> : vector<32x256xf32>
    %44 = tpu.matmul %42, %43, %cst_28 {dimension_numbers = #tpu.dot_dimension_numbers<[1], [0], [0], [1], [0, 0, 1, 1], [], []>} : vector<32x16xbf16>, vector<16x256xbf16>, vector<32x256xf32> -> vector<32x256xf32>
    %45 = arith.addf %40, %44 : vector<32x256xf32>
    %46 = vector.extract_strided_slice %45 {offsets = [0, 0], sizes = [8, 256], strides = [1, 1]} : vector<32x256xf32> to vector<8x256xf32>
    %47 = vector.extract_strided_slice %45 {offsets = [8, 0], sizes = [8, 256], strides = [1, 1]} : vector<32x256xf32> to vector<8x256xf32>
    %48 = arith.maximumf %46, %47 : vector<8x256xf32>
    %49 = vector.extract_strided_slice %45 {offsets = [16, 0], sizes = [8, 256], strides = [1, 1]} : vector<32x256xf32> to vector<8x256xf32>
    %50 = vector.extract_strided_slice %45 {offsets = [24, 0], sizes = [8, 256], strides = [1, 1]} : vector<32x256xf32> to vector<8x256xf32>
    %51 = arith.maximumf %49, %50 : vector<8x256xf32>
    %52 = arith.maximumf %48, %51 : vector<8x256xf32>
    %c0_29 = arith.constant 0 : index
    %c0_30 = arith.constant 0 : index
    %53 = vector.load %arg3[%c0_29, %c0_30] : memref<8x1xf32, #tpu.memory_space<vmem>>, vector<8x1xf32>
    %54 = vector.broadcast %53 : vector<8x1xf32> to vector<8x256xf32>
    %55 = arith.addf %52, %54 : vector<8x256xf32>
    %cst_31 = arith.constant 0.000000e+00 : f32
    %56 = vector.broadcast %cst_31 : f32 to vector<8x256xf32>
    %57 = arith.maximumf %55, %56 : vector<8x256xf32>
    %58 = arith.truncf %57 : vector<8x256xf32> to vector<8x256xbf16>
    %c0_32 = arith.constant 0 : index
    %c0_33 = arith.constant 0 : index
    %c0_34 = arith.constant 0 : index
    %59 = vector.load %arg4[%c0_32, %c0_33, %c0_34] : memref<25x16x8xbf16, #tpu.memory_space<vmem>>, vector<1x16x8xbf16>
    %60 = vector.shape_cast %59 : vector<1x16x8xbf16> to vector<16x8xbf16>
    %61 = vector.extract_strided_slice %58 {offsets = [0, 0], sizes = [8, 176], strides = [1, 1]} : vector<8x256xbf16> to vector<8x176xbf16>
    %cst_35 = arith.constant dense<0.000000e+00> : vector<16x176xf32>
    %62 = tpu.matmul %60, %61, %cst_35 {dimension_numbers = #tpu.dot_dimension_numbers<[1], [0], [0], [1], [0, 0, 1, 1], [], []>} : vector<16x8xbf16>, vector<8x176xbf16>, vector<16x176xf32> -> vector<16x176xf32>
    %c1_36 = arith.constant 1 : index
    %c0_37 = arith.constant 0 : index
    %c0_38 = arith.constant 0 : index
    %63 = vector.load %arg4[%c1_36, %c0_37, %c0_38] : memref<25x16x8xbf16, #tpu.memory_space<vmem>>, vector<1x16x8xbf16>
    %64 = vector.shape_cast %63 : vector<1x16x8xbf16> to vector<16x8xbf16>
    %65 = vector.extract_strided_slice %58 {offsets = [0, 1], sizes = [8, 176], strides = [1, 1]} : vector<8x256xbf16> to vector<8x176xbf16>
    %cst_39 = arith.constant dense<0.000000e+00> : vector<16x176xf32>
    %66 = tpu.matmul %64, %65, %cst_39 {dimension_numbers = #tpu.dot_dimension_numbers<[1], [0], [0], [1], [0, 0, 1, 1], [], []>} : vector<16x8xbf16>, vector<8x176xbf16>, vector<16x176xf32> -> vector<16x176xf32>
    %67 = arith.addf %62, %66 : vector<16x176xf32>
    %c2_40 = arith.constant 2 : index
    %c0_41 = arith.constant 0 : index
    %c0_42 = arith.constant 0 : index
    %68 = vector.load %arg4[%c2_40, %c0_41, %c0_42] : memref<25x16x8xbf16, #tpu.memory_space<vmem>>, vector<1x16x8xbf16>
    %69 = vector.shape_cast %68 : vector<1x16x8xbf16> to vector<16x8xbf16>
    %70 = vector.extract_strided_slice %58 {offsets = [0, 2], sizes = [8, 176], strides = [1, 1]} : vector<8x256xbf16> to vector<8x176xbf16>
    %cst_43 = arith.constant dense<0.000000e+00> : vector<16x176xf32>
    %71 = tpu.matmul %69, %70, %cst_43 {dimension_numbers = #tpu.dot_dimension_numbers<[1], [0], [0], [1], [0, 0, 1, 1], [], []>} : vector<16x8xbf16>, vector<8x176xbf16>, vector<16x176xf32> -> vector<16x176xf32>
    %72 = arith.addf %67, %71 : vector<16x176xf32>
    %c3_44 = arith.constant 3 : index
    %c0_45 = arith.constant 0 : index
    %c0_46 = arith.constant 0 : index
    %73 = vector.load %arg4[%c3_44, %c0_45, %c0_46] : memref<25x16x8xbf16, #tpu.memory_space<vmem>>, vector<1x16x8xbf16>
    %74 = vector.shape_cast %73 : vector<1x16x8xbf16> to vector<16x8xbf16>
    %75 = vector.extract_strided_slice %58 {offsets = [0, 3], sizes = [8, 176], strides = [1, 1]} : vector<8x256xbf16> to vector<8x176xbf16>
    %cst_47 = arith.constant dense<0.000000e+00> : vector<16x176xf32>
    %76 = tpu.matmul %74, %75, %cst_47 {dimension_numbers = #tpu.dot_dimension_numbers<[1], [0], [0], [1], [0, 0, 1, 1], [], []>} : vector<16x8xbf16>, vector<8x176xbf16>, vector<16x176xf32> -> vector<16x176xf32>
    %77 = arith.addf %72, %76 : vector<16x176xf32>
    %c4_48 = arith.constant 4 : index
    %c0_49 = arith.constant 0 : index
    %c0_50 = arith.constant 0 : index
    %78 = vector.load %arg4[%c4_48, %c0_49, %c0_50] : memref<25x16x8xbf16, #tpu.memory_space<vmem>>, vector<1x16x8xbf16>
    %79 = vector.shape_cast %78 : vector<1x16x8xbf16> to vector<16x8xbf16>
    %80 = vector.extract_strided_slice %58 {offsets = [0, 4], sizes = [8, 176], strides = [1, 1]} : vector<8x256xbf16> to vector<8x176xbf16>
    %cst_51 = arith.constant dense<0.000000e+00> : vector<16x176xf32>
    %81 = tpu.matmul %79, %80, %cst_51 {dimension_numbers = #tpu.dot_dimension_numbers<[1], [0], [0], [1], [0, 0, 1, 1], [], []>} : vector<16x8xbf16>, vector<8x176xbf16>, vector<16x176xf32> -> vector<16x176xf32>
    %82 = arith.addf %77, %81 : vector<16x176xf32>
    %c5_52 = arith.constant 5 : index
    %c0_53 = arith.constant 0 : index
    %c0_54 = arith.constant 0 : index
    %83 = vector.load %arg4[%c5_52, %c0_53, %c0_54] : memref<25x16x8xbf16, #tpu.memory_space<vmem>>, vector<1x16x8xbf16>
    %84 = vector.shape_cast %83 : vector<1x16x8xbf16> to vector<16x8xbf16>
    %85 = vector.extract_strided_slice %58 {offsets = [0, 16], sizes = [8, 176], strides = [1, 1]} : vector<8x256xbf16> to vector<8x176xbf16>
    %cst_55 = arith.constant dense<0.000000e+00> : vector<16x176xf32>
    %86 = tpu.matmul %84, %85, %cst_55 {dimension_numbers = #tpu.dot_dimension_numbers<[1], [0], [0], [1], [0, 0, 1, 1], [], []>} : vector<16x8xbf16>, vector<8x176xbf16>, vector<16x176xf32> -> vector<16x176xf32>
    %87 = arith.addf %82, %86 : vector<16x176xf32>
    %c6_56 = arith.constant 6 : index
    %c0_57 = arith.constant 0 : index
    %c0_58 = arith.constant 0 : index
    %88 = vector.load %arg4[%c6_56, %c0_57, %c0_58] : memref<25x16x8xbf16, #tpu.memory_space<vmem>>, vector<1x16x8xbf16>
    %89 = vector.shape_cast %88 : vector<1x16x8xbf16> to vector<16x8xbf16>
    %90 = vector.extract_strided_slice %58 {offsets = [0, 17], sizes = [8, 176], strides = [1, 1]} : vector<8x256xbf16> to vector<8x176xbf16>
    %cst_59 = arith.constant dense<0.000000e+00> : vector<16x176xf32>
    %91 = tpu.matmul %89, %90, %cst_59 {dimension_numbers = #tpu.dot_dimension_numbers<[1], [0], [0], [1], [0, 0, 1, 1], [], []>} : vector<16x8xbf16>, vector<8x176xbf16>, vector<16x176xf32> -> vector<16x176xf32>
    %92 = arith.addf %87, %91 : vector<16x176xf32>
    %c7_60 = arith.constant 7 : index
    %c0_61 = arith.constant 0 : index
    %c0_62 = arith.constant 0 : index
    %93 = vector.load %arg4[%c7_60, %c0_61, %c0_62] : memref<25x16x8xbf16, #tpu.memory_space<vmem>>, vector<1x16x8xbf16>
    %94 = vector.shape_cast %93 : vector<1x16x8xbf16> to vector<16x8xbf16>
    %95 = vector.extract_strided_slice %58 {offsets = [0, 18], sizes = [8, 176], strides = [1, 1]} : vector<8x256xbf16> to vector<8x176xbf16>
    %cst_63 = arith.constant dense<0.000000e+00> : vector<16x176xf32>
    %96 = tpu.matmul %94, %95, %cst_63 {dimension_numbers = #tpu.dot_dimension_numbers<[1], [0], [0], [1], [0, 0, 1, 1], [], []>} : vector<16x8xbf16>, vector<8x176xbf16>, vector<16x176xf32> -> vector<16x176xf32>
    %97 = arith.addf %92, %96 : vector<16x176xf32>
    %c8_64 = arith.constant 8 : index
    %c0_65 = arith.constant 0 : index
    %c0_66 = arith.constant 0 : index
    %98 = vector.load %arg4[%c8_64, %c0_65, %c0_66] : memref<25x16x8xbf16, #tpu.memory_space<vmem>>, vector<1x16x8xbf16>
    %99 = vector.shape_cast %98 : vector<1x16x8xbf16> to vector<16x8xbf16>
    %100 = vector.extract_strided_slice %58 {offsets = [0, 19], sizes = [8, 176], strides = [1, 1]} : vector<8x256xbf16> to vector<8x176xbf16>
    %cst_67 = arith.constant dense<0.000000e+00> : vector<16x176xf32>
    %101 = tpu.matmul %99, %100, %cst_67 {dimension_numbers = #tpu.dot_dimension_numbers<[1], [0], [0], [1], [0, 0, 1, 1], [], []>} : vector<16x8xbf16>, vector<8x176xbf16>, vector<16x176xf32> -> vector<16x176xf32>
    %102 = arith.addf %97, %101 : vector<16x176xf32>
    %c9 = arith.constant 9 : index
    %c0_68 = arith.constant 0 : index
    %c0_69 = arith.constant 0 : index
    %103 = vector.load %arg4[%c9, %c0_68, %c0_69] : memref<25x16x8xbf16, #tpu.memory_space<vmem>>, vector<1x16x8xbf16>
    %104 = vector.shape_cast %103 : vector<1x16x8xbf16> to vector<16x8xbf16>
    %105 = vector.extract_strided_slice %58 {offsets = [0, 20], sizes = [8, 176], strides = [1, 1]} : vector<8x256xbf16> to vector<8x176xbf16>
    %cst_70 = arith.constant dense<0.000000e+00> : vector<16x176xf32>
    %106 = tpu.matmul %104, %105, %cst_70 {dimension_numbers = #tpu.dot_dimension_numbers<[1], [0], [0], [1], [0, 0, 1, 1], [], []>} : vector<16x8xbf16>, vector<8x176xbf16>, vector<16x176xf32> -> vector<16x176xf32>
    %107 = arith.addf %102, %106 : vector<16x176xf32>
    %c10 = arith.constant 10 : index
    %c0_71 = arith.constant 0 : index
    %c0_72 = arith.constant 0 : index
    %108 = vector.load %arg4[%c10, %c0_71, %c0_72] : memref<25x16x8xbf16, #tpu.memory_space<vmem>>, vector<1x16x8xbf16>
    %109 = vector.shape_cast %108 : vector<1x16x8xbf16> to vector<16x8xbf16>
    %110 = vector.extract_strided_slice %58 {offsets = [0, 32], sizes = [8, 176], strides = [1, 1]} : vector<8x256xbf16> to vector<8x176xbf16>
    %cst_73 = arith.constant dense<0.000000e+00> : vector<16x176xf32>
    %111 = tpu.matmul %109, %110, %cst_73 {dimension_numbers = #tpu.dot_dimension_numbers<[1], [0], [0], [1], [0, 0, 1, 1], [], []>} : vector<16x8xbf16>, vector<8x176xbf16>, vector<16x176xf32> -> vector<16x176xf32>
    %112 = arith.addf %107, %111 : vector<16x176xf32>
    %c11 = arith.constant 11 : index
    %c0_74 = arith.constant 0 : index
    %c0_75 = arith.constant 0 : index
    %113 = vector.load %arg4[%c11, %c0_74, %c0_75] : memref<25x16x8xbf16, #tpu.memory_space<vmem>>, vector<1x16x8xbf16>
    %114 = vector.shape_cast %113 : vector<1x16x8xbf16> to vector<16x8xbf16>
    %115 = vector.extract_strided_slice %58 {offsets = [0, 33], sizes = [8, 176], strides = [1, 1]} : vector<8x256xbf16> to vector<8x176xbf16>
    %cst_76 = arith.constant dense<0.000000e+00> : vector<16x176xf32>
    %116 = tpu.matmul %114, %115, %cst_76 {dimension_numbers = #tpu.dot_dimension_numbers<[1], [0], [0], [1], [0, 0, 1, 1], [], []>} : vector<16x8xbf16>, vector<8x176xbf16>, vector<16x176xf32> -> vector<16x176xf32>
    %117 = arith.addf %112, %116 : vector<16x176xf32>
    %c12 = arith.constant 12 : index
    %c0_77 = arith.constant 0 : index
    %c0_78 = arith.constant 0 : index
    %118 = vector.load %arg4[%c12, %c0_77, %c0_78] : memref<25x16x8xbf16, #tpu.memory_space<vmem>>, vector<1x16x8xbf16>
    %119 = vector.shape_cast %118 : vector<1x16x8xbf16> to vector<16x8xbf16>
    %120 = vector.extract_strided_slice %58 {offsets = [0, 34], sizes = [8, 176], strides = [1, 1]} : vector<8x256xbf16> to vector<8x176xbf16>
    %cst_79 = arith.constant dense<0.000000e+00> : vector<16x176xf32>
    %121 = tpu.matmul %119, %120, %cst_79 {dimension_numbers = #tpu.dot_dimension_numbers<[1], [0], [0], [1], [0, 0, 1, 1], [], []>} : vector<16x8xbf16>, vector<8x176xbf16>, vector<16x176xf32> -> vector<16x176xf32>
    %122 = arith.addf %117, %121 : vector<16x176xf32>
    %c13 = arith.constant 13 : index
    %c0_80 = arith.constant 0 : index
    %c0_81 = arith.constant 0 : index
    %123 = vector.load %arg4[%c13, %c0_80, %c0_81] : memref<25x16x8xbf16, #tpu.memory_space<vmem>>, vector<1x16x8xbf16>
    %124 = vector.shape_cast %123 : vector<1x16x8xbf16> to vector<16x8xbf16>
    %125 = vector.extract_strided_slice %58 {offsets = [0, 35], sizes = [8, 176], strides = [1, 1]} : vector<8x256xbf16> to vector<8x176xbf16>
    %cst_82 = arith.constant dense<0.000000e+00> : vector<16x176xf32>
    %126 = tpu.matmul %124, %125, %cst_82 {dimension_numbers = #tpu.dot_dimension_numbers<[1], [0], [0], [1], [0, 0, 1, 1], [], []>} : vector<16x8xbf16>, vector<8x176xbf16>, vector<16x176xf32> -> vector<16x176xf32>
    %127 = arith.addf %122, %126 : vector<16x176xf32>
    %c14 = arith.constant 14 : index
    %c0_83 = arith.constant 0 : index
    %c0_84 = arith.constant 0 : index
    %128 = vector.load %arg4[%c14, %c0_83, %c0_84] : memref<25x16x8xbf16, #tpu.memory_space<vmem>>, vector<1x16x8xbf16>
    %129 = vector.shape_cast %128 : vector<1x16x8xbf16> to vector<16x8xbf16>
    %130 = vector.extract_strided_slice %58 {offsets = [0, 36], sizes = [8, 176], strides = [1, 1]} : vector<8x256xbf16> to vector<8x176xbf16>
    %cst_85 = arith.constant dense<0.000000e+00> : vector<16x176xf32>
    %131 = tpu.matmul %129, %130, %cst_85 {dimension_numbers = #tpu.dot_dimension_numbers<[1], [0], [0], [1], [0, 0, 1, 1], [], []>} : vector<16x8xbf16>, vector<8x176xbf16>, vector<16x176xf32> -> vector<16x176xf32>
    %132 = arith.addf %127, %131 : vector<16x176xf32>
    %c15 = arith.constant 15 : index
    %c0_86 = arith.constant 0 : index
    %c0_87 = arith.constant 0 : index
    %133 = vector.load %arg4[%c15, %c0_86, %c0_87] : memref<25x16x8xbf16, #tpu.memory_space<vmem>>, vector<1x16x8xbf16>
    %134 = vector.shape_cast %133 : vector<1x16x8xbf16> to vector<16x8xbf16>
    %135 = vector.extract_strided_slice %58 {offsets = [0, 48], sizes = [8, 176], strides = [1, 1]} : vector<8x256xbf16> to vector<8x176xbf16>
    %cst_88 = arith.constant dense<0.000000e+00> : vector<16x176xf32>
    %136 = tpu.matmul %134, %135, %cst_88 {dimension_numbers = #tpu.dot_dimension_numbers<[1], [0], [0], [1], [0, 0, 1, 1], [], []>} : vector<16x8xbf16>, vector<8x176xbf16>, vector<16x176xf32> -> vector<16x176xf32>
    %137 = arith.addf %132, %136 : vector<16x176xf32>
    %c16 = arith.constant 16 : index
    %c0_89 = arith.constant 0 : index
    %c0_90 = arith.constant 0 : index
    %138 = vector.load %arg4[%c16, %c0_89, %c0_90] : memref<25x16x8xbf16, #tpu.memory_space<vmem>>, vector<1x16x8xbf16>
    %139 = vector.shape_cast %138 : vector<1x16x8xbf16> to vector<16x8xbf16>
    %140 = vector.extract_strided_slice %58 {offsets = [0, 49], sizes = [8, 176], strides = [1, 1]} : vector<8x256xbf16> to vector<8x176xbf16>
    %cst_91 = arith.constant dense<0.000000e+00> : vector<16x176xf32>
    %141 = tpu.matmul %139, %140, %cst_91 {dimension_numbers = #tpu.dot_dimension_numbers<[1], [0], [0], [1], [0, 0, 1, 1], [], []>} : vector<16x8xbf16>, vector<8x176xbf16>, vector<16x176xf32> -> vector<16x176xf32>
    %142 = arith.addf %137, %141 : vector<16x176xf32>
    %c17 = arith.constant 17 : index
    %c0_92 = arith.constant 0 : index
    %c0_93 = arith.constant 0 : index
    %143 = vector.load %arg4[%c17, %c0_92, %c0_93] : memref<25x16x8xbf16, #tpu.memory_space<vmem>>, vector<1x16x8xbf16>
    %144 = vector.shape_cast %143 : vector<1x16x8xbf16> to vector<16x8xbf16>
    %145 = vector.extract_strided_slice %58 {offsets = [0, 50], sizes = [8, 176], strides = [1, 1]} : vector<8x256xbf16> to vector<8x176xbf16>
    %cst_94 = arith.constant dense<0.000000e+00> : vector<16x176xf32>
    %146 = tpu.matmul %144, %145, %cst_94 {dimension_numbers = #tpu.dot_dimension_numbers<[1], [0], [0], [1], [0, 0, 1, 1], [], []>} : vector<16x8xbf16>, vector<8x176xbf16>, vector<16x176xf32> -> vector<16x176xf32>
    %147 = arith.addf %142, %146 : vector<16x176xf32>
    %c18 = arith.constant 18 : index
    %c0_95 = arith.constant 0 : index
    %c0_96 = arith.constant 0 : index
    %148 = vector.load %arg4[%c18, %c0_95, %c0_96] : memref<25x16x8xbf16, #tpu.memory_space<vmem>>, vector<1x16x8xbf16>
    %149 = vector.shape_cast %148 : vector<1x16x8xbf16> to vector<16x8xbf16>
    %150 = vector.extract_strided_slice %58 {offsets = [0, 51], sizes = [8, 176], strides = [1, 1]} : vector<8x256xbf16> to vector<8x176xbf16>
    %cst_97 = arith.constant dense<0.000000e+00> : vector<16x176xf32>
    %151 = tpu.matmul %149, %150, %cst_97 {dimension_numbers = #tpu.dot_dimension_numbers<[1], [0], [0], [1], [0, 0, 1, 1], [], []>} : vector<16x8xbf16>, vector<8x176xbf16>, vector<16x176xf32> -> vector<16x176xf32>
    %152 = arith.addf %147, %151 : vector<16x176xf32>
    %c19 = arith.constant 19 : index
    %c0_98 = arith.constant 0 : index
    %c0_99 = arith.constant 0 : index
    %153 = vector.load %arg4[%c19, %c0_98, %c0_99] : memref<25x16x8xbf16, #tpu.memory_space<vmem>>, vector<1x16x8xbf16>
    %154 = vector.shape_cast %153 : vector<1x16x8xbf16> to vector<16x8xbf16>
    %155 = vector.extract_strided_slice %58 {offsets = [0, 52], sizes = [8, 176], strides = [1, 1]} : vector<8x256xbf16> to vector<8x176xbf16>
    %cst_100 = arith.constant dense<0.000000e+00> : vector<16x176xf32>
    %156 = tpu.matmul %154, %155, %cst_100 {dimension_numbers = #tpu.dot_dimension_numbers<[1], [0], [0], [1], [0, 0, 1, 1], [], []>} : vector<16x8xbf16>, vector<8x176xbf16>, vector<16x176xf32> -> vector<16x176xf32>
    %157 = arith.addf %152, %156 : vector<16x176xf32>
    %c20 = arith.constant 20 : index
    %c0_101 = arith.constant 0 : index
    %c0_102 = arith.constant 0 : index
    %158 = vector.load %arg4[%c20, %c0_101, %c0_102] : memref<25x16x8xbf16, #tpu.memory_space<vmem>>, vector<1x16x8xbf16>
    %159 = vector.shape_cast %158 : vector<1x16x8xbf16> to vector<16x8xbf16>
    %160 = vector.extract_strided_slice %58 {offsets = [0, 64], sizes = [8, 176], strides = [1, 1]} : vector<8x256xbf16> to vector<8x176xbf16>
    %cst_103 = arith.constant dense<0.000000e+00> : vector<16x176xf32>
    %161 = tpu.matmul %159, %160, %cst_103 {dimension_numbers = #tpu.dot_dimension_numbers<[1], [0], [0], [1], [0, 0, 1, 1], [], []>} : vector<16x8xbf16>, vector<8x176xbf16>, vector<16x176xf32> -> vector<16x176xf32>
    %162 = arith.addf %157, %161 : vector<16x176xf32>
    %c21 = arith.constant 21 : index
    %c0_104 = arith.constant 0 : index
    %c0_105 = arith.constant 0 : index
    %163 = vector.load %arg4[%c21, %c0_104, %c0_105] : memref<25x16x8xbf16, #tpu.memory_space<vmem>>, vector<1x16x8xbf16>
    %164 = vector.shape_cast %163 : vector<1x16x8xbf16> to vector<16x8xbf16>
    %165 = vector.extract_strided_slice %58 {offsets = [0, 65], sizes = [8, 176], strides = [1, 1]} : vector<8x256xbf16> to vector<8x176xbf16>
    %cst_106 = arith.constant dense<0.000000e+00> : vector<16x176xf32>
    %166 = tpu.matmul %164, %165, %cst_106 {dimension_numbers = #tpu.dot_dimension_numbers<[1], [0], [0], [1], [0, 0, 1, 1], [], []>} : vector<16x8xbf16>, vector<8x176xbf16>, vector<16x176xf32> -> vector<16x176xf32>
    %167 = arith.addf %162, %166 : vector<16x176xf32>
    %c22 = arith.constant 22 : index
    %c0_107 = arith.constant 0 : index
    %c0_108 = arith.constant 0 : index
    %168 = vector.load %arg4[%c22, %c0_107, %c0_108] : memref<25x16x8xbf16, #tpu.memory_space<vmem>>, vector<1x16x8xbf16>
    %169 = vector.shape_cast %168 : vector<1x16x8xbf16> to vector<16x8xbf16>
    %170 = vector.extract_strided_slice %58 {offsets = [0, 66], sizes = [8, 176], strides = [1, 1]} : vector<8x256xbf16> to vector<8x176xbf16>
    %cst_109 = arith.constant dense<0.000000e+00> : vector<16x176xf32>
    %171 = tpu.matmul %169, %170, %cst_109 {dimension_numbers = #tpu.dot_dimension_numbers<[1], [0], [0], [1], [0, 0, 1, 1], [], []>} : vector<16x8xbf16>, vector<8x176xbf16>, vector<16x176xf32> -> vector<16x176xf32>
    %172 = arith.addf %167, %171 : vector<16x176xf32>
    %c23 = arith.constant 23 : index
    %c0_110 = arith.constant 0 : index
    %c0_111 = arith.constant 0 : index
    %173 = vector.load %arg4[%c23, %c0_110, %c0_111] : memref<25x16x8xbf16, #tpu.memory_space<vmem>>, vector<1x16x8xbf16>
    %174 = vector.shape_cast %173 : vector<1x16x8xbf16> to vector<16x8xbf16>
    %175 = vector.extract_strided_slice %58 {offsets = [0, 67], sizes = [8, 176], strides = [1, 1]} : vector<8x256xbf16> to vector<8x176xbf16>
    %cst_112 = arith.constant dense<0.000000e+00> : vector<16x176xf32>
    %176 = tpu.matmul %174, %175, %cst_112 {dimension_numbers = #tpu.dot_dimension_numbers<[1], [0], [0], [1], [0, 0, 1, 1], [], []>} : vector<16x8xbf16>, vector<8x176xbf16>, vector<16x176xf32> -> vector<16x176xf32>
    %177 = arith.addf %172, %176 : vector<16x176xf32>
    %c24 = arith.constant 24 : index
    %c0_113 = arith.constant 0 : index
    %c0_114 = arith.constant 0 : index
    %178 = vector.load %arg4[%c24, %c0_113, %c0_114] : memref<25x16x8xbf16, #tpu.memory_space<vmem>>, vector<1x16x8xbf16>
    %179 = vector.shape_cast %178 : vector<1x16x8xbf16> to vector<16x8xbf16>
    %180 = vector.extract_strided_slice %58 {offsets = [0, 68], sizes = [8, 176], strides = [1, 1]} : vector<8x256xbf16> to vector<8x176xbf16>
    %cst_115 = arith.constant dense<0.000000e+00> : vector<16x176xf32>
    %181 = tpu.matmul %179, %180, %cst_115 {dimension_numbers = #tpu.dot_dimension_numbers<[1], [0], [0], [1], [0, 0, 1, 1], [], []>} : vector<16x8xbf16>, vector<8x176xbf16>, vector<16x176xf32> -> vector<16x176xf32>
    %182 = arith.addf %177, %181 : vector<16x176xf32>
    %183 = vector.extract_strided_slice %182 {offsets = [0, 0], sizes = [16, 144], strides = [1, 1]} : vector<16x176xf32> to vector<16x144xf32>
    %184 = vector.extract_strided_slice %182 {offsets = [0, 1], sizes = [16, 144], strides = [1, 1]} : vector<16x176xf32> to vector<16x144xf32>
    %185 = arith.maximumf %183, %184 : vector<16x144xf32>
    %186 = vector.extract_strided_slice %182 {offsets = [0, 16], sizes = [16, 144], strides = [1, 1]} : vector<16x176xf32> to vector<16x144xf32>
    %187 = vector.extract_strided_slice %182 {offsets = [0, 17], sizes = [16, 144], strides = [1, 1]} : vector<16x176xf32> to vector<16x144xf32>
    %188 = arith.maximumf %186, %187 : vector<16x144xf32>
    %189 = arith.maximumf %185, %188 : vector<16x144xf32>
    %c0_116 = arith.constant 0 : index
    %c0_117 = arith.constant 0 : index
    %190 = vector.load %arg5[%c0_116, %c0_117] : memref<16x1xf32, #tpu.memory_space<vmem>>, vector<16x1xf32>
    %191 = vector.broadcast %190 : vector<16x1xf32> to vector<16x144xf32>
    %192 = arith.addf %189, %191 : vector<16x144xf32>
    %cst_118 = arith.constant 0.000000e+00 : f32
    %193 = vector.broadcast %cst_118 : f32 to vector<16x144xf32>
    %194 = arith.maximumf %192, %193 : vector<16x144xf32>
    %195 = arith.truncf %194 : vector<16x144xf32> to vector<16x144xbf16>
    %196 = vector.extract_strided_slice %195 {offsets = [0, 0], sizes = [1, 144], strides = [1, 1]} : vector<16x144xbf16> to vector<1x144xbf16>
    %c0_119 = arith.constant 0 : index
    %c0_120 = arith.constant 0 : index
    %c0_121 = arith.constant 0 : index
    %197 = vector.load %arg6[%c0_119, %c0_120, %c0_121] : memref<16x144x128xbf16, #tpu.memory_space<vmem>>, vector<1x144x128xbf16>
    %198 = vector.shape_cast %197 : vector<1x144x128xbf16> to vector<144x128xbf16>
    %cst_122 = arith.constant dense<0.000000e+00> : vector<1x128xf32>
    %199 = tpu.matmul %196, %198, %cst_122 {dimension_numbers = #tpu.dot_dimension_numbers<[1], [0], [0], [1], [0, 0, 1, 1], [], []>} : vector<1x144xbf16>, vector<144x128xbf16>, vector<1x128xf32> -> vector<1x128xf32>
    %200 = vector.extract_strided_slice %195 {offsets = [1, 0], sizes = [1, 144], strides = [1, 1]} : vector<16x144xbf16> to vector<1x144xbf16>
    %c1_123 = arith.constant 1 : index
    %c0_124 = arith.constant 0 : index
    %c0_125 = arith.constant 0 : index
    %201 = vector.load %arg6[%c1_123, %c0_124, %c0_125] : memref<16x144x128xbf16, #tpu.memory_space<vmem>>, vector<1x144x128xbf16>
    %202 = vector.shape_cast %201 : vector<1x144x128xbf16> to vector<144x128xbf16>
    %cst_126 = arith.constant dense<0.000000e+00> : vector<1x128xf32>
    %203 = tpu.matmul %200, %202, %cst_126 {dimension_numbers = #tpu.dot_dimension_numbers<[1], [0], [0], [1], [0, 0, 1, 1], [], []>} : vector<1x144xbf16>, vector<144x128xbf16>, vector<1x128xf32> -> vector<1x128xf32>
    %204 = arith.addf %199, %203 : vector<1x128xf32>
    %205 = vector.extract_strided_slice %195 {offsets = [2, 0], sizes = [1, 144], strides = [1, 1]} : vector<16x144xbf16> to vector<1x144xbf16>
    %c2_127 = arith.constant 2 : index
    %c0_128 = arith.constant 0 : index
    %c0_129 = arith.constant 0 : index
    %206 = vector.load %arg6[%c2_127, %c0_128, %c0_129] : memref<16x144x128xbf16, #tpu.memory_space<vmem>>, vector<1x144x128xbf16>
    %207 = vector.shape_cast %206 : vector<1x144x128xbf16> to vector<144x128xbf16>
    %cst_130 = arith.constant dense<0.000000e+00> : vector<1x128xf32>
    %208 = tpu.matmul %205, %207, %cst_130 {dimension_numbers = #tpu.dot_dimension_numbers<[1], [0], [0], [1], [0, 0, 1, 1], [], []>} : vector<1x144xbf16>, vector<144x128xbf16>, vector<1x128xf32> -> vector<1x128xf32>
    %209 = arith.addf %204, %208 : vector<1x128xf32>
    %210 = vector.extract_strided_slice %195 {offsets = [3, 0], sizes = [1, 144], strides = [1, 1]} : vector<16x144xbf16> to vector<1x144xbf16>
    %c3_131 = arith.constant 3 : index
    %c0_132 = arith.constant 0 : index
    %c0_133 = arith.constant 0 : index
    %211 = vector.load %arg6[%c3_131, %c0_132, %c0_133] : memref<16x144x128xbf16, #tpu.memory_space<vmem>>, vector<1x144x128xbf16>
    %212 = vector.shape_cast %211 : vector<1x144x128xbf16> to vector<144x128xbf16>
    %cst_134 = arith.constant dense<0.000000e+00> : vector<1x128xf32>
    %213 = tpu.matmul %210, %212, %cst_134 {dimension_numbers = #tpu.dot_dimension_numbers<[1], [0], [0], [1], [0, 0, 1, 1], [], []>} : vector<1x144xbf16>, vector<144x128xbf16>, vector<1x128xf32> -> vector<1x128xf32>
    %214 = arith.addf %209, %213 : vector<1x128xf32>
    %215 = vector.extract_strided_slice %195 {offsets = [4, 0], sizes = [1, 144], strides = [1, 1]} : vector<16x144xbf16> to vector<1x144xbf16>
    %c4_135 = arith.constant 4 : index
    %c0_136 = arith.constant 0 : index
    %c0_137 = arith.constant 0 : index
    %216 = vector.load %arg6[%c4_135, %c0_136, %c0_137] : memref<16x144x128xbf16, #tpu.memory_space<vmem>>, vector<1x144x128xbf16>
    %217 = vector.shape_cast %216 : vector<1x144x128xbf16> to vector<144x128xbf16>
    %cst_138 = arith.constant dense<0.000000e+00> : vector<1x128xf32>
    %218 = tpu.matmul %215, %217, %cst_138 {dimension_numbers = #tpu.dot_dimension_numbers<[1], [0], [0], [1], [0, 0, 1, 1], [], []>} : vector<1x144xbf16>, vector<144x128xbf16>, vector<1x128xf32> -> vector<1x128xf32>
    %219 = arith.addf %214, %218 : vector<1x128xf32>
    %220 = vector.extract_strided_slice %195 {offsets = [5, 0], sizes = [1, 144], strides = [1, 1]} : vector<16x144xbf16> to vector<1x144xbf16>
    %c5_139 = arith.constant 5 : index
    %c0_140 = arith.constant 0 : index
    %c0_141 = arith.constant 0 : index
    %221 = vector.load %arg6[%c5_139, %c0_140, %c0_141] : memref<16x144x128xbf16, #tpu.memory_space<vmem>>, vector<1x144x128xbf16>
    %222 = vector.shape_cast %221 : vector<1x144x128xbf16> to vector<144x128xbf16>
    %cst_142 = arith.constant dense<0.000000e+00> : vector<1x128xf32>
    %223 = tpu.matmul %220, %222, %cst_142 {dimension_numbers = #tpu.dot_dimension_numbers<[1], [0], [0], [1], [0, 0, 1, 1], [], []>} : vector<1x144xbf16>, vector<144x128xbf16>, vector<1x128xf32> -> vector<1x128xf32>
    %224 = arith.addf %219, %223 : vector<1x128xf32>
    %225 = vector.extract_strided_slice %195 {offsets = [6, 0], sizes = [1, 144], strides = [1, 1]} : vector<16x144xbf16> to vector<1x144xbf16>
    %c6_143 = arith.constant 6 : index
    %c0_144 = arith.constant 0 : index
    %c0_145 = arith.constant 0 : index
    %226 = vector.load %arg6[%c6_143, %c0_144, %c0_145] : memref<16x144x128xbf16, #tpu.memory_space<vmem>>, vector<1x144x128xbf16>
    %227 = vector.shape_cast %226 : vector<1x144x128xbf16> to vector<144x128xbf16>
    %cst_146 = arith.constant dense<0.000000e+00> : vector<1x128xf32>
    %228 = tpu.matmul %225, %227, %cst_146 {dimension_numbers = #tpu.dot_dimension_numbers<[1], [0], [0], [1], [0, 0, 1, 1], [], []>} : vector<1x144xbf16>, vector<144x128xbf16>, vector<1x128xf32> -> vector<1x128xf32>
    %229 = arith.addf %224, %228 : vector<1x128xf32>
    %230 = vector.extract_strided_slice %195 {offsets = [7, 0], sizes = [1, 144], strides = [1, 1]} : vector<16x144xbf16> to vector<1x144xbf16>
    %c7_147 = arith.constant 7 : index
    %c0_148 = arith.constant 0 : index
    %c0_149 = arith.constant 0 : index
    %231 = vector.load %arg6[%c7_147, %c0_148, %c0_149] : memref<16x144x128xbf16, #tpu.memory_space<vmem>>, vector<1x144x128xbf16>
    %232 = vector.shape_cast %231 : vector<1x144x128xbf16> to vector<144x128xbf16>
    %cst_150 = arith.constant dense<0.000000e+00> : vector<1x128xf32>
    %233 = tpu.matmul %230, %232, %cst_150 {dimension_numbers = #tpu.dot_dimension_numbers<[1], [0], [0], [1], [0, 0, 1, 1], [], []>} : vector<1x144xbf16>, vector<144x128xbf16>, vector<1x128xf32> -> vector<1x128xf32>
    %234 = arith.addf %229, %233 : vector<1x128xf32>
    %235 = vector.extract_strided_slice %195 {offsets = [8, 0], sizes = [1, 144], strides = [1, 1]} : vector<16x144xbf16> to vector<1x144xbf16>
    %c8_151 = arith.constant 8 : index
    %c0_152 = arith.constant 0 : index
    %c0_153 = arith.constant 0 : index
    %236 = vector.load %arg6[%c8_151, %c0_152, %c0_153] : memref<16x144x128xbf16, #tpu.memory_space<vmem>>, vector<1x144x128xbf16>
    %237 = vector.shape_cast %236 : vector<1x144x128xbf16> to vector<144x128xbf16>
    %cst_154 = arith.constant dense<0.000000e+00> : vector<1x128xf32>
    %238 = tpu.matmul %235, %237, %cst_154 {dimension_numbers = #tpu.dot_dimension_numbers<[1], [0], [0], [1], [0, 0, 1, 1], [], []>} : vector<1x144xbf16>, vector<144x128xbf16>, vector<1x128xf32> -> vector<1x128xf32>
    %239 = arith.addf %234, %238 : vector<1x128xf32>
    %240 = vector.extract_strided_slice %195 {offsets = [9, 0], sizes = [1, 144], strides = [1, 1]} : vector<16x144xbf16> to vector<1x144xbf16>
    %c9_155 = arith.constant 9 : index
    %c0_156 = arith.constant 0 : index
    %c0_157 = arith.constant 0 : index
    %241 = vector.load %arg6[%c9_155, %c0_156, %c0_157] : memref<16x144x128xbf16, #tpu.memory_space<vmem>>, vector<1x144x128xbf16>
    %242 = vector.shape_cast %241 : vector<1x144x128xbf16> to vector<144x128xbf16>
    %cst_158 = arith.constant dense<0.000000e+00> : vector<1x128xf32>
    %243 = tpu.matmul %240, %242, %cst_158 {dimension_numbers = #tpu.dot_dimension_numbers<[1], [0], [0], [1], [0, 0, 1, 1], [], []>} : vector<1x144xbf16>, vector<144x128xbf16>, vector<1x128xf32> -> vector<1x128xf32>
    %244 = arith.addf %239, %243 : vector<1x128xf32>
    %245 = vector.extract_strided_slice %195 {offsets = [10, 0], sizes = [1, 144], strides = [1, 1]} : vector<16x144xbf16> to vector<1x144xbf16>
    %c10_159 = arith.constant 10 : index
    %c0_160 = arith.constant 0 : index
    %c0_161 = arith.constant 0 : index
    %246 = vector.load %arg6[%c10_159, %c0_160, %c0_161] : memref<16x144x128xbf16, #tpu.memory_space<vmem>>, vector<1x144x128xbf16>
    %247 = vector.shape_cast %246 : vector<1x144x128xbf16> to vector<144x128xbf16>
    %cst_162 = arith.constant dense<0.000000e+00> : vector<1x128xf32>
    %248 = tpu.matmul %245, %247, %cst_162 {dimension_numbers = #tpu.dot_dimension_numbers<[1], [0], [0], [1], [0, 0, 1, 1], [], []>} : vector<1x144xbf16>, vector<144x128xbf16>, vector<1x128xf32> -> vector<1x128xf32>
    %249 = arith.addf %244, %248 : vector<1x128xf32>
    %250 = vector.extract_strided_slice %195 {offsets = [11, 0], sizes = [1, 144], strides = [1, 1]} : vector<16x144xbf16> to vector<1x144xbf16>
    %c11_163 = arith.constant 11 : index
    %c0_164 = arith.constant 0 : index
    %c0_165 = arith.constant 0 : index
    %251 = vector.load %arg6[%c11_163, %c0_164, %c0_165] : memref<16x144x128xbf16, #tpu.memory_space<vmem>>, vector<1x144x128xbf16>
    %252 = vector.shape_cast %251 : vector<1x144x128xbf16> to vector<144x128xbf16>
    %cst_166 = arith.constant dense<0.000000e+00> : vector<1x128xf32>
    %253 = tpu.matmul %250, %252, %cst_166 {dimension_numbers = #tpu.dot_dimension_numbers<[1], [0], [0], [1], [0, 0, 1, 1], [], []>} : vector<1x144xbf16>, vector<144x128xbf16>, vector<1x128xf32> -> vector<1x128xf32>
    %254 = arith.addf %249, %253 : vector<1x128xf32>
    %255 = vector.extract_strided_slice %195 {offsets = [12, 0], sizes = [1, 144], strides = [1, 1]} : vector<16x144xbf16> to vector<1x144xbf16>
    %c12_167 = arith.constant 12 : index
    %c0_168 = arith.constant 0 : index
    %c0_169 = arith.constant 0 : index
    %256 = vector.load %arg6[%c12_167, %c0_168, %c0_169] : memref<16x144x128xbf16, #tpu.memory_space<vmem>>, vector<1x144x128xbf16>
    %257 = vector.shape_cast %256 : vector<1x144x128xbf16> to vector<144x128xbf16>
    %cst_170 = arith.constant dense<0.000000e+00> : vector<1x128xf32>
    %258 = tpu.matmul %255, %257, %cst_170 {dimension_numbers = #tpu.dot_dimension_numbers<[1], [0], [0], [1], [0, 0, 1, 1], [], []>} : vector<1x144xbf16>, vector<144x128xbf16>, vector<1x128xf32> -> vector<1x128xf32>
    %259 = arith.addf %254, %258 : vector<1x128xf32>
    %260 = vector.extract_strided_slice %195 {offsets = [13, 0], sizes = [1, 144], strides = [1, 1]} : vector<16x144xbf16> to vector<1x144xbf16>
    %c13_171 = arith.constant 13 : index
    %c0_172 = arith.constant 0 : index
    %c0_173 = arith.constant 0 : index
    %261 = vector.load %arg6[%c13_171, %c0_172, %c0_173] : memref<16x144x128xbf16, #tpu.memory_space<vmem>>, vector<1x144x128xbf16>
    %262 = vector.shape_cast %261 : vector<1x144x128xbf16> to vector<144x128xbf16>
    %cst_174 = arith.constant dense<0.000000e+00> : vector<1x128xf32>
    %263 = tpu.matmul %260, %262, %cst_174 {dimension_numbers = #tpu.dot_dimension_numbers<[1], [0], [0], [1], [0, 0, 1, 1], [], []>} : vector<1x144xbf16>, vector<144x128xbf16>, vector<1x128xf32> -> vector<1x128xf32>
    %264 = arith.addf %259, %263 : vector<1x128xf32>
    %265 = vector.extract_strided_slice %195 {offsets = [14, 0], sizes = [1, 144], strides = [1, 1]} : vector<16x144xbf16> to vector<1x144xbf16>
    %c14_175 = arith.constant 14 : index
    %c0_176 = arith.constant 0 : index
    %c0_177 = arith.constant 0 : index
    %266 = vector.load %arg6[%c14_175, %c0_176, %c0_177] : memref<16x144x128xbf16, #tpu.memory_space<vmem>>, vector<1x144x128xbf16>
    %267 = vector.shape_cast %266 : vector<1x144x128xbf16> to vector<144x128xbf16>
    %cst_178 = arith.constant dense<0.000000e+00> : vector<1x128xf32>
    %268 = tpu.matmul %265, %267, %cst_178 {dimension_numbers = #tpu.dot_dimension_numbers<[1], [0], [0], [1], [0, 0, 1, 1], [], []>} : vector<1x144xbf16>, vector<144x128xbf16>, vector<1x128xf32> -> vector<1x128xf32>
    %269 = arith.addf %264, %268 : vector<1x128xf32>
    %270 = vector.extract_strided_slice %195 {offsets = [15, 0], sizes = [1, 144], strides = [1, 1]} : vector<16x144xbf16> to vector<1x144xbf16>
    %c15_179 = arith.constant 15 : index
    %c0_180 = arith.constant 0 : index
    %c0_181 = arith.constant 0 : index
    %271 = vector.load %arg6[%c15_179, %c0_180, %c0_181] : memref<16x144x128xbf16, #tpu.memory_space<vmem>>, vector<1x144x128xbf16>
    %272 = vector.shape_cast %271 : vector<1x144x128xbf16> to vector<144x128xbf16>
    %cst_182 = arith.constant dense<0.000000e+00> : vector<1x128xf32>
    %273 = tpu.matmul %270, %272, %cst_182 {dimension_numbers = #tpu.dot_dimension_numbers<[1], [0], [0], [1], [0, 0, 1, 1], [], []>} : vector<1x144xbf16>, vector<144x128xbf16>, vector<1x128xf32> -> vector<1x128xf32>
    %274 = arith.addf %269, %273 : vector<1x128xf32>
    %c0_183 = arith.constant 0 : index
    %c0_184 = arith.constant 0 : index
    %275 = vector.load %arg7[%c0_183, %c0_184] : memref<1x128xf32, #tpu.memory_space<vmem>>, vector<1x128xf32>
    %276 = arith.addf %274, %275 : vector<1x128xf32>
    %cst_185 = arith.constant 0.000000e+00 : f32
    %277 = vector.broadcast %cst_185 : f32 to vector<1x128xf32>
    %278 = arith.maximumf %276, %277 : vector<1x128xf32>
    %279 = arith.truncf %278 : vector<1x128xf32> to vector<1x128xbf16>
    %c0_186 = arith.constant 0 : index
    %c0_187 = arith.constant 0 : index
    %280 = vector.load %arg8[%c0_186, %c0_187] : memref<128x128xbf16, #tpu.memory_space<vmem>>, vector<128x128xbf16>
    %cst_188 = arith.constant dense<0.000000e+00> : vector<1x128xf32>
    %281 = tpu.matmul %279, %280, %cst_188 {dimension_numbers = #tpu.dot_dimension_numbers<[1], [0], [0], [1], [0, 0, 1, 1], [], []>} : vector<1x128xbf16>, vector<128x128xbf16>, vector<1x128xf32> -> vector<1x128xf32>
    %c0_189 = arith.constant 0 : index
    %c0_190 = arith.constant 0 : index
    %282 = vector.load %arg9[%c0_189, %c0_190] : memref<1x128xf32, #tpu.memory_space<vmem>>, vector<1x128xf32>
    %283 = arith.addf %281, %282 : vector<1x128xf32>
    %cst_191 = arith.constant 0.000000e+00 : f32
    %284 = vector.broadcast %cst_191 : f32 to vector<1x128xf32>
    %285 = arith.maximumf %283, %284 : vector<1x128xf32>
    %286 = arith.truncf %285 : vector<1x128xf32> to vector<1x128xbf16>
    %c0_192 = arith.constant 0 : index
    %c0_193 = arith.constant 0 : index
    %287 = vector.load %arg10[%c0_192, %c0_193] : memref<128x128xbf16, #tpu.memory_space<vmem>>, vector<128x128xbf16>
    %cst_194 = arith.constant dense<0.000000e+00> : vector<1x128xf32>
    %288 = tpu.matmul %286, %287, %cst_194 {dimension_numbers = #tpu.dot_dimension_numbers<[1], [0], [0], [1], [0, 0, 1, 1], [], []>} : vector<1x128xbf16>, vector<128x128xbf16>, vector<1x128xf32> -> vector<1x128xf32>
    %c0_195 = arith.constant 0 : index
    %c0_196 = arith.constant 0 : index
    %289 = vector.load %arg11[%c0_195, %c0_196] : memref<1x128xf32, #tpu.memory_space<vmem>>, vector<1x128xf32>
    %290 = arith.addf %288, %289 : vector<1x128xf32>
    %291 = vector.shape_cast %290 : vector<1x128xf32> to vector<1x128xf32>
    %292 = vector.broadcast %291 : vector<1x128xf32> to vector<8x128xf32>
    %c0_197 = arith.constant 0 : index
    %c0_198 = arith.constant 0 : index
    %c0_199 = arith.constant 0 : index
    %293 = vector.load %arg12[%c0_197, %c0_198, %c0_199] : memref<1x8x128xf32, #tpu.memory_space<vmem>>, vector<1x8x128xf32>
    %294 = vector.shape_cast %293 : vector<1x8x128xf32> to vector<8x128xf32>
    %295 = vector.shape_cast %292 : vector<8x128xf32> to vector<1x8x128xf32>
    tpu.vector_store %arg12[%c0_197, %c0_198, %c0_199], %295 {strides = array<i32>} : memref<1x8x128xf32, #tpu.memory_space<vmem>>, vector<1x8x128xf32>,
    return
  }
  func.func @transform_0(%arg0: i32) -> (i32, i32, i32) {
    %c0_i32 = arith.constant 0 : i32
    %c0_i32_0 = arith.constant 0 : i32
    %c0_i32_1 = arith.constant 0 : i32
    return %arg0, %c0_i32, %c0_i32_0 : i32, i32, i32
  }
  func.func @transform_1(%arg0: i32) -> (i32, i32, i32) {
    %c0_i32 = arith.constant 0 : i32
    %c0_i32_0 = arith.constant 0 : i32
    %c0_i32_1 = arith.constant 0 : i32
    %c0_i32_2 = arith.constant 0 : i32
    return %c0_i32, %c0_i32_0, %c0_i32_1 : i32, i32, i32
  }
  func.func @transform_2(%arg0: i32) -> (i32, i32) {
    %c0_i32 = arith.constant 0 : i32
    %c0_i32_0 = arith.constant 0 : i32
    %c0_i32_1 = arith.constant 0 : i32
    return %c0_i32, %c0_i32_0 : i32, i32
  }
  func.func @transform_3(%arg0: i32) -> (i32, i32, i32) {
    %c0_i32 = arith.constant 0 : i32
    %c0_i32_0 = arith.constant 0 : i32
    %c0_i32_1 = arith.constant 0 : i32
    %c0_i32_2 = arith.constant 0 : i32
    return %c0_i32, %c0_i32_0, %c0_i32_1 : i32, i32, i32
  }
  func.func @transform_4(%arg0: i32) -> (i32, i32) {
    %c0_i32 = arith.constant 0 : i32
    %c0_i32_0 = arith.constant 0 : i32
    %c0_i32_1 = arith.constant 0 : i32
    return %c0_i32, %c0_i32_0 : i32, i32
  }
  func.func @transform_5(%arg0: i32) -> (i32, i32, i32) {
    %c0_i32 = arith.constant 0 : i32
    %c0_i32_0 = arith.constant 0 : i32
    %c0_i32_1 = arith.constant 0 : i32
    %c0_i32_2 = arith.constant 0 : i32
    return %c0_i32, %c0_i32_0, %c0_i32_1 : i32, i32, i32
  }
  func.func @transform_6(%arg0: i32) -> (i32, i32) {
    %c0_i32 = arith.constant 0 : i32
    %c0_i32_0 = arith.constant 0 : i32
    %c0_i32_1 = arith.constant 0 : i32
    return %c0_i32, %c0_i32_0 : i32, i32
  }
  func.func @transform_7(%arg0: i32) -> (i32, i32) {
    %c0_i32 = arith.constant 0 : i32
    %c0_i32_0 = arith.constant 0 : i32
    %c0_i32_1 = arith.constant 0 : i32
    return %c0_i32, %c0_i32_0 : i32, i32
  }
  func.func @transform_8(%arg0: i32) -> (i32, i32) {
    %c0_i32 = arith.constant 0 : i32
    %c0_i32_0 = arith.constant 0 : i32
    %c0_i32_1 = arith.constant 0 : i32
    return %c0_i32, %c0_i32_0 : i32, i32
  }
  func.func @transform_9(%arg0: i32) -> (i32, i32) {
    %c0_i32 = arith.constant 0 : i32
    %c0_i32_0 = arith.constant 0 : i32
    %c0_i32_1 = arith.constant 0 : i32
    return %c0_i32, %c0_i32_0 : i32, i32
  }
  func.func @transform_10(%arg0: i32) -> (i32, i32) {
    %c0_i32 = arith.constant 0 : i32
    %c0_i32_0 = arith.constant 0 : i32
    %c0_i32_1 = arith.constant 0 : i32
    return %c0_i32, %c0_i32_0 : i32, i32
  }
  func.func @transform_11(%arg0: i32) -> (i32, i32, i32) {
    %c0_i32 = arith.constant 0 : i32
    %c0_i32_0 = arith.constant 0 : i32
    %c0_i32_1 = arith.constant 0 : i32
    return %arg0, %c0_i32, %c0_i32_0 : i32, i32, i32
  }
}

</mosaic_0001>

<llo_original>
// kernel: lenet_forward.1
$region0: #{lenet_forward.1}
  #allocation0 [shape = 'u32[]', space=smem, size = 0x4, offset = 0x4, fixed_abs, tag = 'smem constant byte address 0x4 - core index']
  #allocation1 [shape = 'u32[144,128]{1,0:T(1,128)}', space=vmem, size = 0x12000, scoped, tag = 'internal scratch']
  %s0 = inlined_call_operand.vmem [shape: bf16[2,16,320], index: 0, kind: input, shape index: {}]
  %s1 = inlined_call_operand.vmem [shape: bf16[9,32,16], index: 1, kind: input, shape index: {}]
  %s2 = inlined_call_operand.vmem [shape: f32[8,1], index: 2, kind: input, shape index: {}]
  %s3 = inlined_call_operand.vmem [shape: bf16[25,16,8], index: 3, kind: input, shape index: {}]
  %s4 = inlined_call_operand.vmem [shape: f32[16,1], index: 4, kind: input, shape index: {}]
  %s5 = inlined_call_operand.vmem [shape: bf16[16,144,128], index: 5, kind: input, shape index: {}]
  %s6 = inlined_call_operand.vmem [shape: f32[1,128], index: 6, kind: input, shape index: {}]
  %s7 = inlined_call_operand.vmem [shape: bf16[128,128], index: 7, kind: input, shape index: {}]
  %s8 = inlined_call_operand.vmem [shape: f32[1,128], index: 8, kind: input, shape index: {}]
  %s9 = inlined_call_operand.vmem [shape: bf16[128,128], index: 9, kind: input, shape index: {}]
  %s10 = inlined_call_operand.vmem [shape: f32[1,128], index: 10, kind: input, shape index: {}]
  %s11 = inlined_call_operand.vmem [shape: f32[2,8,128], index: 11, kind: output, shape index: {}]
  %s12 = sld [smem:[#allocation0]]
  $region77: #{lenet_forward.1} parent=0
    _
  %s14 = ssub.s32 1, %s12
  %s15 = scalar_select 0, %s14, %s12
  loop: start=0, step=1, limit=4
  $region2: #{lenet_forward.1} parent=0 // loop_pre_header
    _
  $region3: #{lenet_forward.1} parent=0 // loop_header
    %s17 = sphi 0, %s21
    %p18 = scmp.ge.s32.totalorder %s17, 4
    %s27 = sphi 0, %s29
    %s30 = sphi 0, %s27
    %s31 = sphi 0, %s30
    %s47 = sphi 0, %s31
    %s51 = sphi 0, %s51
    %s53 = sphi 0, %s51
    %s54 = sphi 0, %s53
    %s68 = sphi 0, %s54
    %s72 = sphi 0, %s72
    %s74 = sphi 0, %s72
    %s75 = sphi 0, %s74
    %s89 = sphi 0, %s75
    %s93 = sphi 0, %s93
    %s95 = sphi 0, %s93
    %s96 = sphi 0, %s95
    %s110 = sphi 0, %s96
    %s114 = sphi 0, %s114
    %s116 = sphi 0, %s114
    %s117 = sphi 0, %s116
    %s131 = sphi 0, %s117
    %s135 = sphi 0, %s135
    %s137 = sphi 0, %s135
    %s138 = sphi 0, %s137
    %s152 = sphi 0, %s138
    %s156 = sphi 0, %s156
    %s158 = sphi 0, %s156
    %s159 = sphi 0, %s158
    %s173 = sphi 0, %s159
    %s177 = sphi 0, %s177
    %s179 = sphi 0, %s177
    %s180 = sphi 0, %s179
    %s194 = sphi 0, %s180
    %s198 = sphi 0, %s198
    %s200 = sphi 0, %s198
    %s201 = sphi 0, %s200
    %s215 = sphi 0, %s201
    %s219 = sphi 0, %s219
    %s221 = sphi 0, %s219
    %s222 = sphi 0, %s221
    %s236 = sphi 0, %s222
    %s240 = sphi 0, %s240
    %s242 = sphi 0, %s240
    %s243 = sphi 0, %s242
    %s257 = sphi 0, %s243
    %s263 = sphi 0, %s265
    %s266 = sphi 0, %s263
    %s267 = sphi 0, %s266
    %s283 = sphi 0, %s267
  $region4: #{lenet_forward.1} parent=0 // loop_header_branch
    %20 = sbr.rel (%p18) target = $region8
  $region5: #{lenet_forward.1} parent=0 // loop_body
    %s22 = ssub.s32 %s17, 1
    %s23 = ssub.s32 %s17, 2
    %s24 = sadd.s32 %s17, 1
    %s25 = ssub.s32 %s17, %s24
    %p26 = scmp.eq.s32.totalorder %s25, 0
    %s28 = sadd.s32 %s27, 1
    %s29 = scalar_select %p26, %s27, %s28
    %p32 = pneg %p26
    %p33 = scmp.eq.s32.totalorder %s17, 1
    %p34 = por %p32, %p33
    %p35 = scmp.ne.s32.totalorder %s27, %s30
    %p36 = scmp.eq.s32.totalorder %s17, 0
    %p37 = por %p35, %p36
    %p38 = scmp.ne.s32.totalorder %s27, %s30
    %p39 = scmp.eq.s32.totalorder %s22, 1
    %p40 = por %p38, %p39
    %p41 = scmp.ne.s32.totalorder %s30, %s31
    %p42 = scmp.eq.s32.totalorder %s22, 0
    %p43 = por %p41, %p42
    %p44 = scmp.ne.s32.totalorder %s30, %s31
    %p45 = scmp.eq.s32.totalorder %s23, 1
    %p46 = por %p44, %p45
    %p48 = scmp.ne.s32.totalorder %s31, %s47
    %p49 = scmp.eq.s32.totalorder %s23, 0
    %p50 = por %p48, %p49
    %s52 = sadd.s32 %s51, 1
    %p55 = scmp.eq.s32.totalorder %s17, 1
    %p56 = scmp.ne.s32.totalorder %s51, %s53
    %p57 = scmp.eq.s32.totalorder %s17, 0
    %p58 = por %p56, %p57
    %p59 = scmp.ne.s32.totalorder %s51, %s53
    %p60 = scmp.eq.s32.totalorder %s22, 1
    %p61 = por %p59, %p60
    %p62 = scmp.ne.s32.totalorder %s53, %s54
    %p63 = scmp.eq.s32.totalorder %s22, 0
    %p64 = por %p62, %p63
    %p65 = scmp.ne.s32.totalorder %s53, %s54
    %p66 = scmp.eq.s32.totalorder %s23, 1
    %p67 = por %p65, %p66
    %p69 = scmp.ne.s32.totalorder %s54, %s68
    %p70 = scmp.eq.s32.totalorder %s23, 0
    %p71 = por %p69, %p70
    %s73 = sadd.s32 %s72, 1
    %p76 = scmp.eq.s32.totalorder %s17, 1
    %p77 = scmp.ne.s32.totalorder %s72, %s74
    %p78 = scmp.eq.s32.totalorder %s17, 0
    %p79 = por %p77, %p78
    %p80 = scmp.ne.s32.totalorder %s72, %s74
    %p81 = scmp.eq.s32.totalorder %s22, 1
    %p82 = por %p80, %p81
    %p83 = scmp.ne.s32.totalorder %s74, %s75
    %p84 = scmp.eq.s32.totalorder %s22, 0
    %p85 = por %p83, %p84
    %p86 = scmp.ne.s32.totalorder %s74, %s75
    %p87 = scmp.eq.s32.totalorder %s23, 1
    %p88 = por %p86, %p87
    %p90 = scmp.ne.s32.totalorder %s75, %s89
    %p91 = scmp.eq.s32.totalorder %s23, 0
    %p92 = por %p90, %p91
    %s94 = sadd.s32 %s93, 1
    %p97 = scmp.eq.s32.totalorder %s17, 1
    %p98 = scmp.ne.s32.totalorder %s93, %s95
    %p99 = scmp.eq.s32.totalorder %s17, 0
    %p100 = por %p98, %p99
    %p101 = scmp.ne.s32.totalorder %s93, %s95
    %p102 = scmp.eq.s32.totalorder %s22, 1
    %p103 = por %p101, %p102
    %p104 = scmp.ne.s32.totalorder %s95, %s96
    %p105 = scmp.eq.s32.totalorder %s22, 0
    %p106 = por %p104, %p105
    %p107 = scmp.ne.s32.totalorder %s95, %s96
    %p108 = scmp.eq.s32.totalorder %s23, 1
    %p109 = por %p107, %p108
    %p111 = scmp.ne.s32.totalorder %s96, %s110
    %p112 = scmp.eq.s32.totalorder %s23, 0
    %p113 = por %p111, %p112
    %s115 = sadd.s32 %s114, 1
    %p118 = scmp.eq.s32.totalorder %s17, 1
    %p119 = scmp.ne.s32.totalorder %s114, %s116
    %p120 = scmp.eq.s32.totalorder %s17, 0
    %p121 = por %p119, %p120
    %p122 = scmp.ne.s32.totalorder %s114, %s116
    %p123 = scmp.eq.s32.totalorder %s22, 1
    %p124 = por %p122, %p123
    %p125 = scmp.ne.s32.totalorder %s116, %s117
    %p126 = scmp.eq.s32.totalorder %s22, 0
    %p127 = por %p125, %p126
    %p128 = scmp.ne.s32.totalorder %s116, %s117
    %p129 = scmp.eq.s32.totalorder %s23, 1
    %p130 = por %p128, %p129
    %p132 = scmp.ne.s32.totalorder %s117, %s131
    %p133 = scmp.eq.s32.totalorder %s23, 0
    %p134 = por %p132, %p133
    %s136 = sadd.s32 %s135, 1
    %p139 = scmp.eq.s32.totalorder %s17, 1
    %p140 = scmp.ne.s32.totalorder %s135, %s137
    %p141 = scmp.eq.s32.totalorder %s17, 0
    %p142 = por %p140, %p141
    %p143 = scmp.ne.s32.totalorder %s135, %s137
    %p144 = scmp.eq.s32.totalorder %s22, 1
    %p145 = por %p143, %p144
    %p146 = scmp.ne.s32.totalorder %s137, %s138
    %p147 = scmp.eq.s32.totalorder %s22, 0
    %p148 = por %p146, %p147
    %p149 = scmp.ne.s32.totalorder %s137, %s138
    %p150 = scmp.eq.s32.totalorder %s23, 1
    %p151 = por %p149, %p150
    %p153 = scmp.ne.s32.totalorder %s138, %s152
    %p154 = scmp.eq.s32.totalorder %s23, 0
    %p155 = por %p153, %p154
    %s157 = sadd.s32 %s156, 1
    %p160 = scmp.eq.s32.totalorder %s17, 1
    %p161 = scmp.ne.s32.totalorder %s156, %s158
    %p162 = scmp.eq.s32.totalorder %s17, 0
    %p163 = por %p161, %p162
    %p164 = scmp.ne.s32.totalorder %s156, %s158
    %p165 = scmp.eq.s32.totalorder %s22, 1
    %p166 = por %p164, %p165
    %p167 = scmp.ne.s32.totalorder %s158, %s159
    %p168 = scmp.eq.s32.totalorder %s22, 0
    %p169 = por %p167, %p168
    %p170 = scmp.ne.s32.totalorder %s158, %s159
    %p171 = scmp.eq.s32.totalorder %s23, 1
    %p172 = por %p170, %p171
    %p174 = scmp.ne.s32.totalorder %s159, %s173
    %p175 = scmp.eq.s32.totalorder %s23, 0
    %p176 = por %p174, %p175
    %s178 = sadd.s32 %s177, 1
    %p181 = scmp.eq.s32.totalorder %s17, 1
    %p182 = scmp.ne.s32.totalorder %s177, %s179
    %p183 = scmp.eq.s32.totalorder %s17, 0
    %p184 = por %p182, %p183
    %p185 = scmp.ne.s32.totalorder %s177, %s179
    %p186 = scmp.eq.s32.totalorder %s22, 1
    %p187 = por %p185, %p186
    %p188 = scmp.ne.s32.totalorder %s179, %s180
    %p189 = scmp.eq.s32.totalorder %s22, 0
    %p190 = por %p188, %p189
    %p191 = scmp.ne.s32.totalorder %s179, %s180
    %p192 = scmp.eq.s32.totalorder %s23, 1
    %p193 = por %p191, %p192
    %p195 = scmp.ne.s32.totalorder %s180, %s194
    %p196 = scmp.eq.s32.totalorder %s23, 0
    %p197 = por %p195, %p196
    %s199 = sadd.s32 %s198, 1
    %p202 = scmp.eq.s32.totalorder %s17, 1
    %p203 = scmp.ne.s32.totalorder %s198, %s200
    %p204 = scmp.eq.s32.totalorder %s17, 0
    %p205 = por %p203, %p204
    %p206 = scmp.ne.s32.totalorder %s198, %s200
    %p207 = scmp.eq.s32.totalorder %s22, 1
    %p208 = por %p206, %p207
    %p209 = scmp.ne.s32.totalorder %s200, %s201
    %p210 = scmp.eq.s32.totalorder %s22, 0
    %p211 = por %p209, %p210
    %p212 = scmp.ne.s32.totalorder %s200, %s201
    %p213 = scmp.eq.s32.totalorder %s23, 1
    %p214 = por %p212, %p213
    %p216 = scmp.ne.s32.totalorder %s201, %s215
    %p217 = scmp.eq.s32.totalorder %s23, 0
    %p218 = por %p216, %p217
    %s220 = sadd.s32 %s219, 1
    %p223 = scmp.eq.s32.totalorder %s17, 1
    %p224 = scmp.ne.s32.totalorder %s219, %s221
    %p225 = scmp.eq.s32.totalorder %s17, 0
    %p226 = por %p224, %p225
    %p227 = scmp.ne.s32.totalorder %s219, %s221
    %p228 = scmp.eq.s32.totalorder %s22, 1
    %p229 = por %p227, %p228
    %p230 = scmp.ne.s32.totalorder %s221, %s222
    %p231 = scmp.eq.s32.totalorder %s22, 0
    %p232 = por %p230, %p231
    %p233 = scmp.ne.s32.totalorder %s221, %s222
    %p234 = scmp.eq.s32.totalorder %s23, 1
    %p235 = por %p233, %p234
    %p237 = scmp.ne.s32.totalorder %s222, %s236
    %p238 = scmp.eq.s32.totalorder %s23, 0
    %p239 = por %p237, %p238
    %s241 = sadd.s32 %s240, 1
    %p244 = scmp.eq.s32.totalorder %s17, 1
    %p245 = scmp.ne.s32.totalorder %s240, %s242
    %p246 = scmp.eq.s32.totalorder %s17, 0
    %p247 = por %p245, %p246
    %p248 = scmp.ne.s32.totalorder %s240, %s242
    %p249 = scmp.eq.s32.totalorder %s22, 1
    %p250 = por %p248, %p249
    %p251 = scmp.ne.s32.totalorder %s242, %s243
    %p252 = scmp.eq.s32.totalorder %s22, 0
    %p253 = por %p251, %p252
    %p254 = scmp.ne.s32.totalorder %s242, %s243
    %p255 = scmp.eq.s32.totalorder %s23, 1
    %p256 = por %p254, %p255
    %p258 = scmp.ne.s32.totalorder %s243, %s257
    %p259 = scmp.eq.s32.totalorder %s23, 0
    %p260 = por %p258, %p259
    %s261 = ssub.s32 %s17, %s24
    %p262 = scmp.eq.s32.totalorder %s261, 0
    %s264 = sadd.s32 %s263, 1
    %s265 = scalar_select %p262, %s263, %s264
    %p268 = pneg %p262
    %p269 = scmp.eq.s32.totalorder %s17, 1
    %p270 = por %p268, %p269
    %p271 = scmp.ne.s32.totalorder %s263, %s266
    %p272 = scmp.eq.s32.totalorder %s17, 0
    %p273 = por %p271, %p272
    %p274 = scmp.ne.s32.totalorder %s263, %s266
    %p275 = scmp.eq.s32.totalorder %s22, 1
    %p276 = por %p274, %p275
    %p277 = scmp.ne.s32.totalorder %s266, %s267
    %p278 = scmp.eq.s32.totalorder %s22, 0
    %p279 = por %p277, %p278
    %p280 = scmp.ne.s32.totalorder %s266, %s267
    %p281 = scmp.eq.s32.totalorder %s23, 1
    %p282 = por %p280, %p281
    %p284 = scmp.ne.s32.totalorder %s267, %s283
    %p285 = scmp.eq.s32.totalorder %s23, 0
    %p286 = por %p284, %p285
    %p287 = scmp.le.s32.totalorder 1, %s17
    %p288 = scmp.lt.s32.totalorder %s17, 3
    %p289 = pnand %p287, %p288
    %p290 = pneg %p289
    // Predicated region
    $region9: #{lenet_forward.1} parent=5 // pred_check
      _
    $region10: #{lenet_forward.1} parent=5 // pred_check_branch
      %292 = sbr.rel (%p289) target = $region12
    $region11: #{lenet_forward.1} parent=5 // pred_region
      %s293 = ssub.s32 %s17, 1
      // Predicated region
      $region13: #{lenet_forward.1} parent=11 // pred_check
        %p294 = pneg %p64
      $region14: #{lenet_forward.1} parent=11 // pred_check_branch
        %296 = sbr.rel (%p294) target = $region16
      $region15: #{lenet_forward.1} parent=11 // pred_region
        _
      $region16: #{lenet_forward.1} parent=11 // pred_fallthru
        _
      // Predicated region
      $region17: #{lenet_forward.1} parent=11 // pred_check
        %p297 = pneg %p85
      $region18: #{lenet_forward.1} parent=11 // pred_check_branch
        %299 = sbr.rel (%p297) target = $region20
      $region19: #{lenet_forward.1} parent=11 // pred_region
        _
      $region20: #{lenet_forward.1} parent=11 // pred_fallthru
        _
      // Predicated region
      $region21: #{lenet_forward.1} parent=11 // pred_check
        %p300 = pneg %p106
      $region22: #{lenet_forward.1} parent=11 // pred_check_branch
        %302 = sbr.rel (%p300) target = $region24
      $region23: #{lenet_forward.1} parent=11 // pred_region
        _
      $region24: #{lenet_forward.1} parent=11 // pred_fallthru
        _
      // Predicated region
      $region25: #{lenet_forward.1} parent=11 // pred_check
        %p303 = pneg %p127
      $region26: #{lenet_forward.1} parent=11 // pred_check_branch
        %305 = sbr.rel (%p303) target = $region28
      $region27: #{lenet_forward.1} parent=11 // pred_region
        _
      $region28: #{lenet_forward.1} parent=11 // pred_fallthru
        _
      // Predicated region
      $region29: #{lenet_forward.1} parent=11 // pred_check
        %p306 = pneg %p148
      $region30: #{lenet_forward.1} parent=11 // pred_check_branch
        %308 = sbr.rel (%p306) target = $region32
      $region31: #{lenet_forward.1} parent=11 // pred_region
        _
      $region32: #{lenet_forward.1} parent=11 // pred_fallthru
        _
      // Predicated region
      $region33: #{lenet_forward.1} parent=11 // pred_check
        %p309 = pneg %p169
      $region34: #{lenet_forward.1} parent=11 // pred_check_branch
        %311 = sbr.rel (%p309) target = $region36
      $region35: #{lenet_forward.1} parent=11 // pred_region
        _
      $region36: #{lenet_forward.1} parent=11 // pred_fallthru
        _
      // Predicated region
      $region37: #{lenet_forward.1} parent=11 // pred_check
        %p312 = pneg %p190
      $region38: #{lenet_forward.1} parent=11 // pred_check_branch
        %314 = sbr.rel (%p312) target = $region40
      $region39: #{lenet_forward.1} parent=11 // pred_region
        _
      $region40: #{lenet_forward.1} parent=11 // pred_fallthru
        _
      // Predicated region
      $region41: #{lenet_forward.1} parent=11 // pred_check
        %p315 = pneg %p211
      $region42: #{lenet_forward.1} parent=11 // pred_check_branch
        %317 = sbr.rel (%p315) target = $region44
      $region43: #{lenet_forward.1} parent=11 // pred_region
        _
      $region44: #{lenet_forward.1} parent=11 // pred_fallthru
        _
      // Predicated region
      $region45: #{lenet_forward.1} parent=11 // pred_check
        %p318 = pneg %p232
      $region46: #{lenet_forward.1} parent=11 // pred_check_branch
        %320 = sbr.rel (%p318) target = $region48
      $region47: #{lenet_forward.1} parent=11 // pred_region
        _
      $region48: #{lenet_forward.1} parent=11 // pred_fallthru
        _
      // Predicated region
      $region49: #{lenet_forward.1} parent=11 // pred_check
        %p321 = pneg %p253
      $region50: #{lenet_forward.1} parent=11 // pred_check_branch
        %323 = sbr.rel (%p321) target = $region52
      $region51: #{lenet_forward.1} parent=11 // pred_region
        _
      $region52: #{lenet_forward.1} parent=11 // pred_fallthru
        _
    $region12: #{lenet_forward.1} parent=5 // pred_fallthru
      _
    %p324 = scmp.lt.s32.totalorder %s17, 2
    // Predicated region
    $region53: #{lenet_forward.1} parent=5 // pred_check
      %p325 = pneg %p324
    $region54: #{lenet_forward.1} parent=5 // pred_check_branch
      %327 = sbr.rel (%p325) target = $region56
    $region55: #{lenet_forward.1} parent=5 // pred_region
      // Predicated region
      $region57: #{lenet_forward.1} parent=55 // pred_check
        %p328 = pneg %p37
      $region58: #{lenet_forward.1} parent=55 // pred_check_branch
        %330 = sbr.rel (%p328) target = $region60
      $region59: #{lenet_forward.1} parent=55 // pred_region
        %p331 = scmp.lt.s32.totalorder %s17, 1
        %s332 = scalar_select %p331, %s17, 1
        %s333 = smul.addr %s332, 6
        %s334 = smul.addr %s333, 4
        %s335 = scalar_lea.vmem %s0, %s334
      $region60: #{lenet_forward.1} parent=55 // pred_fallthru
        _
    $region56: #{lenet_forward.1} parent=5 // pred_fallthru
      _
    %p336 = scmp.le.s32.totalorder 1, %s17
    %p337 = scmp.lt.s32.totalorder %s17, 3
    %p338 = pnand %p336, %p337
    %p339 = pneg %p338
    // Predicated region
    $region61: #{lenet_forward.1} parent=5 // pred_check
      _
    $region62: #{lenet_forward.1} parent=5 // pred_check_branch
      %341 = sbr.rel (%p338) target = $region64
    $region63: #{lenet_forward.1} parent=5 // pred_region
      %s342 = ssub.s32 %s17, 1
      %p343 = scmp.lt.s32.totalorder %s22, 1
      %s344 = scalar_select %p343, %s22, 1
      %s345 = smul.addr %s344, 6
      %s346 = smul.addr %s345, 4
      %s347 = scalar_lea.vmem %s0, %s346
      %p348 = pneg %p43
      %p349 = pneg %p40
      %p350 = pneg %p64
      %p351 = pneg %p61
      %p352 = pneg %p85
      %p353 = pneg %p82
      %p354 = pneg %p106
      %p355 = pneg %p103
      %p356 = pneg %p127
      %p357 = pneg %p124
      %p358 = pneg %p148
      %p359 = pneg %p145
      %p360 = pneg %p169
      %p361 = pneg %p166
      %p362 = pneg %p190
      %p363 = pneg %p187
      %p364 = pneg %p211
      %p365 = pneg %p208
      %p366 = pneg %p232
      %p367 = pneg %p229
      %p368 = pneg %p253
      %p369 = pneg %p250
      %p370 = pneg %p279
      %p371 = pneg %p276
      %p372 = scmp.lt.s32.totalorder %s22, 1
      %s373 = scalar_select %p372, %s22, 1
      %s374 = smul.addr %s373, 8
      %s375 = scalar_lea.vmem %s11, %s374
      %p376 = scmp.lt.s32.totalorder %s22, 1
      %s377 = scalar_select %p376, %s22, 1
      %s378 = smul.addr %s377, 6
      %s379 = smul.addr %s378, 4
      %s380 = scalar_lea.vmem %s0, %s379
      %p381 = scmp.lt.s32.totalorder %s22, 1
      %s382 = scalar_select %p381, %s22, 1
      %s383 = smul.addr %s382, 8
      %s384 = scalar_lea.vmem %s11, %s383
      %v386 = vld [vmem:[%s380] sm:$0xff]
      %v387 = vld [vmem:[%s380 + $0x8] sm:$0xf]
      %v388 = vld [vmem:[%s380 + $0xc] sm:$0xff]
      %v389 = vld [vmem:[%s380 + $0x14] sm:$0xf]
      %v390 = vld [vmem:[%s1] sm:$0xf]
      %v391 = vld [vmem:[%s1 + $0x4] sm:$0xf]
      %v392 = vld [vmem:[%s1 + $0x8] sm:$0xf]
      %v393 = vld [vmem:[%s1 + $0xc] sm:$0xf]
      %s394 = scalar_lea.vmem %s1, 16
      %v395 = vld [vmem:[%s394] sm:$0xf]
      %v396 = vld [vmem:[%s394 + $0x4] sm:$0xf]
      %v397 = vld [vmem:[%s394 + $0x8] sm:$0xf]
      %v398 = vld [vmem:[%s394 + $0xc] sm:$0xf]
      %v403 = vunpack.c.l.b16 %v395
      %v404 = vunpack.c.l.b16 %v396
      %v405 = vunpack.c.l.b16 %v397
      %v406 = vunpack.c.l.b16 %v398
      %v407 = vpack.c.b16 %v404, %v403
      %v408 = vpack.c.b16 %v406, %v405
      %v413 = vunpack.c.l.b16 %v386
      %v414 = vunpack.c.h.b16 %v386
      %v415 = vunpack.c.l.b16 %v387
      %v416 = vunpack.c.l.b16 %v388
      %v417 = vunpack.c.h.b16 %v388
      %v418 = vunpack.c.l.b16 %v389
      %v419 = vpack.c.b16 %v416, %v413
      %v420 = vpack.c.b16 %v417, %v414
      %v421 = vpack.c.b16 %v418, %v415
      %422 = vrot.lane.b32.xlu0 %v419, 127
      %v423 = vpop.permute.xlu0 %422
      %424 = vrot.lane.b32.xlu0 %v420, 127
      %v425 = vpop.permute.xlu0 %424
      %426 = vrot.lane.b32.xlu0 %v421, 127
      %v427 = vpop.permute.xlu0 %426
      %vm428 = vcmask 1039360
      %v429 = vsel %vm428, %v423, %v425
      %v430 = vsel %vm428, %v425, %v427
      %vm433 = vcmask 130048
      %v435 = vsel %vm433, %v407, 0
      %v438 = vsel %vm433, %v408, 0
      %440 = vmatprep.subr.bf16.mxu0 %v430
      %441 = vmatpush1.bf16.msra.mxu0 %v429
      %442 = vmatprep.subr.bf16.mxu0 0
      %443 = vmatpush1.bf16.msra.mxu0 0
      %444 = vmatprep.subr.bf16.mxu0 0
      %445 = vmatpush1.bf16.msra.mxu0 0
      %446 = vmatprep.subr.bf16.mxu0 0
      %447 = vmatpush1.bf16.msra.mxu0 0
      %448 = vmatprep.subr.bf16.mxu0 0
      %449 = vmatpush1.bf16.msra.mxu0 0
      %450 = vmatprep.subr.bf16.mxu0 0
      %451 = vmatpush1.bf16.msra.mxu0 0
      %452 = vmatprep.subr.bf16.mxu0 0
      %453 = vmatpush1.bf16.msra.mxu0 0
      %454 = vmatprep.subr.bf16.mxu0 0
      %455 = vmatpush1.bf16.msra.mxu0 0
      %456 = vmatprep.subr.bf16.mxu0 0
      %457 = vmatpush1.bf16.msra.mxu0 0
      %458 = vmatprep.subr.bf16.mxu0 0
      %459 = vmatpush1.bf16.msra.mxu0 0
      %460 = vmatprep.subr.bf16.mxu0 0
      %461 = vmatpush1.bf16.msra.mxu0 0
      %462 = vmatprep.subr.bf16.mxu0 0
      %463 = vmatpush1.bf16.msra.mxu0 0
      %464 = vmatprep.subr.bf16.mxu0 0
      %465 = vmatpush1.bf16.msra.mxu0 0
      %466 = vmatprep.subr.bf16.mxu0 0
      %467 = vmatpush1.bf16.msra.mxu0 0
      %468 = vmatprep.subr.bf16.mxu0 0
      %469 = vmatpush1.bf16.msra.mxu0 0
      %470 = vmatprep.subr.bf16.mxu0 0
      %471 = vmatpush1.bf16.msra.mxu0 0
      %472 = vmatprep.mubr.bf16.mxu0 0
      %473 = vmatmul.mubr.bf16.gmra.mrb[0].mxu0 %v435
      %v474 = vpop.f32.mrb[0].mxu0
      %v475 = vadd.f32 0.0, %v474
      %v476 = vpop.f32.mrb[0].mxu0
      %v477 = vadd.f32 0.0, %v476
      %v478 = vpop.f32.mrb[0].mxu0
      %v479 = vadd.f32 0.0, %v478
      %v480 = vpop.f32.mrb[0].mxu0
      %v481 = vadd.f32 0.0, %v480
      %482 = vmatprep.mubr.bf16.mxu0 0
      %483 = vmatmul.mubr.bf16.gmra.mrb[0].mxu0 %v438
      %v484 = vpop.f32.mrb[0].mxu0
      %v485 = vadd.f32 0.0, %v484
      %v486 = vpop.f32.mrb[0].mxu0
      %v487 = vadd.f32 0.0, %v486
      %v488 = vpop.f32.mrb[0].mxu0
      %v489 = vadd.f32 0.0, %v488
      %v490 = vpop.f32.mrb[0].mxu0
      %v491 = vadd.f32 0.0, %v490
      %492 = vdwg.mxu0
      %v497 = vunpack.c.l.b16 %v390
      %v498 = vunpack.c.l.b16 %v391
      %v499 = vunpack.c.l.b16 %v392
      %v500 = vunpack.c.l.b16 %v393
      %v501 = vpack.c.b16 %v498, %v497
      %v502 = vpack.c.b16 %v500, %v499
      %v506 = vsel %vm433, %v501, 0
      %v509 = vsel %vm433, %v502, 0
      %511 = vmatprep.subr.bf16.mxu0 %v420
      %512 = vmatpush1.bf16.msra.mxu0 %v419
      %513 = vmatprep.subr.bf16.mxu0 0
      %514 = vmatpush1.bf16.msra.mxu0 0
      %515 = vmatprep.subr.bf16.mxu0 0
      %516 = vmatpush1.bf16.msra.mxu0 0
      %517 = vmatprep.subr.bf16.mxu0 0
      %518 = vmatpush1.bf16.msra.mxu0 0
      %519 = vmatprep.subr.bf16.mxu0 0
      %520 = vmatpush1.bf16.msra.mxu0 0
      %521 = vmatprep.subr.bf16.mxu0 0
      %522 = vmatpush1.bf16.msra.mxu0 0
      %523 = vmatprep.subr.bf16.mxu0 0
      %524 = vmatpush1.bf16.msra.mxu0 0
      %525 = vmatprep.subr.bf16.mxu0 0
      %526 = vmatpush1.bf16.msra.mxu0 0
      %527 = vmatprep.subr.bf16.mxu0 0
      %528 = vmatpush1.bf16.msra.mxu0 0
      %529 = vmatprep.subr.bf16.mxu0 0
      %530 = vmatpush1.bf16.msra.mxu0 0
      %531 = vmatprep.subr.bf16.mxu0 0
      %532 = vmatpush1.bf16.msra.mxu0 0
      %533 = vmatprep.subr.bf16.mxu0 0
      %534 = vmatpush1.bf16.msra.mxu0 0
      %535 = vmatprep.subr.bf16.mxu0 0
      %536 = vmatpush1.bf16.msra.mxu0 0
      %537 = vmatprep.subr.bf16.mxu0 0
      %538 = vmatpush1.bf16.msra.mxu0 0
      %539 = vmatprep.subr.bf16.mxu0 0
      %540 = vmatpush1.bf16.msra.mxu0 0
      %541 = vmatprep.subr.bf16.mxu0 0
      %542 = vmatpush1.bf16.msra.mxu0 0
      %543 = vmatprep.mubr.bf16.mxu0 0
      %544 = vmatmul.mubr.bf16.gmra.mrb[0].mxu0 %v506
      %v545 = vpop.f32.mrb[0].mxu0
      %v546 = vadd.f32 %v475, %v545
      %v547 = vpop.f32.mrb[0].mxu0
      %v548 = vadd.f32 %v477, %v547
      %v549 = vpop.f32.mrb[0].mxu0
      %v550 = vadd.f32 %v479, %v549
      %v551 = vpop.f32.mrb[0].mxu0
      %v552 = vadd.f32 %v481, %v551
      %553 = vmatprep.mubr.bf16.mxu0 0
      %554 = vmatmul.mubr.bf16.gmra.mrb[0].mxu0 %v509
      %v555 = vpop.f32.mrb[0].mxu0
      %v556 = vadd.f32 %v485, %v555
      %v557 = vpop.f32.mrb[0].mxu0
      %v558 = vadd.f32 %v487, %v557
      %v559 = vpop.f32.mrb[0].mxu0
      %v560 = vadd.f32 %v489, %v559
      %v561 = vpop.f32.mrb[0].mxu0
      %v562 = vadd.f32 %v491, %v561
      %563 = vdwg.mxu0
      %s564 = scalar_lea.vmem %s1, 32
      %v565 = vld [vmem:[%s564] sm:$0xf]
      %v566 = vld [vmem:[%s564 + $0x4] sm:$0xf]
      %v567 = vld [vmem:[%s564 + $0x8] sm:$0xf]
      %v568 = vld [vmem:[%s564 + $0xc] sm:$0xf]
      %v573 = vunpack.c.l.b16 %v565
      %v574 = vunpack.c.l.b16 %v566
      %v575 = vunpack.c.l.b16 %v567
      %v576 = vunpack.c.l.b16 %v568
      %v577 = vpack.c.b16 %v574, %v573
      %v578 = vpack.c.b16 %v576, %v575
      %579 = vrot.lane.b32.xlu0 %v419, 126
      %v580 = vpop.permute.xlu0 %579
      %581 = vrot.lane.b32.xlu0 %v420, 126
      %v582 = vpop.permute.xlu0 %581
      %583 = vrot.lane.b32.xlu0 %v421, 126
      %v584 = vpop.permute.xlu0 %583
      %vm585 = vcmask 1031168
      %v586 = vsel %vm585, %v580, %v582
      %v587 = vsel %vm585, %v582, %v584
      %v591 = vsel %vm433, %v577, 0
      %v594 = vsel %vm433, %v578, 0
      %596 = vmatprep.subr.bf16.mxu0 %v587
      %597 = vmatpush1.bf16.msra.mxu0 %v586
      %598 = vmatprep.subr.bf16.mxu0 0
      %599 = vmatpush1.bf16.msra.mxu0 0
      %600 = vmatprep.subr.bf16.mxu0 0
      %601 = vmatpush1.bf16.msra.mxu0 0
      %602 = vmatprep.subr.bf16.mxu0 0
      %603 = vmatpush1.bf16.msra.mxu0 0
      %604 = vmatprep.subr.bf16.mxu0 0
      %605 = vmatpush1.bf16.msra.mxu0 0
      %606 = vmatprep.subr.bf16.mxu0 0
      %607 = vmatpush1.bf16.msra.mxu0 0
      %608 = vmatprep.subr.bf16.mxu0 0
      %609 = vmatpush1.bf16.msra.mxu0 0
      %610 = vmatprep.subr.bf16.mxu0 0
      %611 = vmatpush1.bf16.msra.mxu0 0
      %612 = vmatprep.subr.bf16.mxu0 0
      %613 = vmatpush1.bf16.msra.mxu0 0
      %614 = vmatprep.subr.bf16.mxu0 0
      %615 = vmatpush1.bf16.msra.mxu0 0
      %616 = vmatprep.subr.bf16.mxu0 0
      %617 = vmatpush1.bf16.msra.mxu0 0
      %618 = vmatprep.subr.bf16.mxu0 0
      %619 = vmatpush1.bf16.msra.mxu0 0
      %620 = vmatprep.subr.bf16.mxu0 0
      %621 = vmatpush1.bf16.msra.mxu0 0
      %622 = vmatprep.subr.bf16.mxu0 0
      %623 = vmatpush1.bf16.msra.mxu0 0
      %624 = vmatprep.subr.bf16.mxu0 0
      %625 = vmatpush1.bf16.msra.mxu0 0
      %626 = vmatprep.subr.bf16.mxu0 0
      %627 = vmatpush1.bf16.msra.mxu0 0
      %628 = vmatprep.mubr.bf16.mxu0 0
      %629 = vmatmul.mubr.bf16.gmra.mrb[0].mxu0 %v591
      %v630 = vpop.f32.mrb[0].mxu0
      %v631 = vadd.f32 0.0, %v630
      %v632 = vpop.f32.mrb[0].mxu0
      %v633 = vadd.f32 0.0, %v632
      %v634 = vpop.f32.mrb[0].mxu0
      %v635 = vadd.f32 0.0, %v634
      %v636 = vpop.f32.mrb[0].mxu0
      %v637 = vadd.f32 0.0, %v636
      %638 = vmatprep.mubr.bf16.mxu0 0
      %639 = vmatmul.mubr.bf16.gmra.mrb[0].mxu0 %v594
      %v640 = vpop.f32.mrb[0].mxu0
      %v641 = vadd.f32 0.0, %v640
      %v642 = vpop.f32.mrb[0].mxu0
      %v643 = vadd.f32 0.0, %v642
      %v644 = vpop.f32.mrb[0].mxu0
      %v645 = vadd.f32 0.0, %v644
      %v646 = vpop.f32.mrb[0].mxu0
      %v647 = vadd.f32 0.0, %v646
      %648 = vdwg.mxu0
      %v649 = vadd.f32 %v546, %v631
      %v650 = vadd.f32 %v548, %v633
      %v651 = vadd.f32 %v550, %v635
      %v652 = vadd.f32 %v552, %v637
      %v653 = vadd.f32 %v556, %v641
      %v654 = vadd.f32 %v558, %v643
      %v655 = vadd.f32 %v560, %v645
      %v656 = vadd.f32 %v562, %v647
      %s657 = scalar_lea.vmem %s1, 48
      %v658 = vld [vmem:[%s657] sm:$0xf]
      %v659 = vld [vmem:[%s657 + $0x4] sm:$0xf]
      %v660 = vld [vmem:[%s657 + $0x8] sm:$0xf]
      %v661 = vld [vmem:[%s657 + $0xc] sm:$0xf]
      %v666 = vunpack.c.l.b16 %v658
      %v667 = vunpack.c.l.b16 %v659
      %v668 = vunpack.c.l.b16 %v660
      %v669 = vunpack.c.l.b16 %v661
      %v670 = vpack.c.b16 %v667, %v666
      %v671 = vpack.c.b16 %v669, %v668
      %672 = vrot.lane.b32.xlu0 %v419, 112
      %v673 = vpop.permute.xlu0 %672
      %674 = vrot.lane.b32.xlu0 %v420, 112
      %v675 = vpop.permute.xlu0 %674
      %676 = vrot.lane.b32.xlu0 %v421, 112
      %v677 = vpop.permute.xlu0 %676
      %vm678 = vcmask 916480
      %v679 = vsel %vm678, %v673, %v675
      %v680 = vsel %vm678, %v675, %v677
      %v684 = vsel %vm433, %v670, 0
      %v687 = vsel %vm433, %v671, 0
      %689 = vmatprep.subr.bf16.mxu0 %v680
      %690 = vmatpush1.bf16.msra.mxu0 %v679
      %691 = vmatprep.subr.bf16.mxu0 0
      %692 = vmatpush1.bf16.msra.mxu0 0
      %693 = vmatprep.subr.bf16.mxu0 0
      %694 = vmatpush1.bf16.msra.mxu0 0
      %695 = vmatprep.subr.bf16.mxu0 0
      %696 = vmatpush1.bf16.msra.mxu0 0
      %697 = vmatprep.subr.bf16.mxu0 0
      %698 = vmatpush1.bf16.msra.mxu0 0
      %699 = vmatprep.subr.bf16.mxu0 0
      %700 = vmatpush1.bf16.msra.mxu0 0
      %701 = vmatprep.subr.bf16.mxu0 0
      %702 = vmatpush1.bf16.msra.mxu0 0
      %703 = vmatprep.subr.bf16.mxu0 0
      %704 = vmatpush1.bf16.msra.mxu0 0
      %705 = vmatprep.subr.bf16.mxu0 0
      %706 = vmatpush1.bf16.msra.mxu0 0
      %707 = vmatprep.subr.bf16.mxu0 0
      %708 = vmatpush1.bf16.msra.mxu0 0
      %709 = vmatprep.subr.bf16.mxu0 0
      %710 = vmatpush1.bf16.msra.mxu0 0
      %711 = vmatprep.subr.bf16.mxu0 0
      %712 = vmatpush1.bf16.msra.mxu0 0
      %713 = vmatprep.subr.bf16.mxu0 0
      %714 = vmatpush1.bf16.msra.mxu0 0
      %715 = vmatprep.subr.bf16.mxu0 0
      %716 = vmatpush1.bf16.msra.mxu0 0
      %717 = vmatprep.subr.bf16.mxu0 0
      %718 = vmatpush1.bf16.msra.mxu0 0
      %719 = vmatprep.subr.bf16.mxu0 0
      %720 = vmatpush1.bf16.msra.mxu0 0
      %721 = vmatprep.mubr.bf16.mxu0 0
      %722 = vmatmul.mubr.bf16.gmra.mrb[0].mxu0 %v684
      %v723 = vpop.f32.mrb[0].mxu0
      %v724 = vadd.f32 0.0, %v723
      %v725 = vpop.f32.mrb[0].mxu0
      %v726 = vadd.f32 0.0, %v725
      %v727 = vpop.f32.mrb[0].mxu0
      %v728 = vadd.f32 0.0, %v727
      %v729 = vpop.f32.mrb[0].mxu0
      %v730 = vadd.f32 0.0, %v729
      %731 = vmatprep.mubr.bf16.mxu0 0
      %732 = vmatmul.mubr.bf16.gmra.mrb[0].mxu0 %v687
      %v733 = vpop.f32.mrb[0].mxu0
      %v734 = vadd.f32 0.0, %v733
      %v735 = vpop.f32.mrb[0].mxu0
      %v736 = vadd.f32 0.0, %v735
      %v737 = vpop.f32.mrb[0].mxu0
      %v738 = vadd.f32 0.0, %v737
      %v739 = vpop.f32.mrb[0].mxu0
      %v740 = vadd.f32 0.0, %v739
      %741 = vdwg.mxu0
      %v742 = vadd.f32 %v649, %v724
      %v743 = vadd.f32 %v650, %v726
      %v744 = vadd.f32 %v651, %v728
      %v745 = vadd.f32 %v652, %v730
      %v746 = vadd.f32 %v653, %v734
      %v747 = vadd.f32 %v654, %v736
      %v748 = vadd.f32 %v655, %v738
      %v749 = vadd.f32 %v656, %v740
      %s750 = scalar_lea.vmem %s1, 64
      %v751 = vld [vmem:[%s750] sm:$0xf]
      %v752 = vld [vmem:[%s750 + $0x4] sm:$0xf]
      %v753 = vld [vmem:[%s750 + $0x8] sm:$0xf]
      %v754 = vld [vmem:[%s750 + $0xc] sm:$0xf]
      %v759 = vunpack.c.l.b16 %v751
      %v760 = vunpack.c.l.b16 %v752
      %v761 = vunpack.c.l.b16 %v753
      %v762 = vunpack.c.l.b16 %v754
      %v763 = vpack.c.b16 %v760, %v759
      %v764 = vpack.c.b16 %v762, %v761
      %765 = vrot.lane.b32.xlu0 %v419, 111
      %v766 = vpop.permute.xlu0 %765
      %767 = vrot.lane.b32.xlu0 %v420, 111
      %v768 = vpop.permute.xlu0 %767
      %769 = vrot.lane.b32.xlu0 %v421, 111
      %v770 = vpop.permute.xlu0 %769
      %vm771 = vcmask 908288
      %v772 = vsel %vm771, %v766, %v768
      %v773 = vsel %vm771, %v768, %v770
      %v777 = vsel %vm433, %v763, 0
      %v780 = vsel %vm433, %v764, 0
      %782 = vmatprep.subr.bf16.mxu0 %v773
      %783 = vmatpush1.bf16.msra.mxu0 %v772
      %784 = vmatprep.subr.bf16.mxu0 0
      %785 = vmatpush1.bf16.msra.mxu0 0
      %786 = vmatprep.subr.bf16.mxu0 0
      %787 = vmatpush1.bf16.msra.mxu0 0
      %788 = vmatprep.subr.bf16.mxu0 0
      %789 = vmatpush1.bf16.msra.mxu0 0
      %790 = vmatprep.subr.bf16.mxu0 0
      %791 = vmatpush1.bf16.msra.mxu0 0
      %792 = vmatprep.subr.bf16.mxu0 0
      %793 = vmatpush1.bf16.msra.mxu0 0
      %794 = vmatprep.subr.bf16.mxu0 0
      %795 = vmatpush1.bf16.msra.mxu0 0
      %796 = vmatprep.subr.bf16.mxu0 0
      %797 = vmatpush1.bf16.msra.mxu0 0
      %798 = vmatprep.subr.bf16.mxu0 0
      %799 = vmatpush1.bf16.msra.mxu0 0
      %800 = vmatprep.subr.bf16.mxu0 0
      %801 = vmatpush1.bf16.msra.mxu0 0
      %802 = vmatprep.subr.bf16.mxu0 0
      %803 = vmatpush1.bf16.msra.mxu0 0
      %804 = vmatprep.subr.bf16.mxu0 0
      %805 = vmatpush1.bf16.msra.mxu0 0
      %806 = vmatprep.subr.bf16.mxu0 0
      %807 = vmatpush1.bf16.msra.mxu0 0
      %808 = vmatprep.subr.bf16.mxu0 0
      %809 = vmatpush1.bf16.msra.mxu0 0
      %810 = vmatprep.subr.bf16.mxu0 0
      %811 = vmatpush1.bf16.msra.mxu0 0
      %812 = vmatprep.subr.bf16.mxu0 0
      %813 = vmatpush1.bf16.msra.mxu0 0
      %814 = vmatprep.mubr.bf16.mxu0 0
      %815 = vmatmul.mubr.bf16.gmra.mrb[0].mxu0 %v777
      %v816 = vpop.f32.mrb[0].mxu0
      %v817 = vadd.f32 0.0, %v816
      %v818 = vpop.f32.mrb[0].mxu0
      %v819 = vadd.f32 0.0, %v818
      %v820 = vpop.f32.mrb[0].mxu0
      %v821 = vadd.f32 0.0, %v820
      %v822 = vpop.f32.mrb[0].mxu0
      %v823 = vadd.f32 0.0, %v822
      %824 = vmatprep.mubr.bf16.mxu0 0
      %825 = vmatmul.mubr.bf16.gmra.mrb[0].mxu0 %v780
      %v826 = vpop.f32.mrb[0].mxu0
      %v827 = vadd.f32 0.0, %v826
      %v828 = vpop.f32.mrb[0].mxu0
      %v829 = vadd.f32 0.0, %v828
      %v830 = vpop.f32.mrb[0].mxu0
      %v831 = vadd.f32 0.0, %v830
      %v832 = vpop.f32.mrb[0].mxu0
      %v833 = vadd.f32 0.0, %v832
      %834 = vdwg.mxu0
      %v835 = vadd.f32 %v742, %v817
      %v836 = vadd.f32 %v743, %v819
      %v837 = vadd.f32 %v744, %v821
      %v838 = vadd.f32 %v745, %v823
      %v839 = vadd.f32 %v746, %v827
      %v840 = vadd.f32 %v747, %v829
      %v841 = vadd.f32 %v748, %v831
      %v842 = vadd.f32 %v749, %v833
      %s843 = scalar_lea.vmem %s1, 80
      %v844 = vld [vmem:[%s843] sm:$0xf]
      %v845 = vld [vmem:[%s843 + $0x4] sm:$0xf]
      %v846 = vld [vmem:[%s843 + $0x8] sm:$0xf]
      %v847 = vld [vmem:[%s843 + $0xc] sm:$0xf]
      %v852 = vunpack.c.l.b16 %v844
      %v853 = vunpack.c.l.b16 %v845
      %v854 = vunpack.c.l.b16 %v846
      %v855 = vunpack.c.l.b16 %v847
      %v856 = vpack.c.b16 %v853, %v852
      %v857 = vpack.c.b16 %v855, %v854
      %858 = vrot.lane.b32.xlu0 %v419, 110
      %v859 = vpop.permute.xlu0 %858
      %860 = vrot.lane.b32.xlu0 %v420, 110
      %v861 = vpop.permute.xlu0 %860
      %862 = vrot.lane.b32.xlu0 %v421, 110
      %v863 = vpop.permute.xlu0 %862
      %vm864 = vcmask 900096
      %v865 = vsel %vm864, %v859, %v861
      %v866 = vsel %vm864, %v861, %v863
      %v870 = vsel %vm433, %v856, 0
      %v873 = vsel %vm433, %v857, 0
      %875 = vmatprep.subr.bf16.mxu0 %v866
      %876 = vmatpush1.bf16.msra.mxu0 %v865
      %877 = vmatprep.subr.bf16.mxu0 0
      %878 = vmatpush1.bf16.msra.mxu0 0
      %879 = vmatprep.subr.bf16.mxu0 0
      %880 = vmatpush1.bf16.msra.mxu0 0
      %881 = vmatprep.subr.bf16.mxu0 0
      %882 = vmatpush1.bf16.msra.mxu0 0
      %883 = vmatprep.subr.bf16.mxu0 0
      %884 = vmatpush1.bf16.msra.mxu0 0
      %885 = vmatprep.subr.bf16.mxu0 0
      %886 = vmatpush1.bf16.msra.mxu0 0
      %887 = vmatprep.subr.bf16.mxu0 0
      %888 = vmatpush1.bf16.msra.mxu0 0
      %889 = vmatprep.subr.bf16.mxu0 0
      %890 = vmatpush1.bf16.msra.mxu0 0
      %891 = vmatprep.subr.bf16.mxu0 0
      %892 = vmatpush1.bf16.msra.mxu0 0
      %893 = vmatprep.subr.bf16.mxu0 0
      %894 = vmatpush1.bf16.msra.mxu0 0
      %895 = vmatprep.subr.bf16.mxu0 0
      %896 = vmatpush1.bf16.msra.mxu0 0
      %897 = vmatprep.subr.bf16.mxu0 0
      %898 = vmatpush1.bf16.msra.mxu0 0
      %899 = vmatprep.subr.bf16.mxu0 0
      %900 = vmatpush1.bf16.msra.mxu0 0
      %901 = vmatprep.subr.bf16.mxu0 0
      %902 = vmatpush1.bf16.msra.mxu0 0
      %903 = vmatprep.subr.bf16.mxu0 0
      %904 = vmatpush1.bf16.msra.mxu0 0
      %905 = vmatprep.subr.bf16.mxu0 0
      %906 = vmatpush1.bf16.msra.mxu0 0
      %907 = vmatprep.mubr.bf16.mxu0 0
      %908 = vmatmul.mubr.bf16.gmra.mrb[0].mxu0 %v870
      %v909 = vpop.f32.mrb[0].mxu0
      %v910 = vadd.f32 0.0, %v909
      %v911 = vpop.f32.mrb[0].mxu0
      %v912 = vadd.f32 0.0, %v911
      %v913 = vpop.f32.mrb[0].mxu0
      %v914 = vadd.f32 0.0, %v913
      %v915 = vpop.f32.mrb[0].mxu0
      %v916 = vadd.f32 0.0, %v915
      %917 = vmatprep.mubr.bf16.mxu0 0
      %918 = vmatmul.mubr.bf16.gmra.mrb[0].mxu0 %v873
      %v919 = vpop.f32.mrb[0].mxu0
      %v920 = vadd.f32 0.0, %v919
      %v921 = vpop.f32.mrb[0].mxu0
      %v922 = vadd.f32 0.0, %v921
      %v923 = vpop.f32.mrb[0].mxu0
      %v924 = vadd.f32 0.0, %v923
      %v925 = vpop.f32.mrb[0].mxu0
      %v926 = vadd.f32 0.0, %v925
      %927 = vdwg.mxu0
      %v928 = vadd.f32 %v835, %v910
      %v929 = vadd.f32 %v836, %v912
      %v930 = vadd.f32 %v837, %v914
      %v931 = vadd.f32 %v838, %v916
      %v932 = vadd.f32 %v839, %v920
      %v933 = vadd.f32 %v840, %v922
      %v934 = vadd.f32 %v841, %v924
      %v935 = vadd.f32 %v842, %v926
      %s936 = scalar_lea.vmem %s1, 96
      %v937 = vld [vmem:[%s936] sm:$0xf]
      %v938 = vld [vmem:[%s936 + $0x4] sm:$0xf]
      %v939 = vld [vmem:[%s936 + $0x8] sm:$0xf]
      %v940 = vld [vmem:[%s936 + $0xc] sm:$0xf]
      %v945 = vunpack.c.l.b16 %v937
      %v946 = vunpack.c.l.b16 %v938
      %v947 = vunpack.c.l.b16 %v939
      %v948 = vunpack.c.l.b16 %v940
      %v949 = vpack.c.b16 %v946, %v945
      %v950 = vpack.c.b16 %v948, %v947
      %951 = vrot.lane.b32.xlu0 %v419, 96
      %v952 = vpop.permute.xlu0 %951
      %953 = vrot.lane.b32.xlu0 %v420, 96
      %v954 = vpop.permute.xlu0 %953
      %955 = vrot.lane.b32.xlu0 %v421, 96
      %v956 = vpop.permute.xlu0 %955
      %vm957 = vcmask 785408
      %v958 = vsel %vm957, %v952, %v954
      %v959 = vsel %vm957, %v954, %v956
      %v963 = vsel %vm433, %v949, 0
      %v966 = vsel %vm433, %v950, 0
      %968 = vmatprep.subr.bf16.mxu0 %v959
      %969 = vmatpush1.bf16.msra.mxu0 %v958
      %970 = vmatprep.subr.bf16.mxu0 0
      %971 = vmatpush1.bf16.msra.mxu0 0
      %972 = vmatprep.subr.bf16.mxu0 0
      %973 = vmatpush1.bf16.msra.mxu0 0
      %974 = vmatprep.subr.bf16.mxu0 0
      %975 = vmatpush1.bf16.msra.mxu0 0
      %976 = vmatprep.subr.bf16.mxu0 0
      %977 = vmatpush1.bf16.msra.mxu0 0
      %978 = vmatprep.subr.bf16.mxu0 0
      %979 = vmatpush1.bf16.msra.mxu0 0
      %980 = vmatprep.subr.bf16.mxu0 0
      %981 = vmatpush1.bf16.msra.mxu0 0
      %982 = vmatprep.subr.bf16.mxu0 0
      %983 = vmatpush1.bf16.msra.mxu0 0
      %984 = vmatprep.subr.bf16.mxu0 0
      %985 = vmatpush1.bf16.msra.mxu0 0
      %986 = vmatprep.subr.bf16.mxu0 0
      %987 = vmatpush1.bf16.msra.mxu0 0
      %988 = vmatprep.subr.bf16.mxu0 0
      %989 = vmatpush1.bf16.msra.mxu0 0
      %990 = vmatprep.subr.bf16.mxu0 0
      %991 = vmatpush1.bf16.msra.mxu0 0
      %992 = vmatprep.subr.bf16.mxu0 0
      %993 = vmatpush1.bf16.msra.mxu0 0
      %994 = vmatprep.subr.bf16.mxu0 0
      %995 = vmatpush1.bf16.msra.mxu0 0
      %996 = vmatprep.subr.bf16.mxu0 0
      %997 = vmatpush1.bf16.msra.mxu0 0
      %998 = vmatprep.subr.bf16.mxu0 0
      %999 = vmatpush1.bf16.msra.mxu0 0
      %1000 = vmatprep.mubr.bf16.mxu0 0
      %1001 = vmatmul.mubr.bf16.gmra.mrb[0].mxu0 %v963
      %v1002 = vpop.f32.mrb[0].mxu0
      %v1003 = vadd.f32 0.0, %v1002
      %v1004 = vpop.f32.mrb[0].mxu0
      %v1005 = vadd.f32 0.0, %v1004
      %v1006 = vpop.f32.mrb[0].mxu0
      %v1007 = vadd.f32 0.0, %v1006
      %v1008 = vpop.f32.mrb[0].mxu0
      %v1009 = vadd.f32 0.0, %v1008
      %1010 = vmatprep.mubr.bf16.mxu0 0
      %1011 = vmatmul.mubr.bf16.gmra.mrb[0].mxu0 %v966
      %v1012 = vpop.f32.mrb[0].mxu0
      %v1013 = vadd.f32 0.0, %v1012
      %v1014 = vpop.f32.mrb[0].mxu0
      %v1015 = vadd.f32 0.0, %v1014
      %v1016 = vpop.f32.mrb[0].mxu0
      %v1017 = vadd.f32 0.0, %v1016
      %v1018 = vpop.f32.mrb[0].mxu0
      %v1019 = vadd.f32 0.0, %v1018
      %1020 = vdwg.mxu0
      %v1021 = vadd.f32 %v928, %v1003
      %v1022 = vadd.f32 %v929, %v1005
      %v1023 = vadd.f32 %v930, %v1007
      %v1024 = vadd.f32 %v931, %v1009
      %v1025 = vadd.f32 %v932, %v1013
      %v1026 = vadd.f32 %v933, %v1015
      %v1027 = vadd.f32 %v934, %v1017
      %v1028 = vadd.f32 %v935, %v1019
      %s1029 = scalar_lea.vmem %s1, 112
      %v1030 = vld [vmem:[%s1029] sm:$0xf]
      %v1031 = vld [vmem:[%s1029 + $0x4] sm:$0xf]
      %v1032 = vld [vmem:[%s1029 + $0x8] sm:$0xf]
      %v1033 = vld [vmem:[%s1029 + $0xc] sm:$0xf]
      %v1038 = vunpack.c.l.b16 %v1030
      %v1039 = vunpack.c.l.b16 %v1031
      %v1040 = vunpack.c.l.b16 %v1032
      %v1041 = vunpack.c.l.b16 %v1033
      %v1042 = vpack.c.b16 %v1039, %v1038
      %v1043 = vpack.c.b16 %v1041, %v1040
      %1044 = vrot.lane.b32.xlu0 %v419, 95
      %v1045 = vpop.permute.xlu0 %1044
      %1046 = vrot.lane.b32.xlu0 %v420, 95
      %v1047 = vpop.permute.xlu0 %1046
      %1048 = vrot.lane.b32.xlu0 %v421, 95
      %v1049 = vpop.permute.xlu0 %1048
      %vm1050 = vcmask 777216
      %v1051 = vsel %vm1050, %v1045, %v1047
      %v1052 = vsel %vm1050, %v1047, %v1049
      %v1056 = vsel %vm433, %v1042, 0
      %v1059 = vsel %vm433, %v1043, 0
      %1061 = vmatprep.subr.bf16.mxu0 %v1052
      %1062 = vmatpush1.bf16.msra.mxu0 %v1051
      %1063 = vmatprep.subr.bf16.mxu0 0
      %1064 = vmatpush1.bf16.msra.mxu0 0
      %1065 = vmatprep.subr.bf16.mxu0 0
      %1066 = vmatpush1.bf16.msra.mxu0 0
      %1067 = vmatprep.subr.bf16.mxu0 0
      %1068 = vmatpush1.bf16.msra.mxu0 0
      %1069 = vmatprep.subr.bf16.mxu0 0
      %1070 = vmatpush1.bf16.msra.mxu0 0
      %1071 = vmatprep.subr.bf16.mxu0 0
      %1072 = vmatpush1.bf16.msra.mxu0 0
      %1073 = vmatprep.subr.bf16.mxu0 0
      %1074 = vmatpush1.bf16.msra.mxu0 0
      %1075 = vmatprep.subr.bf16.mxu0 0
      %1076 = vmatpush1.bf16.msra.mxu0 0
      %1077 = vmatprep.subr.bf16.mxu0 0
      %1078 = vmatpush1.bf16.msra.mxu0 0
      %1079 = vmatprep.subr.bf16.mxu0 0
      %1080 = vmatpush1.bf16.msra.mxu0 0
      %1081 = vmatprep.subr.bf16.mxu0 0
      %1082 = vmatpush1.bf16.msra.mxu0 0
      %1083 = vmatprep.subr.bf16.mxu0 0
      %1084 = vmatpush1.bf16.msra.mxu0 0
      %1085 = vmatprep.subr.bf16.mxu0 0
      %1086 = vmatpush1.bf16.msra.mxu0 0
      %1087 = vmatprep.subr.bf16.mxu0 0
      %1088 = vmatpush1.bf16.msra.mxu0 0
      %1089 = vmatprep.subr.bf16.mxu0 0
      %1090 = vmatpush1.bf16.msra.mxu0 0
      %1091 = vmatprep.subr.bf16.mxu0 0
      %1092 = vmatpush1.bf16.msra.mxu0 0
      %1093 = vmatprep.mubr.bf16.mxu0 0
      %1094 = vmatmul.mubr.bf16.gmra.mrb[0].mxu0 %v1056
      %v1095 = vpop.f32.mrb[0].mxu0
      %v1096 = vadd.f32 0.0, %v1095
      %v1097 = vpop.f32.mrb[0].mxu0
      %v1098 = vadd.f32 0.0, %v1097
      %v1099 = vpop.f32.mrb[0].mxu0
      %v1100 = vadd.f32 0.0, %v1099
      %v1101 = vpop.f32.mrb[0].mxu0
      %v1102 = vadd.f32 0.0, %v1101
      %1103 = vmatprep.mubr.bf16.mxu0 0
      %1104 = vmatmul.mubr.bf16.gmra.mrb[0].mxu0 %v1059
      %v1105 = vpop.f32.mrb[0].mxu0
      %v1106 = vadd.f32 0.0, %v1105
      %v1107 = vpop.f32.mrb[0].mxu0
      %v1108 = vadd.f32 0.0, %v1107
      %v1109 = vpop.f32.mrb[0].mxu0
      %v1110 = vadd.f32 0.0, %v1109
      %v1111 = vpop.f32.mrb[0].mxu0
      %v1112 = vadd.f32 0.0, %v1111
      %1113 = vdwg.mxu0
      %v1114 = vadd.f32 %v1021, %v1096
      %v1115 = vadd.f32 %v1022, %v1098
      %v1116 = vadd.f32 %v1023, %v1100
      %v1117 = vadd.f32 %v1024, %v1102
      %v1118 = vadd.f32 %v1025, %v1106
      %v1119 = vadd.f32 %v1026, %v1108
      %v1120 = vadd.f32 %v1027, %v1110
      %v1121 = vadd.f32 %v1028, %v1112
      %s1122 = scalar_lea.vmem %s1, 128
      %v1123 = vld [vmem:[%s1122] sm:$0xf]
      %v1124 = vld [vmem:[%s1122 + $0x4] sm:$0xf]
      %v1125 = vld [vmem:[%s1122 + $0x8] sm:$0xf]
      %v1126 = vld [vmem:[%s1122 + $0xc] sm:$0xf]
      %v1131 = vunpack.c.l.b16 %v1123
      %v1132 = vunpack.c.l.b16 %v1124
      %v1133 = vunpack.c.l.b16 %v1125
      %v1134 = vunpack.c.l.b16 %v1126
      %v1135 = vpack.c.b16 %v1132, %v1131
      %v1136 = vpack.c.b16 %v1134, %v1133
      %1137 = vrot.lane.b32.xlu0 %v419, 94
      %v1138 = vpop.permute.xlu0 %1137
      %1139 = vrot.lane.b32.xlu0 %v420, 94
      %v1140 = vpop.permute.xlu0 %1139
      %1141 = vrot.lane.b32.xlu0 %v421, 94
      %v1142 = vpop.permute.xlu0 %1141
      %vm1143 = vcmask 769024
      %v1144 = vsel %vm1143, %v1138, %v1140
      %v1145 = vsel %vm1143, %v1140, %v1142
      %v1149 = vsel %vm433, %v1135, 0
      %v1152 = vsel %vm433, %v1136, 0
      %1154 = vmatprep.subr.bf16.mxu0 %v1145
      %1155 = vmatpush1.bf16.msra.mxu0 %v1144
      %1156 = vmatprep.subr.bf16.mxu0 0
      %1157 = vmatpush1.bf16.msra.mxu0 0
      %1158 = vmatprep.subr.bf16.mxu0 0
      %1159 = vmatpush1.bf16.msra.mxu0 0
      %1160 = vmatprep.subr.bf16.mxu0 0
      %1161 = vmatpush1.bf16.msra.mxu0 0
      %1162 = vmatprep.subr.bf16.mxu0 0
      %1163 = vmatpush1.bf16.msra.mxu0 0
      %1164 = vmatprep.subr.bf16.mxu0 0
      %1165 = vmatpush1.bf16.msra.mxu0 0
      %1166 = vmatprep.subr.bf16.mxu0 0
      %1167 = vmatpush1.bf16.msra.mxu0 0
      %1168 = vmatprep.subr.bf16.mxu0 0
      %1169 = vmatpush1.bf16.msra.mxu0 0
      %1170 = vmatprep.subr.bf16.mxu0 0
      %1171 = vmatpush1.bf16.msra.mxu0 0
      %1172 = vmatprep.subr.bf16.mxu0 0
      %1173 = vmatpush1.bf16.msra.mxu0 0
      %1174 = vmatprep.subr.bf16.mxu0 0
      %1175 = vmatpush1.bf16.msra.mxu0 0
      %1176 = vmatprep.subr.bf16.mxu0 0
      %1177 = vmatpush1.bf16.msra.mxu0 0
      %1178 = vmatprep.subr.bf16.mxu0 0
      %1179 = vmatpush1.bf16.msra.mxu0 0
      %1180 = vmatprep.subr.bf16.mxu0 0
      %1181 = vmatpush1.bf16.msra.mxu0 0
      %1182 = vmatprep.subr.bf16.mxu0 0
      %1183 = vmatpush1.bf16.msra.mxu0 0
      %1184 = vmatprep.subr.bf16.mxu0 0
      %1185 = vmatpush1.bf16.msra.mxu0 0
      %1186 = vmatprep.mubr.bf16.mxu0 0
      %1187 = vmatmul.mubr.bf16.gmra.mrb[0].mxu0 %v1149
      %v1188 = vpop.f32.mrb[0].mxu0
      %v1189 = vadd.f32 0.0, %v1188
      %v1190 = vpop.f32.mrb[0].mxu0
      %v1191 = vadd.f32 0.0, %v1190
      %v1192 = vpop.f32.mrb[0].mxu0
      %v1193 = vadd.f32 0.0, %v1192
      %v1194 = vpop.f32.mrb[0].mxu0
      %v1195 = vadd.f32 0.0, %v1194
      %1196 = vmatprep.mubr.bf16.mxu0 0
      %1197 = vmatmul.mubr.bf16.gmra.mrb[0].mxu0 %v1152
      %v1198 = vpop.f32.mrb[0].mxu0
      %v1199 = vadd.f32 0.0, %v1198
      %v1200 = vpop.f32.mrb[0].mxu0
      %v1201 = vadd.f32 0.0, %v1200
      %v1202 = vpop.f32.mrb[0].mxu0
      %v1203 = vadd.f32 0.0, %v1202
      %v1204 = vpop.f32.mrb[0].mxu0
      %v1205 = vadd.f32 0.0, %v1204
      %1206 = vdwg.mxu0
      %v1207 = vadd.f32 %v1114, %v1189
      %v1208 = vadd.f32 %v1115, %v1191
      %v1209 = vadd.f32 %v1116, %v1193
      %v1210 = vadd.f32 %v1117, %v1195
      %v1211 = vadd.f32 %v1118, %v1199
      %v1212 = vadd.f32 %v1119, %v1201
      %v1213 = vadd.f32 %v1120, %v1203
      %v1214 = vadd.f32 %v1121, %v1205
      %v1215 = vmax.f32 %v1207, %v1209
      %v1216 = vmax.f32 %v1208, %v1210
      %v1217 = vmax.f32 %v1211, %v1213
      %v1218 = vmax.f32 %v1212, %v1214
      %v1219 = vmax.f32 %v1215, %v1217
      %v1220 = vmax.f32 %v1216, %v1218
      %v1221 = vld [vmem:[%s2] sm:$0xff]
      %1223 = vset.pattern.permute.xlu0 0
      %1224 = vperm.xlu0 %1223, %v1221
      %v1225 = vpop.permute.xlu0 %1224
      %v1227 = vadd.f32 %v1219, %v1225
      %v1228 = vadd.f32 %v1220, %v1225
      %v1229 = vmax.f32 %v1227, 0.0
      %v1230 = vmax.f32 %v1228, 0.0
      %v1231 = vpack.c.bf16 %v1229, %v1229
      %v1232 = vpack.c.bf16 %v1230, %v1230
      %v1233 = vld [vmem:[%s3] sm:$0xf]
      %v1234 = vld [vmem:[%s3 + $0x4] sm:$0xf]
      %s1235 = scalar_lea.vmem %s3, 8
      %v1236 = vld [vmem:[%s1235] sm:$0xf]
      %v1237 = vld [vmem:[%s1235 + $0x4] sm:$0xf]
      %v1240 = vunpack.c.l.b16 %v1236
      %v1241 = vunpack.c.l.b16 %v1237
      %v1242 = vpack.c.b16 %v1241, %v1240
      %1245 = vrot.lane.b32.xlu0 %v1231, 127
      %v1246 = vpop.permute.xlu0 %1245
      %1247 = vrot.lane.b32.xlu0 %v1232, 127
      %v1248 = vpop.permute.xlu0 %1247
      %v1249 = vsel %vm428, %v1246, %v1248
      %vm1250 = vcmask 64512
      %v1252 = vsel %vm1250, %v1242, 0
      %vm1254 = vcmask 1043456
      %v1256 = vsel %vm1254, %v1249, 0
      %v1259 = vsel %vm1254, %v1248, 0
      %1261 = vmatprep.subr.bf16.mxu0 %v1259
      %1262 = vmatpush1.bf16.msra.mxu0 %v1256
      %1263 = vmatprep.subr.bf16.mxu0 0
      %1264 = vmatpush1.bf16.msra.mxu0 0
      %1265 = vmatprep.subr.bf16.mxu0 0
      %1266 = vmatpush1.bf16.msra.mxu0 0
      %1267 = vmatprep.subr.bf16.mxu0 0
      %1268 = vmatpush1.bf16.msra.mxu0 0
      %1269 = vmatprep.subr.bf16.mxu0 0
      %1270 = vmatpush1.bf16.msra.mxu0 0
      %1271 = vmatprep.subr.bf16.mxu0 0
      %1272 = vmatpush1.bf16.msra.mxu0 0
      %1273 = vmatprep.subr.bf16.mxu0 0
      %1274 = vmatpush1.bf16.msra.mxu0 0
      %1275 = vmatprep.subr.bf16.mxu0 0
      %1276 = vmatpush1.bf16.msra.mxu0 0
      %1277 = vmatprep.subr.bf16.mxu0 0
      %1278 = vmatpush1.bf16.msra.mxu0 0
      %1279 = vmatprep.subr.bf16.mxu0 0
      %1280 = vmatpush1.bf16.msra.mxu0 0
      %1281 = vmatprep.subr.bf16.mxu0 0
      %1282 = vmatpush1.bf16.msra.mxu0 0
      %1283 = vmatprep.subr.bf16.mxu0 0
      %1284 = vmatpush1.bf16.msra.mxu0 0
      %1285 = vmatprep.subr.bf16.mxu0 0
      %1286 = vmatpush1.bf16.msra.mxu0 0
      %1287 = vmatprep.subr.bf16.mxu0 0
      %1288 = vmatpush1.bf16.msra.mxu0 0
      %1289 = vmatprep.subr.bf16.mxu0 0
      %1290 = vmatpush1.bf16.msra.mxu0 0
      %1291 = vmatprep.subr.bf16.mxu0 0
      %1292 = vmatpush1.bf16.msra.mxu0 0
      %1293 = vmatprep.mubr.bf16.mxu0 0
      %1294 = vmatmul.mubr.bf16.gmra.mrb[0].mxu0 %v1252
      %v1295 = vpop.f32.mrb[0].mxu0
      %v1296 = vadd.f32 0.0, %v1295
      %v1297 = vpop.f32.mrb[0].mxu0
      %v1298 = vadd.f32 0.0, %v1297
      %v1299 = vpop.f32.mrb[0].mxu0
      %v1300 = vadd.f32 0.0, %v1299
      %v1301 = vpop.f32.mrb[0].mxu0
      %v1302 = vadd.f32 0.0, %v1301
      %1303 = vdwg.mxu0
      %v1306 = vunpack.c.l.b16 %v1233
      %v1307 = vunpack.c.l.b16 %v1234
      %v1308 = vpack.c.b16 %v1307, %v1306
      %v1310 = vsel %vm1250, %v1308, 0
      %v1313 = vsel %vm1254, %v1231, 0
      %v1316 = vsel %vm1254, %v1232, 0
      %1318 = vmatprep.subr.bf16.mxu0 %v1316
      %1319 = vmatpush1.bf16.msra.mxu0 %v1313
      %1320 = vmatprep.subr.bf16.mxu0 0
      %1321 = vmatpush1.bf16.msra.mxu0 0
      %1322 = vmatprep.subr.bf16.mxu0 0
      %1323 = vmatpush1.bf16.msra.mxu0 0
      %1324 = vmatprep.subr.bf16.mxu0 0
      %1325 = vmatpush1.bf16.msra.mxu0 0
      %1326 = vmatprep.subr.bf16.mxu0 0
      %1327 = vmatpush1.bf16.msra.mxu0 0
      %1328 = vmatprep.subr.bf16.mxu0 0
      %1329 = vmatpush1.bf16.msra.mxu0 0
      %1330 = vmatprep.subr.bf16.mxu0 0
      %1331 = vmatpush1.bf16.msra.mxu0 0
      %1332 = vmatprep.subr.bf16.mxu0 0
      %1333 = vmatpush1.bf16.msra.mxu0 0
      %1334 = vmatprep.subr.bf16.mxu0 0
      %1335 = vmatpush1.bf16.msra.mxu0 0
      %1336 = vmatprep.subr.bf16.mxu0 0
      %1337 = vmatpush1.bf16.msra.mxu0 0
      %1338 = vmatprep.subr.bf16.mxu0 0
      %1339 = vmatpush1.bf16.msra.mxu0 0
      %1340 = vmatprep.subr.bf16.mxu0 0
      %1341 = vmatpush1.bf16.msra.mxu0 0
      %1342 = vmatprep.subr.bf16.mxu0 0
      %1343 = vmatpush1.bf16.msra.mxu0 0
      %1344 = vmatprep.subr.bf16.mxu0 0
      %1345 = vmatpush1.bf16.msra.mxu0 0
      %1346 = vmatprep.subr.bf16.mxu0 0
      %1347 = vmatpush1.bf16.msra.mxu0 0
      %1348 = vmatprep.subr.bf16.mxu0 0
      %1349 = vmatpush1.bf16.msra.mxu0 0
      %1350 = vmatprep.mubr.bf16.mxu0 0
      %1351 = vmatmul.mubr.bf16.gmra.mrb[0].mxu0 %v1310
      %v1352 = vpop.f32.mrb[0].mxu0
      %v1353 = vadd.f32 %v1296, %v1352
      %v1354 = vpop.f32.mrb[0].mxu0
      %v1355 = vadd.f32 %v1298, %v1354
      %v1356 = vpop.f32.mrb[0].mxu0
      %v1357 = vadd.f32 %v1300, %v1356
      %v1358 = vpop.f32.mrb[0].mxu0
      %v1359 = vadd.f32 %v1302, %v1358
      %1360 = vdwg.mxu0
      %s1361 = scalar_lea.vmem %s3, 16
      %v1362 = vld [vmem:[%s1361] sm:$0xf]
      %v1363 = vld [vmem:[%s1361 + $0x4] sm:$0xf]
      %v1366 = vunpack.c.l.b16 %v1362
      %v1367 = vunpack.c.l.b16 %v1363
      %v1368 = vpack.c.b16 %v1367, %v1366
      %1369 = vrot.lane.b32.xlu0 %v1231, 126
      %v1370 = vpop.permute.xlu0 %1369
      %1371 = vrot.lane.b32.xlu0 %v1232, 126
      %v1372 = vpop.permute.xlu0 %1371
      %v1373 = vsel %vm585, %v1370, %v1372
      %v1375 = vsel %vm1250, %v1368, 0
      %v1378 = vsel %vm1254, %v1373, 0
      %v1381 = vsel %vm1254, %v1372, 0
      %1383 = vmatprep.subr.bf16.mxu0 %v1381
      %1384 = vmatpush1.bf16.msra.mxu0 %v1378
      %1385 = vmatprep.subr.bf16.mxu0 0
      %1386 = vmatpush1.bf16.msra.mxu0 0
      %1387 = vmatprep.subr.bf16.mxu0 0
      %1388 = vmatpush1.bf16.msra.mxu0 0
      %1389 = vmatprep.subr.bf16.mxu0 0
      %1390 = vmatpush1.bf16.msra.mxu0 0
      %1391 = vmatprep.subr.bf16.mxu0 0
      %1392 = vmatpush1.bf16.msra.mxu0 0
      %1393 = vmatprep.subr.bf16.mxu0 0
      %1394 = vmatpush1.bf16.msra.mxu0 0
      %1395 = vmatprep.subr.bf16.mxu0 0
      %1396 = vmatpush1.bf16.msra.mxu0 0
      %1397 = vmatprep.subr.bf16.mxu0 0
      %1398 = vmatpush1.bf16.msra.mxu0 0
      %1399 = vmatprep.subr.bf16.mxu0 0
      %1400 = vmatpush1.bf16.msra.mxu0 0
      %1401 = vmatprep.subr.bf16.mxu0 0
      %1402 = vmatpush1.bf16.msra.mxu0 0
      %1403 = vmatprep.subr.bf16.mxu0 0
      %1404 = vmatpush1.bf16.msra.mxu0 0
      %1405 = vmatprep.subr.bf16.mxu0 0
      %1406 = vmatpush1.bf16.msra.mxu0 0
      %1407 = vmatprep.subr.bf16.mxu0 0
      %1408 = vmatpush1.bf16.msra.mxu0 0
      %1409 = vmatprep.subr.bf16.mxu0 0
      %1410 = vmatpush1.bf16.msra.mxu0 0
      %1411 = vmatprep.subr.bf16.mxu0 0
      %1412 = vmatpush1.bf16.msra.mxu0 0
      %1413 = vmatprep.subr.bf16.mxu0 0
      %1414 = vmatpush1.bf16.msra.mxu0 0
      %1415 = vmatprep.mubr.bf16.mxu0 0
      %1416 = vmatmul.mubr.bf16.gmra.mrb[0].mxu0 %v1375
      %v1417 = vpop.f32.mrb[0].mxu0
      %v1418 = vadd.f32 0.0, %v1417
      %v1419 = vpop.f32.mrb[0].mxu0
      %v1420 = vadd.f32 0.0, %v1419
      %v1421 = vpop.f32.mrb[0].mxu0
      %v1422 = vadd.f32 0.0, %v1421
      %v1423 = vpop.f32.mrb[0].mxu0
      %v1424 = vadd.f32 0.0, %v1423
      %1425 = vdwg.mxu0
      %v1426 = vadd.f32 %v1353, %v1418
      %v1427 = vadd.f32 %v1355, %v1420
      %v1428 = vadd.f32 %v1357, %v1422
      %v1429 = vadd.f32 %v1359, %v1424
      %s1430 = scalar_lea.vmem %s3, 24
      %v1431 = vld [vmem:[%s1430] sm:$0xf]
      %v1432 = vld [vmem:[%s1430 + $0x4] sm:$0xf]
      %v1435 = vunpack.c.l.b16 %v1431
      %v1436 = vunpack.c.l.b16 %v1432
      %v1437 = vpack.c.b16 %v1436, %v1435
      %1438 = vrot.lane.b32.xlu0 %v1231, 125
      %v1439 = vpop.permute.xlu0 %1438
      %1440 = vrot.lane.b32.xlu0 %v1232, 125
      %v1441 = vpop.permute.xlu0 %1440
      %vm1442 = vcmask 1022976
      %v1443 = vsel %vm1442, %v1439, %v1441
      %v1445 = vsel %vm1250, %v1437, 0
      %v1448 = vsel %vm1254, %v1443, 0
      %v1451 = vsel %vm1254, %v1441, 0
      %1453 = vmatprep.subr.bf16.mxu0 %v1451
      %1454 = vmatpush1.bf16.msra.mxu0 %v1448
      %1455 = vmatprep.subr.bf16.mxu0 0
      %1456 = vmatpush1.bf16.msra.mxu0 0
      %1457 = vmatprep.subr.bf16.mxu0 0
      %1458 = vmatpush1.bf16.msra.mxu0 0
      %1459 = vmatprep.subr.bf16.mxu0 0
      %1460 = vmatpush1.bf16.msra.mxu0 0
      %1461 = vmatprep.subr.bf16.mxu0 0
      %1462 = vmatpush1.bf16.msra.mxu0 0
      %1463 = vmatprep.subr.bf16.mxu0 0
      %1464 = vmatpush1.bf16.msra.mxu0 0
      %1465 = vmatprep.subr.bf16.mxu0 0
      %1466 = vmatpush1.bf16.msra.mxu0 0
      %1467 = vmatprep.subr.bf16.mxu0 0
      %1468 = vmatpush1.bf16.msra.mxu0 0
      %1469 = vmatprep.subr.bf16.mxu0 0
      %1470 = vmatpush1.bf16.msra.mxu0 0
      %1471 = vmatprep.subr.bf16.mxu0 0
      %1472 = vmatpush1.bf16.msra.mxu0 0
      %1473 = vmatprep.subr.bf16.mxu0 0
      %1474 = vmatpush1.bf16.msra.mxu0 0
      %1475 = vmatprep.subr.bf16.mxu0 0
      %1476 = vmatpush1.bf16.msra.mxu0 0
      %1477 = vmatprep.subr.bf16.mxu0 0
      %1478 = vmatpush1.bf16.msra.mxu0 0
      %1479 = vmatprep.subr.bf16.mxu0 0
      %1480 = vmatpush1.bf16.msra.mxu0 0
      %1481 = vmatprep.subr.bf16.mxu0 0
      %1482 = vmatpush1.bf16.msra.mxu0 0
      %1483 = vmatprep.subr.bf16.mxu0 0
      %1484 = vmatpush1.bf16.msra.mxu0 0
      %1485 = vmatprep.mubr.bf16.mxu0 0
      %1486 = vmatmul.mubr.bf16.gmra.mrb[0].mxu0 %v1445
      %v1487 = vpop.f32.mrb[0].mxu0
      %v1488 = vadd.f32 0.0, %v1487
      %v1489 = vpop.f32.mrb[0].mxu0
      %v1490 = vadd.f32 0.0, %v1489
      %v1491 = vpop.f32.mrb[0].mxu0
      %v1492 = vadd.f32 0.0, %v1491
      %v1493 = vpop.f32.mrb[0].mxu0
      %v1494 = vadd.f32 0.0, %v1493
      %1495 = vdwg.mxu0
      %v1496 = vadd.f32 %v1426, %v1488
      %v1497 = vadd.f32 %v1427, %v1490
      %v1498 = vadd.f32 %v1428, %v1492
      %v1499 = vadd.f32 %v1429, %v1494
      %s1500 = scalar_lea.vmem %s3, 32
      %v1501 = vld [vmem:[%s1500] sm:$0xf]
      %v1502 = vld [vmem:[%s1500 + $0x4] sm:$0xf]
      %v1505 = vunpack.c.l.b16 %v1501
      %v1506 = vunpack.c.l.b16 %v1502
      %v1507 = vpack.c.b16 %v1506, %v1505
      %1508 = vrot.lane.b32.xlu0 %v1231, 124
      %v1509 = vpop.permute.xlu0 %1508
      %1510 = vrot.lane.b32.xlu0 %v1232, 124
      %v1511 = vpop.permute.xlu0 %1510
      %vm1512 = vcmask 1014784
      %v1513 = vsel %vm1512, %v1509, %v1511
      %v1515 = vsel %vm1250, %v1507, 0
      %v1518 = vsel %vm1254, %v1513, 0
      %v1521 = vsel %vm1254, %v1511, 0
      %1523 = vmatprep.subr.bf16.mxu0 %v1521
      %1524 = vmatpush1.bf16.msra.mxu0 %v1518
      %1525 = vmatprep.subr.bf16.mxu0 0
      %1526 = vmatpush1.bf16.msra.mxu0 0
      %1527 = vmatprep.subr.bf16.mxu0 0
      %1528 = vmatpush1.bf16.msra.mxu0 0
      %1529 = vmatprep.subr.bf16.mxu0 0
      %1530 = vmatpush1.bf16.msra.mxu0 0
      %1531 = vmatprep.subr.bf16.mxu0 0
      %1532 = vmatpush1.bf16.msra.mxu0 0
      %1533 = vmatprep.subr.bf16.mxu0 0
      %1534 = vmatpush1.bf16.msra.mxu0 0
      %1535 = vmatprep.subr.bf16.mxu0 0
      %1536 = vmatpush1.bf16.msra.mxu0 0
      %1537 = vmatprep.subr.bf16.mxu0 0
      %1538 = vmatpush1.bf16.msra.mxu0 0
      %1539 = vmatprep.subr.bf16.mxu0 0
      %1540 = vmatpush1.bf16.msra.mxu0 0
      %1541 = vmatprep.subr.bf16.mxu0 0
      %1542 = vmatpush1.bf16.msra.mxu0 0
      %1543 = vmatprep.subr.bf16.mxu0 0
      %1544 = vmatpush1.bf16.msra.mxu0 0
      %1545 = vmatprep.subr.bf16.mxu0 0
      %1546 = vmatpush1.bf16.msra.mxu0 0
      %1547 = vmatprep.subr.bf16.mxu0 0
      %1548 = vmatpush1.bf16.msra.mxu0 0
      %1549 = vmatprep.subr.bf16.mxu0 0
      %1550 = vmatpush1.bf16.msra.mxu0 0
      %1551 = vmatprep.subr.bf16.mxu0 0
      %1552 = vmatpush1.bf16.msra.mxu0 0
      %1553 = vmatprep.subr.bf16.mxu0 0
      %1554 = vmatpush1.bf16.msra.mxu0 0
      %1555 = vmatprep.mubr.bf16.mxu0 0
      %1556 = vmatmul.mubr.bf16.gmra.mrb[0].mxu0 %v1515
      %v1557 = vpop.f32.mrb[0].mxu0
      %v1558 = vadd.f32 0.0, %v1557
      %v1559 = vpop.f32.mrb[0].mxu0
      %v1560 = vadd.f32 0.0, %v1559
      %v1561 = vpop.f32.mrb[0].mxu0
      %v1562 = vadd.f32 0.0, %v1561
      %v1563 = vpop.f32.mrb[0].mxu0
      %v1564 = vadd.f32 0.0, %v1563
      %1565 = vdwg.mxu0
      %v1566 = vadd.f32 %v1496, %v1558
      %v1567 = vadd.f32 %v1497, %v1560
      %v1568 = vadd.f32 %v1498, %v1562
      %v1569 = vadd.f32 %v1499, %v1564
      %s1570 = scalar_lea.vmem %s3, 40
      %v1571 = vld [vmem:[%s1570] sm:$0xf]
      %v1572 = vld [vmem:[%s1570 + $0x4] sm:$0xf]
      %v1575 = vunpack.c.l.b16 %v1571
      %v1576 = vunpack.c.l.b16 %v1572
      %v1577 = vpack.c.b16 %v1576, %v1575
      %1578 = vrot.lane.b32.xlu0 %v1231, 112
      %v1579 = vpop.permute.xlu0 %1578
      %1580 = vrot.lane.b32.xlu0 %v1232, 112
      %v1581 = vpop.permute.xlu0 %1580
      %v1582 = vsel %vm678, %v1579, %v1581
      %v1584 = vsel %vm1250, %v1577, 0
      %v1587 = vsel %vm1254, %v1582, 0
      %v1590 = vsel %vm1254, %v1581, 0
      %1592 = vmatprep.subr.bf16.mxu0 %v1590
      %1593 = vmatpush1.bf16.msra.mxu0 %v1587
      %1594 = vmatprep.subr.bf16.mxu0 0
      %1595 = vmatpush1.bf16.msra.mxu0 0
      %1596 = vmatprep.subr.bf16.mxu0 0
      %1597 = vmatpush1.bf16.msra.mxu0 0
      %1598 = vmatprep.subr.bf16.mxu0 0
      %1599 = vmatpush1.bf16.msra.mxu0 0
      %1600 = vmatprep.subr.bf16.mxu0 0
      %1601 = vmatpush1.bf16.msra.mxu0 0
      %1602 = vmatprep.subr.bf16.mxu0 0
      %1603 = vmatpush1.bf16.msra.mxu0 0
      %1604 = vmatprep.subr.bf16.mxu0 0
      %1605 = vmatpush1.bf16.msra.mxu0 0
      %1606 = vmatprep.subr.bf16.mxu0 0
      %1607 = vmatpush1.bf16.msra.mxu0 0
      %1608 = vmatprep.subr.bf16.mxu0 0
      %1609 = vmatpush1.bf16.msra.mxu0 0
      %1610 = vmatprep.subr.bf16.mxu0 0
      %1611 = vmatpush1.bf16.msra.mxu0 0
      %1612 = vmatprep.subr.bf16.mxu0 0
      %1613 = vmatpush1.bf16.msra.mxu0 0
      %1614 = vmatprep.subr.bf16.mxu0 0
      %1615 = vmatpush1.bf16.msra.mxu0 0
      %1616 = vmatprep.subr.bf16.mxu0 0
      %1617 = vmatpush1.bf16.msra.mxu0 0
      %1618 = vmatprep.subr.bf16.mxu0 0
      %1619 = vmatpush1.bf16.msra.mxu0 0
      %1620 = vmatprep.subr.bf16.mxu0 0
      %1621 = vmatpush1.bf16.msra.mxu0 0
      %1622 = vmatprep.subr.bf16.mxu0 0
      %1623 = vmatpush1.bf16.msra.mxu0 0
      %1624 = vmatprep.mubr.bf16.mxu0 0
      %1625 = vmatmul.mubr.bf16.gmra.mrb[0].mxu0 %v1584
      %v1626 = vpop.f32.mrb[0].mxu0
      %v1627 = vadd.f32 0.0, %v1626
      %v1628 = vpop.f32.mrb[0].mxu0
      %v1629 = vadd.f32 0.0, %v1628
      %v1630 = vpop.f32.mrb[0].mxu0
      %v1631 = vadd.f32 0.0, %v1630
      %v1632 = vpop.f32.mrb[0].mxu0
      %v1633 = vadd.f32 0.0, %v1632
      %1634 = vdwg.mxu0
      %v1635 = vadd.f32 %v1566, %v1627
      %v1636 = vadd.f32 %v1567, %v1629
      %v1637 = vadd.f32 %v1568, %v1631
      %v1638 = vadd.f32 %v1569, %v1633
      %s1639 = scalar_lea.vmem %s3, 48
      %v1640 = vld [vmem:[%s1639] sm:$0xf]
      %v1641 = vld [vmem:[%s1639 + $0x4] sm:$0xf]
      %v1644 = vunpack.c.l.b16 %v1640
      %v1645 = vunpack.c.l.b16 %v1641
      %v1646 = vpack.c.b16 %v1645, %v1644
      %1647 = vrot.lane.b32.xlu0 %v1231, 111
      %v1648 = vpop.permute.xlu0 %1647
      %1649 = vrot.lane.b32.xlu0 %v1232, 111
      %v1650 = vpop.permute.xlu0 %1649
      %v1651 = vsel %vm771, %v1648, %v1650
      %v1653 = vsel %vm1250, %v1646, 0
      %v1656 = vsel %vm1254, %v1651, 0
      %v1659 = vsel %vm1254, %v1650, 0
      %1661 = vmatprep.subr.bf16.mxu0 %v1659
      %1662 = vmatpush1.bf16.msra.mxu0 %v1656
      %1663 = vmatprep.subr.bf16.mxu0 0
      %1664 = vmatpush1.bf16.msra.mxu0 0
      %1665 = vmatprep.subr.bf16.mxu0 0
      %1666 = vmatpush1.bf16.msra.mxu0 0
      %1667 = vmatprep.subr.bf16.mxu0 0
      %1668 = vmatpush1.bf16.msra.mxu0 0
      %1669 = vmatprep.subr.bf16.mxu0 0
      %1670 = vmatpush1.bf16.msra.mxu0 0
      %1671 = vmatprep.subr.bf16.mxu0 0
      %1672 = vmatpush1.bf16.msra.mxu0 0
      %1673 = vmatprep.subr.bf16.mxu0 0
      %1674 = vmatpush1.bf16.msra.mxu0 0
      %1675 = vmatprep.subr.bf16.mxu0 0
      %1676 = vmatpush1.bf16.msra.mxu0 0
      %1677 = vmatprep.subr.bf16.mxu0 0
      %1678 = vmatpush1.bf16.msra.mxu0 0
      %1679 = vmatprep.subr.bf16.mxu0 0
      %1680 = vmatpush1.bf16.msra.mxu0 0
      %1681 = vmatprep.subr.bf16.mxu0 0
      %1682 = vmatpush1.bf16.msra.mxu0 0
      %1683 = vmatprep.subr.bf16.mxu0 0
      %1684 = vmatpush1.bf16.msra.mxu0 0
      %1685 = vmatprep.subr.bf16.mxu0 0
      %1686 = vmatpush1.bf16.msra.mxu0 0
      %1687 = vmatprep.subr.bf16.mxu0 0
      %1688 = vmatpush1.bf16.msra.mxu0 0
      %1689 = vmatprep.subr.bf16.mxu0 0
      %1690 = vmatpush1.bf16.msra.mxu0 0
      %1691 = vmatprep.subr.bf16.mxu0 0
      %1692 = vmatpush1.bf16.msra.mxu0 0
      %1693 = vmatprep.mubr.bf16.mxu0 0
      %1694 = vmatmul.mubr.bf16.gmra.mrb[0].mxu0 %v1653
      %v1695 = vpop.f32.mrb[0].mxu0
      %v1696 = vadd.f32 0.0, %v1695
      %v1697 = vpop.f32.mrb[0].mxu0
      %v1698 = vadd.f32 0.0, %v1697
      %v1699 = vpop.f32.mrb[0].mxu0
      %v1700 = vadd.f32 0.0, %v1699
      %v1701 = vpop.f32.mrb[0].mxu0
      %v1702 = vadd.f32 0.0, %v1701
      %1703 = vdwg.mxu0
      %v1704 = vadd.f32 %v1635, %v1696
      %v1705 = vadd.f32 %v1636, %v1698
      %v1706 = vadd.f32 %v1637, %v1700
      %v1707 = vadd.f32 %v1638, %v1702
      %s1708 = scalar_lea.vmem %s3, 56
      %v1709 = vld [vmem:[%s1708] sm:$0xf]
      %v1710 = vld [vmem:[%s1708 + $0x4] sm:$0xf]
      %v1713 = vunpack.c.l.b16 %v1709
      %v1714 = vunpack.c.l.b16 %v1710
      %v1715 = vpack.c.b16 %v1714, %v1713
      %1716 = vrot.lane.b32.xlu0 %v1231, 110
      %v1717 = vpop.permute.xlu0 %1716
      %1718 = vrot.lane.b32.xlu0 %v1232, 110
      %v1719 = vpop.permute.xlu0 %1718
      %v1720 = vsel %vm864, %v1717, %v1719
      %v1722 = vsel %vm1250, %v1715, 0
      %v1725 = vsel %vm1254, %v1720, 0
      %v1728 = vsel %vm1254, %v1719, 0
      %1730 = vmatprep.subr.bf16.mxu0 %v1728
      %1731 = vmatpush1.bf16.msra.mxu0 %v1725
      %1732 = vmatprep.subr.bf16.mxu0 0
      %1733 = vmatpush1.bf16.msra.mxu0 0
      %1734 = vmatprep.subr.bf16.mxu0 0
      %1735 = vmatpush1.bf16.msra.mxu0 0
      %1736 = vmatprep.subr.bf16.mxu0 0
      %1737 = vmatpush1.bf16.msra.mxu0 0
      %1738 = vmatprep.subr.bf16.mxu0 0
      %1739 = vmatpush1.bf16.msra.mxu0 0
      %1740 = vmatprep.subr.bf16.mxu0 0
      %1741 = vmatpush1.bf16.msra.mxu0 0
      %1742 = vmatprep.subr.bf16.mxu0 0
      %1743 = vmatpush1.bf16.msra.mxu0 0
      %1744 = vmatprep.subr.bf16.mxu0 0
      %1745 = vmatpush1.bf16.msra.mxu0 0
      %1746 = vmatprep.subr.bf16.mxu0 0
      %1747 = vmatpush1.bf16.msra.mxu0 0
      %1748 = vmatprep.subr.bf16.mxu0 0
      %1749 = vmatpush1.bf16.msra.mxu0 0
      %1750 = vmatprep.subr.bf16.mxu0 0
      %1751 = vmatpush1.bf16.msra.mxu0 0
      %1752 = vmatprep.subr.bf16.mxu0 0
      %1753 = vmatpush1.bf16.msra.mxu0 0
      %1754 = vmatprep.subr.bf16.mxu0 0
      %1755 = vmatpush1.bf16.msra.mxu0 0
      %1756 = vmatprep.subr.bf16.mxu0 0
      %1757 = vmatpush1.bf16.msra.mxu0 0
      %1758 = vmatprep.subr.bf16.mxu0 0
      %1759 = vmatpush1.bf16.msra.mxu0 0
      %1760 = vmatprep.subr.bf16.mxu0 0
      %1761 = vmatpush1.bf16.msra.mxu0 0
      %1762 = vmatprep.mubr.bf16.mxu0 0
      %1763 = vmatmul.mubr.bf16.gmra.mrb[0].mxu0 %v1722
      %v1764 = vpop.f32.mrb[0].mxu0
      %v1765 = vadd.f32 0.0, %v1764
      %v1766 = vpop.f32.mrb[0].mxu0
      %v1767 = vadd.f32 0.0, %v1766
      %v1768 = vpop.f32.mrb[0].mxu0
      %v1769 = vadd.f32 0.0, %v1768
      %v1770 = vpop.f32.mrb[0].mxu0
      %v1771 = vadd.f32 0.0, %v1770
      %1772 = vdwg.mxu0
      %v1773 = vadd.f32 %v1704, %v1765
      %v1774 = vadd.f32 %v1705, %v1767
      %v1775 = vadd.f32 %v1706, %v1769
      %v1776 = vadd.f32 %v1707, %v1771
      %s1777 = scalar_lea.vmem %s3, 64
      %v1778 = vld [vmem:[%s1777] sm:$0xf]
      %v1779 = vld [vmem:[%s1777 + $0x4] sm:$0xf]
      %v1782 = vunpack.c.l.b16 %v1778
      %v1783 = vunpack.c.l.b16 %v1779
      %v1784 = vpack.c.b16 %v1783, %v1782
      %1785 = vrot.lane.b32.xlu0 %v1231, 109
      %v1786 = vpop.permute.xlu0 %1785
      %1787 = vrot.lane.b32.xlu0 %v1232, 109
      %v1788 = vpop.permute.xlu0 %1787
      %vm1789 = vcmask 891904
      %v1790 = vsel %vm1789, %v1786, %v1788
      %v1792 = vsel %vm1250, %v1784, 0
      %v1795 = vsel %vm1254, %v1790, 0
      %v1798 = vsel %vm1254, %v1788, 0
      %1800 = vmatprep.subr.bf16.mxu0 %v1798
      %1801 = vmatpush1.bf16.msra.mxu0 %v1795
      %1802 = vmatprep.subr.bf16.mxu0 0
      %1803 = vmatpush1.bf16.msra.mxu0 0
      %1804 = vmatprep.subr.bf16.mxu0 0
      %1805 = vmatpush1.bf16.msra.mxu0 0
      %1806 = vmatprep.subr.bf16.mxu0 0
      %1807 = vmatpush1.bf16.msra.mxu0 0
      %1808 = vmatprep.subr.bf16.mxu0 0
      %1809 = vmatpush1.bf16.msra.mxu0 0
      %1810 = vmatprep.subr.bf16.mxu0 0
      %1811 = vmatpush1.bf16.msra.mxu0 0
      %1812 = vmatprep.subr.bf16.mxu0 0
      %1813 = vmatpush1.bf16.msra.mxu0 0
      %1814 = vmatprep.subr.bf16.mxu0 0
      %1815 = vmatpush1.bf16.msra.mxu0 0
      %1816 = vmatprep.subr.bf16.mxu0 0
      %1817 = vmatpush1.bf16.msra.mxu0 0
      %1818 = vmatprep.subr.bf16.mxu0 0
      %1819 = vmatpush1.bf16.msra.mxu0 0
      %1820 = vmatprep.subr.bf16.mxu0 0
      %1821 = vmatpush1.bf16.msra.mxu0 0
      %1822 = vmatprep.subr.bf16.mxu0 0
      %1823 = vmatpush1.bf16.msra.mxu0 0
      %1824 = vmatprep.subr.bf16.mxu0 0
      %1825 = vmatpush1.bf16.msra.mxu0 0
      %1826 = vmatprep.subr.bf16.mxu0 0
      %1827 = vmatpush1.bf16.msra.mxu0 0
      %1828 = vmatprep.subr.bf16.mxu0 0
      %1829 = vmatpush1.bf16.msra.mxu0 0
      %1830 = vmatprep.subr.bf16.mxu0 0
      %1831 = vmatpush1.bf16.msra.mxu0 0
      %1832 = vmatprep.mubr.bf16.mxu0 0
      %1833 = vmatmul.mubr.bf16.gmra.mrb[0].mxu0 %v1792
      %v1834 = vpop.f32.mrb[0].mxu0
      %v1835 = vadd.f32 0.0, %v1834
      %v1836 = vpop.f32.mrb[0].mxu0
      %v1837 = vadd.f32 0.0, %v1836
      %v1838 = vpop.f32.mrb[0].mxu0
      %v1839 = vadd.f32 0.0, %v1838
      %v1840 = vpop.f32.mrb[0].mxu0
      %v1841 = vadd.f32 0.0, %v1840
      %1842 = vdwg.mxu0
      %v1843 = vadd.f32 %v1773, %v1835
      %v1844 = vadd.f32 %v1774, %v1837
      %v1845 = vadd.f32 %v1775, %v1839
      %v1846 = vadd.f32 %v1776, %v1841
      %s1847 = scalar_lea.vmem %s3, 72
      %v1848 = vld [vmem:[%s1847] sm:$0xf]
      %v1849 = vld [vmem:[%s1847 + $0x4] sm:$0xf]
      %v1852 = vunpack.c.l.b16 %v1848
      %v1853 = vunpack.c.l.b16 %v1849
      %v1854 = vpack.c.b16 %v1853, %v1852
      %1855 = vrot.lane.b32.xlu0 %v1231, 108
      %v1856 = vpop.permute.xlu0 %1855
      %1857 = vrot.lane.b32.xlu0 %v1232, 108
      %v1858 = vpop.permute.xlu0 %1857
      %vm1859 = vcmask 883712
      %v1860 = vsel %vm1859, %v1856, %v1858
      %v1862 = vsel %vm1250, %v1854, 0
      %v1865 = vsel %vm1254, %v1860, 0
      %v1868 = vsel %vm1254, %v1858, 0
      %1870 = vmatprep.subr.bf16.mxu0 %v1868
      %1871 = vmatpush1.bf16.msra.mxu0 %v1865
      %1872 = vmatprep.subr.bf16.mxu0 0
      %1873 = vmatpush1.bf16.msra.mxu0 0
      %1874 = vmatprep.subr.bf16.mxu0 0
      %1875 = vmatpush1.bf16.msra.mxu0 0
      %1876 = vmatprep.subr.bf16.mxu0 0
      %1877 = vmatpush1.bf16.msra.mxu0 0
      %1878 = vmatprep.subr.bf16.mxu0 0
      %1879 = vmatpush1.bf16.msra.mxu0 0
      %1880 = vmatprep.subr.bf16.mxu0 0
      %1881 = vmatpush1.bf16.msra.mxu0 0
      %1882 = vmatprep.subr.bf16.mxu0 0
      %1883 = vmatpush1.bf16.msra.mxu0 0
      %1884 = vmatprep.subr.bf16.mxu0 0
      %1885 = vmatpush1.bf16.msra.mxu0 0
      %1886 = vmatprep.subr.bf16.mxu0 0
      %1887 = vmatpush1.bf16.msra.mxu0 0
      %1888 = vmatprep.subr.bf16.mxu0 0
      %1889 = vmatpush1.bf16.msra.mxu0 0
      %1890 = vmatprep.subr.bf16.mxu0 0
      %1891 = vmatpush1.bf16.msra.mxu0 0
      %1892 = vmatprep.subr.bf16.mxu0 0
      %1893 = vmatpush1.bf16.msra.mxu0 0
      %1894 = vmatprep.subr.bf16.mxu0 0
      %1895 = vmatpush1.bf16.msra.mxu0 0
      %1896 = vmatprep.subr.bf16.mxu0 0
      %1897 = vmatpush1.bf16.msra.mxu0 0
      %1898 = vmatprep.subr.bf16.mxu0 0
      %1899 = vmatpush1.bf16.msra.mxu0 0
      %1900 = vmatprep.subr.bf16.mxu0 0
      %1901 = vmatpush1.bf16.msra.mxu0 0
      %1902 = vmatprep.mubr.bf16.mxu0 0
      %1903 = vmatmul.mubr.bf16.gmra.mrb[0].mxu0 %v1862
      %v1904 = vpop.f32.mrb[0].mxu0
      %v1905 = vadd.f32 0.0, %v1904
      %v1906 = vpop.f32.mrb[0].mxu0
      %v1907 = vadd.f32 0.0, %v1906
      %v1908 = vpop.f32.mrb[0].mxu0
      %v1909 = vadd.f32 0.0, %v1908
      %v1910 = vpop.f32.mrb[0].mxu0
      %v1911 = vadd.f32 0.0, %v1910
      %1912 = vdwg.mxu0
      %v1913 = vadd.f32 %v1843, %v1905
      %v1914 = vadd.f32 %v1844, %v1907
      %v1915 = vadd.f32 %v1845, %v1909
      %v1916 = vadd.f32 %v1846, %v1911
      %s1917 = scalar_lea.vmem %s3, 80
      %v1918 = vld [vmem:[%s1917] sm:$0xf]
      %v1919 = vld [vmem:[%s1917 + $0x4] sm:$0xf]
      %v1922 = vunpack.c.l.b16 %v1918
      %v1923 = vunpack.c.l.b16 %v1919
      %v1924 = vpack.c.b16 %v1923, %v1922
      %1925 = vrot.lane.b32.xlu0 %v1231, 96
      %v1926 = vpop.permute.xlu0 %1925
      %1927 = vrot.lane.b32.xlu0 %v1232, 96
      %v1928 = vpop.permute.xlu0 %1927
      %v1929 = vsel %vm957, %v1926, %v1928
      %v1931 = vsel %vm1250, %v1924, 0
      %v1934 = vsel %vm1254, %v1929, 0
      %v1937 = vsel %vm1254, %v1928, 0
      %1939 = vmatprep.subr.bf16.mxu0 %v1937
      %1940 = vmatpush1.bf16.msra.mxu0 %v1934
      %1941 = vmatprep.subr.bf16.mxu0 0
      %1942 = vmatpush1.bf16.msra.mxu0 0
      %1943 = vmatprep.subr.bf16.mxu0 0
      %1944 = vmatpush1.bf16.msra.mxu0 0
      %1945 = vmatprep.subr.bf16.mxu0 0
      %1946 = vmatpush1.bf16.msra.mxu0 0
      %1947 = vmatprep.subr.bf16.mxu0 0
      %1948 = vmatpush1.bf16.msra.mxu0 0
      %1949 = vmatprep.subr.bf16.mxu0 0
      %1950 = vmatpush1.bf16.msra.mxu0 0
      %1951 = vmatprep.subr.bf16.mxu0 0
      %1952 = vmatpush1.bf16.msra.mxu0 0
      %1953 = vmatprep.subr.bf16.mxu0 0
      %1954 = vmatpush1.bf16.msra.mxu0 0
      %1955 = vmatprep.subr.bf16.mxu0 0
      %1956 = vmatpush1.bf16.msra.mxu0 0
      %1957 = vmatprep.subr.bf16.mxu0 0
      %1958 = vmatpush1.bf16.msra.mxu0 0
      %1959 = vmatprep.subr.bf16.mxu0 0
      %1960 = vmatpush1.bf16.msra.mxu0 0
      %1961 = vmatprep.subr.bf16.mxu0 0
      %1962 = vmatpush1.bf16.msra.mxu0 0
      %1963 = vmatprep.subr.bf16.mxu0 0
      %1964 = vmatpush1.bf16.msra.mxu0 0
      %1965 = vmatprep.subr.bf16.mxu0 0
      %1966 = vmatpush1.bf16.msra.mxu0 0
      %1967 = vmatprep.subr.bf16.mxu0 0
      %1968 = vmatpush1.bf16.msra.mxu0 0
      %1969 = vmatprep.subr.bf16.mxu0 0
      %1970 = vmatpush1.bf16.msra.mxu0 0
      %1971 = vmatprep.mubr.bf16.mxu0 0
      %1972 = vmatmul.mubr.bf16.gmra.mrb[0].mxu0 %v1931
      %v1973 = vpop.f32.mrb[0].mxu0
      %v1974 = vadd.f32 0.0, %v1973
      %v1975 = vpop.f32.mrb[0].mxu0
      %v1976 = vadd.f32 0.0, %v1975
      %v1977 = vpop.f32.mrb[0].mxu0
      %v1978 = vadd.f32 0.0, %v1977
      %v1979 = vpop.f32.mrb[0].mxu0
      %v1980 = vadd.f32 0.0, %v1979
      %1981 = vdwg.mxu0
      %v1982 = vadd.f32 %v1913, %v1974
      %v1983 = vadd.f32 %v1914, %v1976
      %v1984 = vadd.f32 %v1915, %v1978
      %v1985 = vadd.f32 %v1916, %v1980
      %s1986 = scalar_lea.vmem %s3, 88
      %v1987 = vld [vmem:[%s1986] sm:$0xf]
      %v1988 = vld [vmem:[%s1986 + $0x4] sm:$0xf]
      %v1991 = vunpack.c.l.b16 %v1987
      %v1992 = vunpack.c.l.b16 %v1988
      %v1993 = vpack.c.b16 %v1992, %v1991
      %1994 = vrot.lane.b32.xlu0 %v1231, 95
      %v1995 = vpop.permute.xlu0 %1994
      %1996 = vrot.lane.b32.xlu0 %v1232, 95
      %v1997 = vpop.permute.xlu0 %1996
      %v1998 = vsel %vm1050, %v1995, %v1997
      %v2000 = vsel %vm1250, %v1993, 0
      %v2003 = vsel %vm1254, %v1998, 0
      %v2006 = vsel %vm1254, %v1997, 0
      %2008 = vmatprep.subr.bf16.mxu0 %v2006
      %2009 = vmatpush1.bf16.msra.mxu0 %v2003
      %2010 = vmatprep.subr.bf16.mxu0 0
      %2011 = vmatpush1.bf16.msra.mxu0 0
      %2012 = vmatprep.subr.bf16.mxu0 0
      %2013 = vmatpush1.bf16.msra.mxu0 0
      %2014 = vmatprep.subr.bf16.mxu0 0
      %2015 = vmatpush1.bf16.msra.mxu0 0
      %2016 = vmatprep.subr.bf16.mxu0 0
      %2017 = vmatpush1.bf16.msra.mxu0 0
      %2018 = vmatprep.subr.bf16.mxu0 0
      %2019 = vmatpush1.bf16.msra.mxu0 0
      %2020 = vmatprep.subr.bf16.mxu0 0
      %2021 = vmatpush1.bf16.msra.mxu0 0
      %2022 = vmatprep.subr.bf16.mxu0 0
      %2023 = vmatpush1.bf16.msra.mxu0 0
      %2024 = vmatprep.subr.bf16.mxu0 0
      %2025 = vmatpush1.bf16.msra.mxu0 0
      %2026 = vmatprep.subr.bf16.mxu0 0
      %2027 = vmatpush1.bf16.msra.mxu0 0
      %2028 = vmatprep.subr.bf16.mxu0 0
      %2029 = vmatpush1.bf16.msra.mxu0 0
      %2030 = vmatprep.subr.bf16.mxu0 0
      %2031 = vmatpush1.bf16.msra.mxu0 0
      %2032 = vmatprep.subr.bf16.mxu0 0
      %2033 = vmatpush1.bf16.msra.mxu0 0
      %2034 = vmatprep.subr.bf16.mxu0 0
      %2035 = vmatpush1.bf16.msra.mxu0 0
      %2036 = vmatprep.subr.bf16.mxu0 0
      %2037 = vmatpush1.bf16.msra.mxu0 0
      %2038 = vmatprep.subr.bf16.mxu0 0
      %2039 = vmatpush1.bf16.msra.mxu0 0
      %2040 = vmatprep.mubr.bf16.mxu0 0
      %2041 = vmatmul.mubr.bf16.gmra.mrb[0].mxu0 %v2000
      %v2042 = vpop.f32.mrb[0].mxu0
      %v2043 = vadd.f32 0.0, %v2042
      %v2044 = vpop.f32.mrb[0].mxu0
      %v2045 = vadd.f32 0.0, %v2044
      %v2046 = vpop.f32.mrb[0].mxu0
      %v2047 = vadd.f32 0.0, %v2046
      %v2048 = vpop.f32.mrb[0].mxu0
      %v2049 = vadd.f32 0.0, %v2048
      %2050 = vdwg.mxu0
      %v2051 = vadd.f32 %v1982, %v2043
      %v2052 = vadd.f32 %v1983, %v2045
      %v2053 = vadd.f32 %v1984, %v2047
      %v2054 = vadd.f32 %v1985, %v2049
      %s2055 = scalar_lea.vmem %s3, 96
      %v2056 = vld [vmem:[%s2055] sm:$0xf]
      %v2057 = vld [vmem:[%s2055 + $0x4] sm:$0xf]
      %v2060 = vunpack.c.l.b16 %v2056
      %v2061 = vunpack.c.l.b16 %v2057
      %v2062 = vpack.c.b16 %v2061, %v2060
      %2063 = vrot.lane.b32.xlu0 %v1231, 94
      %v2064 = vpop.permute.xlu0 %2063
      %2065 = vrot.lane.b32.xlu0 %v1232, 94
      %v2066 = vpop.permute.xlu0 %2065
      %v2067 = vsel %vm1143, %v2064, %v2066
      %v2069 = vsel %vm1250, %v2062, 0
      %v2072 = vsel %vm1254, %v2067, 0
      %v2075 = vsel %vm1254, %v2066, 0
      %2077 = vmatprep.subr.bf16.mxu0 %v2075
      %2078 = vmatpush1.bf16.msra.mxu0 %v2072
      %2079 = vmatprep.subr.bf16.mxu0 0
      %2080 = vmatpush1.bf16.msra.mxu0 0
      %2081 = vmatprep.subr.bf16.mxu0 0
      %2082 = vmatpush1.bf16.msra.mxu0 0
      %2083 = vmatprep.subr.bf16.mxu0 0
      %2084 = vmatpush1.bf16.msra.mxu0 0
      %2085 = vmatprep.subr.bf16.mxu0 0
      %2086 = vmatpush1.bf16.msra.mxu0 0
      %2087 = vmatprep.subr.bf16.mxu0 0
      %2088 = vmatpush1.bf16.msra.mxu0 0
      %2089 = vmatprep.subr.bf16.mxu0 0
      %2090 = vmatpush1.bf16.msra.mxu0 0
      %2091 = vmatprep.subr.bf16.mxu0 0
      %2092 = vmatpush1.bf16.msra.mxu0 0
      %2093 = vmatprep.subr.bf16.mxu0 0
      %2094 = vmatpush1.bf16.msra.mxu0 0
      %2095 = vmatprep.subr.bf16.mxu0 0
      %2096 = vmatpush1.bf16.msra.mxu0 0
      %2097 = vmatprep.subr.bf16.mxu0 0
      %2098 = vmatpush1.bf16.msra.mxu0 0
      %2099 = vmatprep.subr.bf16.mxu0 0
      %2100 = vmatpush1.bf16.msra.mxu0 0
      %2101 = vmatprep.subr.bf16.mxu0 0
      %2102 = vmatpush1.bf16.msra.mxu0 0
      %2103 = vmatprep.subr.bf16.mxu0 0
      %2104 = vmatpush1.bf16.msra.mxu0 0
      %2105 = vmatprep.subr.bf16.mxu0 0
      %2106 = vmatpush1.bf16.msra.mxu0 0
      %2107 = vmatprep.subr.bf16.mxu0 0
      %2108 = vmatpush1.bf16.msra.mxu0 0
      %2109 = vmatprep.mubr.bf16.mxu0 0
      %2110 = vmatmul.mubr.bf16.gmra.mrb[0].mxu0 %v2069
      %v2111 = vpop.f32.mrb[0].mxu0
      %v2112 = vadd.f32 0.0, %v2111
      %v2113 = vpop.f32.mrb[0].mxu0
      %v2114 = vadd.f32 0.0, %v2113
      %v2115 = vpop.f32.mrb[0].mxu0
      %v2116 = vadd.f32 0.0, %v2115
      %v2117 = vpop.f32.mrb[0].mxu0
      %v2118 = vadd.f32 0.0, %v2117
      %2119 = vdwg.mxu0
      %v2120 = vadd.f32 %v2051, %v2112
      %v2121 = vadd.f32 %v2052, %v2114
      %v2122 = vadd.f32 %v2053, %v2116
      %v2123 = vadd.f32 %v2054, %v2118
      %s2124 = scalar_lea.vmem %s3, 104
      %v2125 = vld [vmem:[%s2124] sm:$0xf]
      %v2126 = vld [vmem:[%s2124 + $0x4] sm:$0xf]
      %v2129 = vunpack.c.l.b16 %v2125
      %v2130 = vunpack.c.l.b16 %v2126
      %v2131 = vpack.c.b16 %v2130, %v2129
      %2132 = vrot.lane.b32.xlu0 %v1231, 93
      %v2133 = vpop.permute.xlu0 %2132
      %2134 = vrot.lane.b32.xlu0 %v1232, 93
      %v2135 = vpop.permute.xlu0 %2134
      %vm2136 = vcmask 760832
      %v2137 = vsel %vm2136, %v2133, %v2135
      %v2139 = vsel %vm1250, %v2131, 0
      %v2142 = vsel %vm1254, %v2137, 0
      %v2145 = vsel %vm1254, %v2135, 0
      %2147 = vmatprep.subr.bf16.mxu0 %v2145
      %2148 = vmatpush1.bf16.msra.mxu0 %v2142
      %2149 = vmatprep.subr.bf16.mxu0 0
      %2150 = vmatpush1.bf16.msra.mxu0 0
      %2151 = vmatprep.subr.bf16.mxu0 0
      %2152 = vmatpush1.bf16.msra.mxu0 0
      %2153 = vmatprep.subr.bf16.mxu0 0
      %2154 = vmatpush1.bf16.msra.mxu0 0
      %2155 = vmatprep.subr.bf16.mxu0 0
      %2156 = vmatpush1.bf16.msra.mxu0 0
      %2157 = vmatprep.subr.bf16.mxu0 0
      %2158 = vmatpush1.bf16.msra.mxu0 0
      %2159 = vmatprep.subr.bf16.mxu0 0
      %2160 = vmatpush1.bf16.msra.mxu0 0
      %2161 = vmatprep.subr.bf16.mxu0 0
      %2162 = vmatpush1.bf16.msra.mxu0 0
      %2163 = vmatprep.subr.bf16.mxu0 0
      %2164 = vmatpush1.bf16.msra.mxu0 0
      %2165 = vmatprep.subr.bf16.mxu0 0
      %2166 = vmatpush1.bf16.msra.mxu0 0
      %2167 = vmatprep.subr.bf16.mxu0 0
      %2168 = vmatpush1.bf16.msra.mxu0 0
      %2169 = vmatprep.subr.bf16.mxu0 0
      %2170 = vmatpush1.bf16.msra.mxu0 0
      %2171 = vmatprep.subr.bf16.mxu0 0
      %2172 = vmatpush1.bf16.msra.mxu0 0
      %2173 = vmatprep.subr.bf16.mxu0 0
      %2174 = vmatpush1.bf16.msra.mxu0 0
      %2175 = vmatprep.subr.bf16.mxu0 0
      %2176 = vmatpush1.bf16.msra.mxu0 0
      %2177 = vmatprep.subr.bf16.mxu0 0
      %2178 = vmatpush1.bf16.msra.mxu0 0
      %2179 = vmatprep.mubr.bf16.mxu0 0
      %2180 = vmatmul.mubr.bf16.gmra.mrb[0].mxu0 %v2139
      %v2181 = vpop.f32.mrb[0].mxu0
      %v2182 = vadd.f32 0.0, %v2181
      %v2183 = vpop.f32.mrb[0].mxu0
      %v2184 = vadd.f32 0.0, %v2183
      %v2185 = vpop.f32.mrb[0].mxu0
      %v2186 = vadd.f32 0.0, %v2185
      %v2187 = vpop.f32.mrb[0].mxu0
      %v2188 = vadd.f32 0.0, %v2187
      %2189 = vdwg.mxu0
      %v2190 = vadd.f32 %v2120, %v2182
      %v2191 = vadd.f32 %v2121, %v2184
      %v2192 = vadd.f32 %v2122, %v2186
      %v2193 = vadd.f32 %v2123, %v2188
      %s2194 = scalar_lea.vmem %s3, 112
      %v2195 = vld [vmem:[%s2194] sm:$0xf]
      %v2196 = vld [vmem:[%s2194 + $0x4] sm:$0xf]
      %v2199 = vunpack.c.l.b16 %v2195
      %v2200 = vunpack.c.l.b16 %v2196
      %v2201 = vpack.c.b16 %v2200, %v2199
      %2202 = vrot.lane.b32.xlu0 %v1231, 92
      %v2203 = vpop.permute.xlu0 %2202
      %2204 = vrot.lane.b32.xlu0 %v1232, 92
      %v2205 = vpop.permute.xlu0 %2204
      %vm2206 = vcmask 752640
      %v2207 = vsel %vm2206, %v2203, %v2205
      %v2209 = vsel %vm1250, %v2201, 0
      %v2212 = vsel %vm1254, %v2207, 0
      %v2215 = vsel %vm1254, %v2205, 0
      %2217 = vmatprep.subr.bf16.mxu0 %v2215
      %2218 = vmatpush1.bf16.msra.mxu0 %v2212
      %2219 = vmatprep.subr.bf16.mxu0 0
      %2220 = vmatpush1.bf16.msra.mxu0 0
      %2221 = vmatprep.subr.bf16.mxu0 0
      %2222 = vmatpush1.bf16.msra.mxu0 0
      %2223 = vmatprep.subr.bf16.mxu0 0
      %2224 = vmatpush1.bf16.msra.mxu0 0
      %2225 = vmatprep.subr.bf16.mxu0 0
      %2226 = vmatpush1.bf16.msra.mxu0 0
      %2227 = vmatprep.subr.bf16.mxu0 0
      %2228 = vmatpush1.bf16.msra.mxu0 0
      %2229 = vmatprep.subr.bf16.mxu0 0
      %2230 = vmatpush1.bf16.msra.mxu0 0
      %2231 = vmatprep.subr.bf16.mxu0 0
      %2232 = vmatpush1.bf16.msra.mxu0 0
      %2233 = vmatprep.subr.bf16.mxu0 0
      %2234 = vmatpush1.bf16.msra.mxu0 0
      %2235 = vmatprep.subr.bf16.mxu0 0
      %2236 = vmatpush1.bf16.msra.mxu0 0
      %2237 = vmatprep.subr.bf16.mxu0 0
      %2238 = vmatpush1.bf16.msra.mxu0 0
      %2239 = vmatprep.subr.bf16.mxu0 0
      %2240 = vmatpush1.bf16.msra.mxu0 0
      %2241 = vmatprep.subr.bf16.mxu0 0
      %2242 = vmatpush1.bf16.msra.mxu0 0
      %2243 = vmatprep.subr.bf16.mxu0 0
      %2244 = vmatpush1.bf16.msra.mxu0 0
      %2245 = vmatprep.subr.bf16.mxu0 0
      %2246 = vmatpush1.bf16.msra.mxu0 0
      %2247 = vmatprep.subr.bf16.mxu0 0
      %2248 = vmatpush1.bf16.msra.mxu0 0
      %2249 = vmatprep.mubr.bf16.mxu0 0
      %2250 = vmatmul.mubr.bf16.gmra.mrb[0].mxu0 %v2209
      %v2251 = vpop.f32.mrb[0].mxu0
      %v2252 = vadd.f32 0.0, %v2251
      %v2253 = vpop.f32.mrb[0].mxu0
      %v2254 = vadd.f32 0.0, %v2253
      %v2255 = vpop.f32.mrb[0].mxu0
      %v2256 = vadd.f32 0.0, %v2255
      %v2257 = vpop.f32.mrb[0].mxu0
      %v2258 = vadd.f32 0.0, %v2257
      %2259 = vdwg.mxu0
      %v2260 = vadd.f32 %v2190, %v2252
      %v2261 = vadd.f32 %v2191, %v2254
      %v2262 = vadd.f32 %v2192, %v2256
      %v2263 = vadd.f32 %v2193, %v2258
      %s2264 = scalar_lea.vmem %s3, 120
      %v2265 = vld [vmem:[%s2264] sm:$0xf]
      %v2266 = vld [vmem:[%s2264 + $0x4] sm:$0xf]
      %v2269 = vunpack.c.l.b16 %v2265
      %v2270 = vunpack.c.l.b16 %v2266
      %v2271 = vpack.c.b16 %v2270, %v2269
      %2272 = vrot.lane.b32.xlu0 %v1231, 80
      %v2273 = vpop.permute.xlu0 %2272
      %2274 = vrot.lane.b32.xlu0 %v1232, 80
      %v2275 = vpop.permute.xlu0 %2274
      %vm2276 = vcmask 654336
      %v2277 = vsel %vm2276, %v2273, %v2275
      %v2279 = vsel %vm1250, %v2271, 0
      %v2282 = vsel %vm1254, %v2277, 0
      %v2285 = vsel %vm1254, %v2275, 0
      %2287 = vmatprep.subr.bf16.mxu0 %v2285
      %2288 = vmatpush1.bf16.msra.mxu0 %v2282
      %2289 = vmatprep.subr.bf16.mxu0 0
      %2290 = vmatpush1.bf16.msra.mxu0 0
      %2291 = vmatprep.subr.bf16.mxu0 0
      %2292 = vmatpush1.bf16.msra.mxu0 0
      %2293 = vmatprep.subr.bf16.mxu0 0
      %2294 = vmatpush1.bf16.msra.mxu0 0
      %2295 = vmatprep.subr.bf16.mxu0 0
      %2296 = vmatpush1.bf16.msra.mxu0 0
      %2297 = vmatprep.subr.bf16.mxu0 0
      %2298 = vmatpush1.bf16.msra.mxu0 0
      %2299 = vmatprep.subr.bf16.mxu0 0
      %2300 = vmatpush1.bf16.msra.mxu0 0
      %2301 = vmatprep.subr.bf16.mxu0 0
      %2302 = vmatpush1.bf16.msra.mxu0 0
      %2303 = vmatprep.subr.bf16.mxu0 0
      %2304 = vmatpush1.bf16.msra.mxu0 0
      %2305 = vmatprep.subr.bf16.mxu0 0
      %2306 = vmatpush1.bf16.msra.mxu0 0
      %2307 = vmatprep.subr.bf16.mxu0 0
      %2308 = vmatpush1.bf16.msra.mxu0 0
      %2309 = vmatprep.subr.bf16.mxu0 0
      %2310 = vmatpush1.bf16.msra.mxu0 0
      %2311 = vmatprep.subr.bf16.mxu0 0
      %2312 = vmatpush1.bf16.msra.mxu0 0
      %2313 = vmatprep.subr.bf16.mxu0 0
      %2314 = vmatpush1.bf16.msra.mxu0 0
      %2315 = vmatprep.subr.bf16.mxu0 0
      %2316 = vmatpush1.bf16.msra.mxu0 0
      %2317 = vmatprep.subr.bf16.mxu0 0
      %2318 = vmatpush1.bf16.msra.mxu0 0
      %2319 = vmatprep.mubr.bf16.mxu0 0
      %2320 = vmatmul.mubr.bf16.gmra.mrb[0].mxu0 %v2279
      %v2321 = vpop.f32.mrb[0].mxu0
      %v2322 = vadd.f32 0.0, %v2321
      %v2323 = vpop.f32.mrb[0].mxu0
      %v2324 = vadd.f32 0.0, %v2323
      %v2325 = vpop.f32.mrb[0].mxu0
      %v2326 = vadd.f32 0.0, %v2325
      %v2327 = vpop.f32.mrb[0].mxu0
      %v2328 = vadd.f32 0.0, %v2327
      %2329 = vdwg.mxu0
      %v2330 = vadd.f32 %v2260, %v2322
      %v2331 = vadd.f32 %v2261, %v2324
      %v2332 = vadd.f32 %v2262, %v2326
      %v2333 = vadd.f32 %v2263, %v2328
      %s2334 = scalar_lea.vmem %s3, 128
      %v2335 = vld [vmem:[%s2334] sm:$0xf]
      %v2336 = vld [vmem:[%s2334 + $0x4] sm:$0xf]
      %v2339 = vunpack.c.l.b16 %v2335
      %v2340 = vunpack.c.l.b16 %v2336
      %v2341 = vpack.c.b16 %v2340, %v2339
      %2342 = vrot.lane.b32.xlu0 %v1231, 79
      %v2343 = vpop.permute.xlu0 %2342
      %2344 = vrot.lane.b32.xlu0 %v1232, 79
      %v2345 = vpop.permute.xlu0 %2344
      %vm2346 = vcmask 646144
      %v2347 = vsel %vm2346, %v2343, %v2345
      %v2349 = vsel %vm1250, %v2341, 0
      %v2352 = vsel %vm1254, %v2347, 0
      %v2355 = vsel %vm1254, %v2345, 0
      %2357 = vmatprep.subr.bf16.mxu0 %v2355
      %2358 = vmatpush1.bf16.msra.mxu0 %v2352
      %2359 = vmatprep.subr.bf16.mxu0 0
      %2360 = vmatpush1.bf16.msra.mxu0 0
      %2361 = vmatprep.subr.bf16.mxu0 0
      %2362 = vmatpush1.bf16.msra.mxu0 0
      %2363 = vmatprep.subr.bf16.mxu0 0
      %2364 = vmatpush1.bf16.msra.mxu0 0
      %2365 = vmatprep.subr.bf16.mxu0 0
      %2366 = vmatpush1.bf16.msra.mxu0 0
      %2367 = vmatprep.subr.bf16.mxu0 0
      %2368 = vmatpush1.bf16.msra.mxu0 0
      %2369 = vmatprep.subr.bf16.mxu0 0
      %2370 = vmatpush1.bf16.msra.mxu0 0
      %2371 = vmatprep.subr.bf16.mxu0 0
      %2372 = vmatpush1.bf16.msra.mxu0 0
      %2373 = vmatprep.subr.bf16.mxu0 0
      %2374 = vmatpush1.bf16.msra.mxu0 0
      %2375 = vmatprep.subr.bf16.mxu0 0
      %2376 = vmatpush1.bf16.msra.mxu0 0
      %2377 = vmatprep.subr.bf16.mxu0 0
      %2378 = vmatpush1.bf16.msra.mxu0 0
      %2379 = vmatprep.subr.bf16.mxu0 0
      %2380 = vmatpush1.bf16.msra.mxu0 0
      %2381 = vmatprep.subr.bf16.mxu0 0
      %2382 = vmatpush1.bf16.msra.mxu0 0
      %2383 = vmatprep.subr.bf16.mxu0 0
      %2384 = vmatpush1.bf16.msra.mxu0 0
      %2385 = vmatprep.subr.bf16.mxu0 0
      %2386 = vmatpush1.bf16.msra.mxu0 0
      %2387 = vmatprep.subr.bf16.mxu0 0
      %2388 = vmatpush1.bf16.msra.mxu0 0
      %2389 = vmatprep.mubr.bf16.mxu0 0
      %2390 = vmatmul.mubr.bf16.gmra.mrb[0].mxu0 %v2349
      %v2391 = vpop.f32.mrb[0].mxu0
      %v2392 = vadd.f32 0.0, %v2391
      %v2393 = vpop.f32.mrb[0].mxu0
      %v2394 = vadd.f32 0.0, %v2393
      %v2395 = vpop.f32.mrb[0].mxu0
      %v2396 = vadd.f32 0.0, %v2395
      %v2397 = vpop.f32.mrb[0].mxu0
      %v2398 = vadd.f32 0.0, %v2397
      %2399 = vdwg.mxu0
      %v2400 = vadd.f32 %v2330, %v2392
      %v2401 = vadd.f32 %v2331, %v2394
      %v2402 = vadd.f32 %v2332, %v2396
      %v2403 = vadd.f32 %v2333, %v2398
      %s2404 = scalar_lea.vmem %s3, 136
      %v2405 = vld [vmem:[%s2404] sm:$0xf]
      %v2406 = vld [vmem:[%s2404 + $0x4] sm:$0xf]
      %v2409 = vunpack.c.l.b16 %v2405
      %v2410 = vunpack.c.l.b16 %v2406
      %v2411 = vpack.c.b16 %v2410, %v2409
      %2412 = vrot.lane.b32.xlu0 %v1231, 78
      %v2413 = vpop.permute.xlu0 %2412
      %2414 = vrot.lane.b32.xlu0 %v1232, 78
      %v2415 = vpop.permute.xlu0 %2414
      %vm2416 = vcmask 637952
      %v2417 = vsel %vm2416, %v2413, %v2415
      %v2419 = vsel %vm1250, %v2411, 0
      %v2422 = vsel %vm1254, %v2417, 0
      %v2425 = vsel %vm1254, %v2415, 0
      %2427 = vmatprep.subr.bf16.mxu0 %v2425
      %2428 = vmatpush1.bf16.msra.mxu0 %v2422
      %2429 = vmatprep.subr.bf16.mxu0 0
      %2430 = vmatpush1.bf16.msra.mxu0 0
      %2431 = vmatprep.subr.bf16.mxu0 0
      %2432 = vmatpush1.bf16.msra.mxu0 0
      %2433 = vmatprep.subr.bf16.mxu0 0
      %2434 = vmatpush1.bf16.msra.mxu0 0
      %2435 = vmatprep.subr.bf16.mxu0 0
      %2436 = vmatpush1.bf16.msra.mxu0 0
      %2437 = vmatprep.subr.bf16.mxu0 0
      %2438 = vmatpush1.bf16.msra.mxu0 0
      %2439 = vmatprep.subr.bf16.mxu0 0
      %2440 = vmatpush1.bf16.msra.mxu0 0
      %2441 = vmatprep.subr.bf16.mxu0 0
      %2442 = vmatpush1.bf16.msra.mxu0 0
      %2443 = vmatprep.subr.bf16.mxu0 0
      %2444 = vmatpush1.bf16.msra.mxu0 0
      %2445 = vmatprep.subr.bf16.mxu0 0
      %2446 = vmatpush1.bf16.msra.mxu0 0
      %2447 = vmatprep.subr.bf16.mxu0 0
      %2448 = vmatpush1.bf16.msra.mxu0 0
      %2449 = vmatprep.subr.bf16.mxu0 0
      %2450 = vmatpush1.bf16.msra.mxu0 0
      %2451 = vmatprep.subr.bf16.mxu0 0
      %2452 = vmatpush1.bf16.msra.mxu0 0
      %2453 = vmatprep.subr.bf16.mxu0 0
      %2454 = vmatpush1.bf16.msra.mxu0 0
      %2455 = vmatprep.subr.bf16.mxu0 0
      %2456 = vmatpush1.bf16.msra.mxu0 0
      %2457 = vmatprep.subr.bf16.mxu0 0
      %2458 = vmatpush1.bf16.msra.mxu0 0
      %2459 = vmatprep.mubr.bf16.mxu0 0
      %2460 = vmatmul.mubr.bf16.gmra.mrb[0].mxu0 %v2419
      %v2461 = vpop.f32.mrb[0].mxu0
      %v2462 = vadd.f32 0.0, %v2461
      %v2463 = vpop.f32.mrb[0].mxu0
      %v2464 = vadd.f32 0.0, %v2463
      %v2465 = vpop.f32.mrb[0].mxu0
      %v2466 = vadd.f32 0.0, %v2465
      %v2467 = vpop.f32.mrb[0].mxu0
      %v2468 = vadd.f32 0.0, %v2467
      %2469 = vdwg.mxu0
      %v2470 = vadd.f32 %v2400, %v2462
      %v2471 = vadd.f32 %v2401, %v2464
      %v2472 = vadd.f32 %v2402, %v2466
      %v2473 = vadd.f32 %v2403, %v2468
      %s2474 = scalar_lea.vmem %s3, 144
      %v2475 = vld [vmem:[%s2474] sm:$0xf]
      %v2476 = vld [vmem:[%s2474 + $0x4] sm:$0xf]
      %v2479 = vunpack.c.l.b16 %v2475
      %v2480 = vunpack.c.l.b16 %v2476
      %v2481 = vpack.c.b16 %v2480, %v2479
      %2482 = vrot.lane.b32.xlu0 %v1231, 77
      %v2483 = vpop.permute.xlu0 %2482
      %2484 = vrot.lane.b32.xlu0 %v1232, 77
      %v2485 = vpop.permute.xlu0 %2484
      %vm2486 = vcmask 629760
      %v2487 = vsel %vm2486, %v2483, %v2485
      %v2489 = vsel %vm1250, %v2481, 0
      %v2492 = vsel %vm1254, %v2487, 0
      %v2495 = vsel %vm1254, %v2485, 0
      %2497 = vmatprep.subr.bf16.mxu0 %v2495
      %2498 = vmatpush1.bf16.msra.mxu0 %v2492
      %2499 = vmatprep.subr.bf16.mxu0 0
      %2500 = vmatpush1.bf16.msra.mxu0 0
      %2501 = vmatprep.subr.bf16.mxu0 0
      %2502 = vmatpush1.bf16.msra.mxu0 0
      %2503 = vmatprep.subr.bf16.mxu0 0
      %2504 = vmatpush1.bf16.msra.mxu0 0
      %2505 = vmatprep.subr.bf16.mxu0 0
      %2506 = vmatpush1.bf16.msra.mxu0 0
      %2507 = vmatprep.subr.bf16.mxu0 0
      %2508 = vmatpush1.bf16.msra.mxu0 0
      %2509 = vmatprep.subr.bf16.mxu0 0
      %2510 = vmatpush1.bf16.msra.mxu0 0
      %2511 = vmatprep.subr.bf16.mxu0 0
      %2512 = vmatpush1.bf16.msra.mxu0 0
      %2513 = vmatprep.subr.bf16.mxu0 0
      %2514 = vmatpush1.bf16.msra.mxu0 0
      %2515 = vmatprep.subr.bf16.mxu0 0
      %2516 = vmatpush1.bf16.msra.mxu0 0
      %2517 = vmatprep.subr.bf16.mxu0 0
      %2518 = vmatpush1.bf16.msra.mxu0 0
      %2519 = vmatprep.subr.bf16.mxu0 0
      %2520 = vmatpush1.bf16.msra.mxu0 0
      %2521 = vmatprep.subr.bf16.mxu0 0
      %2522 = vmatpush1.bf16.msra.mxu0 0
      %2523 = vmatprep.subr.bf16.mxu0 0
      %2524 = vmatpush1.bf16.msra.mxu0 0
      %2525 = vmatprep.subr.bf16.mxu0 0
      %2526 = vmatpush1.bf16.msra.mxu0 0
      %2527 = vmatprep.subr.bf16.mxu0 0
      %2528 = vmatpush1.bf16.msra.mxu0 0
      %2529 = vmatprep.mubr.bf16.mxu0 0
      %2530 = vmatmul.mubr.bf16.gmra.mrb[0].mxu0 %v2489
      %v2531 = vpop.f32.mrb[0].mxu0
      %v2532 = vadd.f32 0.0, %v2531
      %v2533 = vpop.f32.mrb[0].mxu0
      %v2534 = vadd.f32 0.0, %v2533
      %v2535 = vpop.f32.mrb[0].mxu0
      %v2536 = vadd.f32 0.0, %v2535
      %v2537 = vpop.f32.mrb[0].mxu0
      %v2538 = vadd.f32 0.0, %v2537
      %2539 = vdwg.mxu0
      %v2540 = vadd.f32 %v2470, %v2532
      %v2541 = vadd.f32 %v2471, %v2534
      %v2542 = vadd.f32 %v2472, %v2536
      %v2543 = vadd.f32 %v2473, %v2538
      %s2544 = scalar_lea.vmem %s3, 152
      %v2545 = vld [vmem:[%s2544] sm:$0xf]
      %v2546 = vld [vmem:[%s2544 + $0x4] sm:$0xf]
      %v2549 = vunpack.c.l.b16 %v2545
      %v2550 = vunpack.c.l.b16 %v2546
      %v2551 = vpack.c.b16 %v2550, %v2549
      %2552 = vrot.lane.b32.xlu0 %v1231, 76
      %v2553 = vpop.permute.xlu0 %2552
      %2554 = vrot.lane.b32.xlu0 %v1232, 76
      %v2555 = vpop.permute.xlu0 %2554
      %vm2556 = vcmask 621568
      %v2557 = vsel %vm2556, %v2553, %v2555
      %v2559 = vsel %vm1250, %v2551, 0
      %v2562 = vsel %vm1254, %v2557, 0
      %v2565 = vsel %vm1254, %v2555, 0
      %2567 = vmatprep.subr.bf16.mxu0 %v2565
      %2568 = vmatpush1.bf16.msra.mxu0 %v2562
      %2569 = vmatprep.subr.bf16.mxu0 0
      %2570 = vmatpush1.bf16.msra.mxu0 0
      %2571 = vmatprep.subr.bf16.mxu0 0
      %2572 = vmatpush1.bf16.msra.mxu0 0
      %2573 = vmatprep.subr.bf16.mxu0 0
      %2574 = vmatpush1.bf16.msra.mxu0 0
      %2575 = vmatprep.subr.bf16.mxu0 0
      %2576 = vmatpush1.bf16.msra.mxu0 0
      %2577 = vmatprep.subr.bf16.mxu0 0
      %2578 = vmatpush1.bf16.msra.mxu0 0
      %2579 = vmatprep.subr.bf16.mxu0 0
      %2580 = vmatpush1.bf16.msra.mxu0 0
      %2581 = vmatprep.subr.bf16.mxu0 0
      %2582 = vmatpush1.bf16.msra.mxu0 0
      %2583 = vmatprep.subr.bf16.mxu0 0
      %2584 = vmatpush1.bf16.msra.mxu0 0
      %2585 = vmatprep.subr.bf16.mxu0 0
      %2586 = vmatpush1.bf16.msra.mxu0 0
      %2587 = vmatprep.subr.bf16.mxu0 0
      %2588 = vmatpush1.bf16.msra.mxu0 0
      %2589 = vmatprep.subr.bf16.mxu0 0
      %2590 = vmatpush1.bf16.msra.mxu0 0
      %2591 = vmatprep.subr.bf16.mxu0 0
      %2592 = vmatpush1.bf16.msra.mxu0 0
      %2593 = vmatprep.subr.bf16.mxu0 0
      %2594 = vmatpush1.bf16.msra.mxu0 0
      %2595 = vmatprep.subr.bf16.mxu0 0
      %2596 = vmatpush1.bf16.msra.mxu0 0
      %2597 = vmatprep.subr.bf16.mxu0 0
      %2598 = vmatpush1.bf16.msra.mxu0 0
      %2599 = vmatprep.mubr.bf16.mxu0 0
      %2600 = vmatmul.mubr.bf16.gmra.mrb[0].mxu0 %v2559
      %v2601 = vpop.f32.mrb[0].mxu0
      %v2602 = vadd.f32 0.0, %v2601
      %v2603 = vpop.f32.mrb[0].mxu0
      %v2604 = vadd.f32 0.0, %v2603
      %v2605 = vpop.f32.mrb[0].mxu0
      %v2606 = vadd.f32 0.0, %v2605
      %v2607 = vpop.f32.mrb[0].mxu0
      %v2608 = vadd.f32 0.0, %v2607
      %2609 = vdwg.mxu0
      %v2610 = vadd.f32 %v2540, %v2602
      %v2611 = vadd.f32 %v2541, %v2604
      %v2612 = vadd.f32 %v2542, %v2606
      %v2613 = vadd.f32 %v2543, %v2608
      %s2614 = scalar_lea.vmem %s3, 160
      %v2615 = vld [vmem:[%s2614] sm:$0xf]
      %v2616 = vld [vmem:[%s2614 + $0x4] sm:$0xf]
      %v2619 = vunpack.c.l.b16 %v2615
      %v2620 = vunpack.c.l.b16 %v2616
      %v2621 = vpack.c.b16 %v2620, %v2619
      %2622 = vrot.lane.b32.xlu0 %v1231, 64
      %v2623 = vpop.permute.xlu0 %2622
      %2624 = vrot.lane.b32.xlu0 %v1232, 64
      %v2625 = vpop.permute.xlu0 %2624
      %vm2626 = vcmask 523264
      %v2627 = vsel %vm2626, %v2623, %v2625
      %v2629 = vsel %vm1250, %v2621, 0
      %v2632 = vsel %vm1254, %v2627, 0
      %v2635 = vsel %vm1254, %v2625, 0
      %2637 = vmatprep.subr.bf16.mxu0 %v2635
      %2638 = vmatpush1.bf16.msra.mxu0 %v2632
      %2639 = vmatprep.subr.bf16.mxu0 0
      %2640 = vmatpush1.bf16.msra.mxu0 0
      %2641 = vmatprep.subr.bf16.mxu0 0
      %2642 = vmatpush1.bf16.msra.mxu0 0
      %2643 = vmatprep.subr.bf16.mxu0 0
      %2644 = vmatpush1.bf16.msra.mxu0 0
      %2645 = vmatprep.subr.bf16.mxu0 0
      %2646 = vmatpush1.bf16.msra.mxu0 0
      %2647 = vmatprep.subr.bf16.mxu0 0
      %2648 = vmatpush1.bf16.msra.mxu0 0
      %2649 = vmatprep.subr.bf16.mxu0 0
      %2650 = vmatpush1.bf16.msra.mxu0 0
      %2651 = vmatprep.subr.bf16.mxu0 0
      %2652 = vmatpush1.bf16.msra.mxu0 0
      %2653 = vmatprep.subr.bf16.mxu0 0
      %2654 = vmatpush1.bf16.msra.mxu0 0
      %2655 = vmatprep.subr.bf16.mxu0 0
      %2656 = vmatpush1.bf16.msra.mxu0 0
      %2657 = vmatprep.subr.bf16.mxu0 0
      %2658 = vmatpush1.bf16.msra.mxu0 0
      %2659 = vmatprep.subr.bf16.mxu0 0
      %2660 = vmatpush1.bf16.msra.mxu0 0
      %2661 = vmatprep.subr.bf16.mxu0 0
      %2662 = vmatpush1.bf16.msra.mxu0 0
      %2663 = vmatprep.subr.bf16.mxu0 0
      %2664 = vmatpush1.bf16.msra.mxu0 0
      %2665 = vmatprep.subr.bf16.mxu0 0
      %2666 = vmatpush1.bf16.msra.mxu0 0
      %2667 = vmatprep.subr.bf16.mxu0 0
      %2668 = vmatpush1.bf16.msra.mxu0 0
      %2669 = vmatprep.mubr.bf16.mxu0 0
      %2670 = vmatmul.mubr.bf16.gmra.mrb[0].mxu0 %v2629
      %v2671 = vpop.f32.mrb[0].mxu0
      %v2672 = vadd.f32 0.0, %v2671
      %v2673 = vpop.f32.mrb[0].mxu0
      %v2674 = vadd.f32 0.0, %v2673
      %v2675 = vpop.f32.mrb[0].mxu0
      %v2676 = vadd.f32 0.0, %v2675
      %v2677 = vpop.f32.mrb[0].mxu0
      %v2678 = vadd.f32 0.0, %v2677
      %2679 = vdwg.mxu0
      %v2680 = vadd.f32 %v2610, %v2672
      %v2681 = vadd.f32 %v2611, %v2674
      %v2682 = vadd.f32 %v2612, %v2676
      %v2683 = vadd.f32 %v2613, %v2678
      %s2684 = scalar_lea.vmem %s3, 168
      %v2685 = vld [vmem:[%s2684] sm:$0xf]
      %v2686 = vld [vmem:[%s2684 + $0x4] sm:$0xf]
      %v2689 = vunpack.c.l.b16 %v2685
      %v2690 = vunpack.c.l.b16 %v2686
      %v2691 = vpack.c.b16 %v2690, %v2689
      %2692 = vrot.lane.b32.xlu0 %v1231, 63
      %v2693 = vpop.permute.xlu0 %2692
      %2694 = vrot.lane.b32.xlu0 %v1232, 63
      %v2695 = vpop.permute.xlu0 %2694
      %vm2696 = vcmask 515072
      %v2697 = vsel %vm2696, %v2693, %v2695
      %v2699 = vsel %vm1250, %v2691, 0
      %v2702 = vsel %vm1254, %v2697, 0
      %v2705 = vsel %vm1254, %v2695, 0
      %2707 = vmatprep.subr.bf16.mxu0 %v2705
      %2708 = vmatpush1.bf16.msra.mxu0 %v2702
      %2709 = vmatprep.subr.bf16.mxu0 0
      %2710 = vmatpush1.bf16.msra.mxu0 0
      %2711 = vmatprep.subr.bf16.mxu0 0
      %2712 = vmatpush1.bf16.msra.mxu0 0
      %2713 = vmatprep.subr.bf16.mxu0 0
      %2714 = vmatpush1.bf16.msra.mxu0 0
      %2715 = vmatprep.subr.bf16.mxu0 0
      %2716 = vmatpush1.bf16.msra.mxu0 0
      %2717 = vmatprep.subr.bf16.mxu0 0
      %2718 = vmatpush1.bf16.msra.mxu0 0
      %2719 = vmatprep.subr.bf16.mxu0 0
      %2720 = vmatpush1.bf16.msra.mxu0 0
      %2721 = vmatprep.subr.bf16.mxu0 0
      %2722 = vmatpush1.bf16.msra.mxu0 0
      %2723 = vmatprep.subr.bf16.mxu0 0
      %2724 = vmatpush1.bf16.msra.mxu0 0
      %2725 = vmatprep.subr.bf16.mxu0 0
      %2726 = vmatpush1.bf16.msra.mxu0 0
      %2727 = vmatprep.subr.bf16.mxu0 0
      %2728 = vmatpush1.bf16.msra.mxu0 0
      %2729 = vmatprep.subr.bf16.mxu0 0
      %2730 = vmatpush1.bf16.msra.mxu0 0
      %2731 = vmatprep.subr.bf16.mxu0 0
      %2732 = vmatpush1.bf16.msra.mxu0 0
      %2733 = vmatprep.subr.bf16.mxu0 0
      %2734 = vmatpush1.bf16.msra.mxu0 0
      %2735 = vmatprep.subr.bf16.mxu0 0
      %2736 = vmatpush1.bf16.msra.mxu0 0
      %2737 = vmatprep.subr.bf16.mxu0 0
      %2738 = vmatpush1.bf16.msra.mxu0 0
      %2739 = vmatprep.mubr.bf16.mxu0 0
      %2740 = vmatmul.mubr.bf16.gmra.mrb[0].mxu0 %v2699
      %v2741 = vpop.f32.mrb[0].mxu0
      %v2742 = vadd.f32 0.0, %v2741
      %v2743 = vpop.f32.mrb[0].mxu0
      %v2744 = vadd.f32 0.0, %v2743
      %v2745 = vpop.f32.mrb[0].mxu0
      %v2746 = vadd.f32 0.0, %v2745
      %v2747 = vpop.f32.mrb[0].mxu0
      %v2748 = vadd.f32 0.0, %v2747
      %2749 = vdwg.mxu0
      %v2750 = vadd.f32 %v2680, %v2742
      %v2751 = vadd.f32 %v2681, %v2744
      %v2752 = vadd.f32 %v2682, %v2746
      %v2753 = vadd.f32 %v2683, %v2748
      %s2754 = scalar_lea.vmem %s3, 176
      %v2755 = vld [vmem:[%s2754] sm:$0xf]
      %v2756 = vld [vmem:[%s2754 + $0x4] sm:$0xf]
      %v2759 = vunpack.c.l.b16 %v2755
      %v2760 = vunpack.c.l.b16 %v2756
      %v2761 = vpack.c.b16 %v2760, %v2759
      %2762 = vrot.lane.b32.xlu0 %v1231, 62
      %v2763 = vpop.permute.xlu0 %2762
      %2764 = vrot.lane.b32.xlu0 %v1232, 62
      %v2765 = vpop.permute.xlu0 %2764
      %vm2766 = vcmask 506880
      %v2767 = vsel %vm2766, %v2763, %v2765
      %v2769 = vsel %vm1250, %v2761, 0
      %v2772 = vsel %vm1254, %v2767, 0
      %v2775 = vsel %vm1254, %v2765, 0
      %2777 = vmatprep.subr.bf16.mxu0 %v2775
      %2778 = vmatpush1.bf16.msra.mxu0 %v2772
      %2779 = vmatprep.subr.bf16.mxu0 0
      %2780 = vmatpush1.bf16.msra.mxu0 0
      %2781 = vmatprep.subr.bf16.mxu0 0
      %2782 = vmatpush1.bf16.msra.mxu0 0
      %2783 = vmatprep.subr.bf16.mxu0 0
      %2784 = vmatpush1.bf16.msra.mxu0 0
      %2785 = vmatprep.subr.bf16.mxu0 0
      %2786 = vmatpush1.bf16.msra.mxu0 0
      %2787 = vmatprep.subr.bf16.mxu0 0
      %2788 = vmatpush1.bf16.msra.mxu0 0
      %2789 = vmatprep.subr.bf16.mxu0 0
      %2790 = vmatpush1.bf16.msra.mxu0 0
      %2791 = vmatprep.subr.bf16.mxu0 0
      %2792 = vmatpush1.bf16.msra.mxu0 0
      %2793 = vmatprep.subr.bf16.mxu0 0
      %2794 = vmatpush1.bf16.msra.mxu0 0
      %2795 = vmatprep.subr.bf16.mxu0 0
      %2796 = vmatpush1.bf16.msra.mxu0 0
      %2797 = vmatprep.subr.bf16.mxu0 0
      %2798 = vmatpush1.bf16.msra.mxu0 0
      %2799 = vmatprep.subr.bf16.mxu0 0
      %2800 = vmatpush1.bf16.msra.mxu0 0
      %2801 = vmatprep.subr.bf16.mxu0 0
      %2802 = vmatpush1.bf16.msra.mxu0 0
      %2803 = vmatprep.subr.bf16.mxu0 0
      %2804 = vmatpush1.bf16.msra.mxu0 0
      %2805 = vmatprep.subr.bf16.mxu0 0
      %2806 = vmatpush1.bf16.msra.mxu0 0
      %2807 = vmatprep.subr.bf16.mxu0 0
      %2808 = vmatpush1.bf16.msra.mxu0 0
      %2809 = vmatprep.mubr.bf16.mxu0 0
      %2810 = vmatmul.mubr.bf16.gmra.mrb[0].mxu0 %v2769
      %v2811 = vpop.f32.mrb[0].mxu0
      %v2812 = vadd.f32 0.0, %v2811
      %v2813 = vpop.f32.mrb[0].mxu0
      %v2814 = vadd.f32 0.0, %v2813
      %v2815 = vpop.f32.mrb[0].mxu0
      %v2816 = vadd.f32 0.0, %v2815
      %v2817 = vpop.f32.mrb[0].mxu0
      %v2818 = vadd.f32 0.0, %v2817
      %2819 = vdwg.mxu0
      %v2820 = vadd.f32 %v2750, %v2812
      %v2821 = vadd.f32 %v2751, %v2814
      %v2822 = vadd.f32 %v2752, %v2816
      %v2823 = vadd.f32 %v2753, %v2818
      %s2824 = scalar_lea.vmem %s3, 184
      %v2825 = vld [vmem:[%s2824] sm:$0xf]
      %v2826 = vld [vmem:[%s2824 + $0x4] sm:$0xf]
      %v2829 = vunpack.c.l.b16 %v2825
      %v2830 = vunpack.c.l.b16 %v2826
      %v2831 = vpack.c.b16 %v2830, %v2829
      %2832 = vrot.lane.b32.xlu0 %v1231, 61
      %v2833 = vpop.permute.xlu0 %2832
      %2834 = vrot.lane.b32.xlu0 %v1232, 61
      %v2835 = vpop.permute.xlu0 %2834
      %vm2836 = vcmask 498688
      %v2837 = vsel %vm2836, %v2833, %v2835
      %v2839 = vsel %vm1250, %v2831, 0
      %v2842 = vsel %vm1254, %v2837, 0
      %v2845 = vsel %vm1254, %v2835, 0
      %2847 = vmatprep.subr.bf16.mxu0 %v2845
      %2848 = vmatpush1.bf16.msra.mxu0 %v2842
      %2849 = vmatprep.subr.bf16.mxu0 0
      %2850 = vmatpush1.bf16.msra.mxu0 0
      %2851 = vmatprep.subr.bf16.mxu0 0
      %2852 = vmatpush1.bf16.msra.mxu0 0
      %2853 = vmatprep.subr.bf16.mxu0 0
      %2854 = vmatpush1.bf16.msra.mxu0 0
      %2855 = vmatprep.subr.bf16.mxu0 0
      %2856 = vmatpush1.bf16.msra.mxu0 0
      %2857 = vmatprep.subr.bf16.mxu0 0
      %2858 = vmatpush1.bf16.msra.mxu0 0
      %2859 = vmatprep.subr.bf16.mxu0 0
      %2860 = vmatpush1.bf16.msra.mxu0 0
      %2861 = vmatprep.subr.bf16.mxu0 0
      %2862 = vmatpush1.bf16.msra.mxu0 0
      %2863 = vmatprep.subr.bf16.mxu0 0
      %2864 = vmatpush1.bf16.msra.mxu0 0
      %2865 = vmatprep.subr.bf16.mxu0 0
      %2866 = vmatpush1.bf16.msra.mxu0 0
      %2867 = vmatprep.subr.bf16.mxu0 0
      %2868 = vmatpush1.bf16.msra.mxu0 0
      %2869 = vmatprep.subr.bf16.mxu0 0
      %2870 = vmatpush1.bf16.msra.mxu0 0
      %2871 = vmatprep.subr.bf16.mxu0 0
      %2872 = vmatpush1.bf16.msra.mxu0 0
      %2873 = vmatprep.subr.bf16.mxu0 0
      %2874 = vmatpush1.bf16.msra.mxu0 0
      %2875 = vmatprep.subr.bf16.mxu0 0
      %2876 = vmatpush1.bf16.msra.mxu0 0
      %2877 = vmatprep.subr.bf16.mxu0 0
      %2878 = vmatpush1.bf16.msra.mxu0 0
      %2879 = vmatprep.mubr.bf16.mxu0 0
      %2880 = vmatmul.mubr.bf16.gmra.mrb[0].mxu0 %v2839
      %v2881 = vpop.f32.mrb[0].mxu0
      %v2882 = vadd.f32 0.0, %v2881
      %v2883 = vpop.f32.mrb[0].mxu0
      %v2884 = vadd.f32 0.0, %v2883
      %v2885 = vpop.f32.mrb[0].mxu0
      %v2886 = vadd.f32 0.0, %v2885
      %v2887 = vpop.f32.mrb[0].mxu0
      %v2888 = vadd.f32 0.0, %v2887
      %2889 = vdwg.mxu0
      %v2890 = vadd.f32 %v2820, %v2882
      %v2891 = vadd.f32 %v2821, %v2884
      %v2892 = vadd.f32 %v2822, %v2886
      %v2893 = vadd.f32 %v2823, %v2888
      %s2894 = scalar_lea.vmem %s3, 192
      %v2895 = vld [vmem:[%s2894] sm:$0xf]
      %v2896 = vld [vmem:[%s2894 + $0x4] sm:$0xf]
      %v2899 = vunpack.c.l.b16 %v2895
      %v2900 = vunpack.c.l.b16 %v2896
      %v2901 = vpack.c.b16 %v2900, %v2899
      %2902 = vrot.lane.b32.xlu0 %v1231, 60
      %v2903 = vpop.permute.xlu0 %2902
      %2904 = vrot.lane.b32.xlu0 %v1232, 60
      %v2905 = vpop.permute.xlu0 %2904
      %vm2906 = vcmask 490496
      %v2907 = vsel %vm2906, %v2903, %v2905
      %v2909 = vsel %vm1250, %v2901, 0
      %v2912 = vsel %vm1254, %v2907, 0
      %v2915 = vsel %vm1254, %v2905, 0
      %2917 = vmatprep.subr.bf16.mxu0 %v2915
      %2918 = vmatpush1.bf16.msra.mxu0 %v2912
      %2919 = vmatprep.subr.bf16.mxu0 0
      %2920 = vmatpush1.bf16.msra.mxu0 0
      %2921 = vmatprep.subr.bf16.mxu0 0
      %2922 = vmatpush1.bf16.msra.mxu0 0
      %2923 = vmatprep.subr.bf16.mxu0 0
      %2924 = vmatpush1.bf16.msra.mxu0 0
      %2925 = vmatprep.subr.bf16.mxu0 0
      %2926 = vmatpush1.bf16.msra.mxu0 0
      %2927 = vmatprep.subr.bf16.mxu0 0
      %2928 = vmatpush1.bf16.msra.mxu0 0
      %2929 = vmatprep.subr.bf16.mxu0 0
      %2930 = vmatpush1.bf16.msra.mxu0 0
      %2931 = vmatprep.subr.bf16.mxu0 0
      %2932 = vmatpush1.bf16.msra.mxu0 0
      %2933 = vmatprep.subr.bf16.mxu0 0
      %2934 = vmatpush1.bf16.msra.mxu0 0
      %2935 = vmatprep.subr.bf16.mxu0 0
      %2936 = vmatpush1.bf16.msra.mxu0 0
      %2937 = vmatprep.subr.bf16.mxu0 0
      %2938 = vmatpush1.bf16.msra.mxu0 0
      %2939 = vmatprep.subr.bf16.mxu0 0
      %2940 = vmatpush1.bf16.msra.mxu0 0
      %2941 = vmatprep.subr.bf16.mxu0 0
      %2942 = vmatpush1.bf16.msra.mxu0 0
      %2943 = vmatprep.subr.bf16.mxu0 0
      %2944 = vmatpush1.bf16.msra.mxu0 0
      %2945 = vmatprep.subr.bf16.mxu0 0
      %2946 = vmatpush1.bf16.msra.mxu0 0
      %2947 = vmatprep.subr.bf16.mxu0 0
      %2948 = vmatpush1.bf16.msra.mxu0 0
      %2949 = vmatprep.mubr.bf16.mxu0 0
      %2950 = vmatmul.mubr.bf16.gmra.mrb[0].mxu0 %v2909
      %v2951 = vpop.f32.mrb[0].mxu0
      %v2952 = vadd.f32 0.0, %v2951
      %v2953 = vpop.f32.mrb[0].mxu0
      %v2954 = vadd.f32 0.0, %v2953
      %v2955 = vpop.f32.mrb[0].mxu0
      %v2956 = vadd.f32 0.0, %v2955
      %v2957 = vpop.f32.mrb[0].mxu0
      %v2958 = vadd.f32 0.0, %v2957
      %2959 = vdwg.mxu0
      %v2960 = vadd.f32 %v2890, %v2952
      %v2961 = vadd.f32 %v2891, %v2954
      %v2962 = vadd.f32 %v2892, %v2956
      %v2963 = vadd.f32 %v2893, %v2958
      %2968 = vrot.lane.b32.xlu0 %v2960, 127
      %v2969 = vpop.permute.xlu0 %2968
      %2970 = vrot.lane.b32.xlu0 %v2961, 127
      %v2971 = vpop.permute.xlu0 %2970
      %2972 = vrot.lane.b32.xlu0 %v2962, 127
      %v2973 = vpop.permute.xlu0 %2972
      %2974 = vrot.lane.b32.xlu0 %v2963, 127
      %v2975 = vpop.permute.xlu0 %2974
      %vm2976 = vcmask 1039360
      %v2977 = vsel %vm2976, %v2969, %v2971
      %v2978 = vsel %vm2976, %v2973, %v2975
      %v2983 = vmax.f32 %v2960, %v2977
      %v2984 = vmax.f32 %v2961, %v2971
      %v2985 = vmax.f32 %v2962, %v2978
      %v2986 = vmax.f32 %v2963, %v2975
      %2991 = vrot.lane.b32.xlu0 %v2983, 112
      %v2992 = vpop.permute.xlu0 %2991
      %2993 = vrot.lane.b32.xlu0 %v2984, 112
      %v2994 = vpop.permute.xlu0 %2993
      %2995 = vrot.lane.b32.xlu0 %v2985, 112
      %v2996 = vpop.permute.xlu0 %2995
      %2997 = vrot.lane.b32.xlu0 %v2986, 112
      %v2998 = vpop.permute.xlu0 %2997
      %vm2999 = vcmask 916480
      %v3000 = vsel %vm2999, %v2992, %v2994
      %v3001 = vsel %vm2999, %v2996, %v2998
      %v3006 = vmax.f32 %v2983, %v3000
      %v3007 = vmax.f32 %v2984, %v2994
      %v3008 = vmax.f32 %v2985, %v3001
      %v3009 = vmax.f32 %v2986, %v2998
      %v3010 = vld [vmem:[%s4] sm:$0xff]
      %v3011 = vld [vmem:[%s4 + $0x8] sm:$0xff]
      %3013 = vset.pattern.permute.xlu0 0
      %3014 = vperm.xlu0 %3013, %v3010
      %v3015 = vpop.permute.xlu0 %3014
      %3018 = vset.pattern.permute.xlu0 0
      %3019 = vperm.xlu0 %3018, %v3011
      %v3020 = vpop.permute.xlu0 %3019
      %v3022 = vadd.f32 %v3006, %v3015
      %v3023 = vadd.f32 %v3007, %v3015
      %v3024 = vadd.f32 %v3008, %v3020
      %v3025 = vadd.f32 %v3009, %v3020
      %v3026 = vmax.f32 %v3022, 0.0
      %v3027 = vmax.f32 %v3023, 0.0
      %v3028 = vmax.f32 %v3024, 0.0
      %v3029 = vmax.f32 %v3025, 0.0
      %v3030 = vpack.c.bf16 %v3028, %v3026
      %v3031 = vpack.c.bf16 %v3029, %v3027
      %v3032 = vld [vmem:[%s5] sm:$0xf]
      %v3033 = vld [vmem:[%s5 + $0x4] sm:$0xf]
      %v3034 = vld [vmem:[%s5 + $0x8] sm:$0xf]
      %v3035 = vld [vmem:[%s5 + $0xc] sm:$0xf]
      %v3036 = vld [vmem:[%s5 + $0x10] sm:$0xf]
      %v3037 = vld [vmem:[%s5 + $0x14] sm:$0xf]
      %v3038 = vld [vmem:[%s5 + $0x18] sm:$0xf]
      %v3039 = vld [vmem:[%s5 + $0x1c] sm:$0xf]
      %v3040 = vld [vmem:[%s5 + $0x20] sm:$0xf]
      %v3041 = vld [vmem:[%s5 + $0x24] sm:$0xf]
      %v3042 = vld [vmem:[%s5 + $0x28] sm:$0xf]
      %v3043 = vld [vmem:[%s5 + $0x2c] sm:$0xf]
      %v3044 = vld [vmem:[%s5 + $0x30] sm:$0xf]
      %v3045 = vld [vmem:[%s5 + $0x34] sm:$0xf]
      %v3046 = vld [vmem:[%s5 + $0x38] sm:$0xf]
      %v3047 = vld [vmem:[%s5 + $0x3c] sm:$0xf]
      %v3048 = vld [vmem:[%s5 + $0x40] sm:$0xf]
      %v3049 = vld [vmem:[%s5 + $0x44] sm:$0xf]
      %s3050 = scalar_lea.vmem %s5, 72
      %v3051 = vld [vmem:[%s3050] sm:$0xf]
      %v3052 = vld [vmem:[%s3050 + $0x4] sm:$0xf]
      %v3053 = vld [vmem:[%s3050 + $0x8] sm:$0xf]
      %v3054 = vld [vmem:[%s3050 + $0xc] sm:$0xf]
      %v3055 = vld [vmem:[%s3050 + $0x10] sm:$0xf]
      %v3056 = vld [vmem:[%s3050 + $0x14] sm:$0xf]
      %v3057 = vld [vmem:[%s3050 + $0x18] sm:$0xf]
      %v3058 = vld [vmem:[%s3050 + $0x1c] sm:$0xf]
      %v3059 = vld [vmem:[%s3050 + $0x20] sm:$0xf]
      %v3060 = vld [vmem:[%s3050 + $0x24] sm:$0xf]
      %v3061 = vld [vmem:[%s3050 + $0x28] sm:$0xf]
      %v3062 = vld [vmem:[%s3050 + $0x2c] sm:$0xf]
      %v3063 = vld [vmem:[%s3050 + $0x30] sm:$0xf]
      %v3064 = vld [vmem:[%s3050 + $0x34] sm:$0xf]
      %v3065 = vld [vmem:[%s3050 + $0x38] sm:$0xf]
      %v3066 = vld [vmem:[%s3050 + $0x3c] sm:$0xf]
      %v3067 = vld [vmem:[%s3050 + $0x40] sm:$0xf]
      %v3068 = vld [vmem:[%s3050 + $0x44] sm:$0xf]
      %v3070 = vshrl.u32 %v3030, 16
      %v3073 = vshrl.u32 %v3031, 16
      %v3094 = vunpack.c.l.b16 %v3051
      %v3095 = vunpack.c.l.b16 %v3052
      %v3096 = vunpack.c.l.b16 %v3053
      %v3097 = vunpack.c.l.b16 %v3054
      %v3098 = vunpack.c.l.b16 %v3055
      %v3099 = vunpack.c.l.b16 %v3056
      %v3100 = vunpack.c.l.b16 %v3057
      %v3101 = vunpack.c.l.b16 %v3058
      %v3102 = vunpack.c.l.b16 %v3059
      %v3103 = vunpack.c.l.b16 %v3060
      %v3104 = vunpack.c.l.b16 %v3061
      %v3105 = vunpack.c.l.b16 %v3062
      %v3106 = vunpack.c.l.b16 %v3063
      %v3107 = vunpack.c.l.b16 %v3064
      %v3108 = vunpack.c.l.b16 %v3065
      %v3109 = vunpack.c.l.b16 %v3066
      %v3110 = vunpack.c.l.b16 %v3067
      %v3111 = vunpack.c.l.b16 %v3068
      %v3112 = vpack.c.b16 %v3095, %v3094
      %v3113 = vpack.c.b16 %v3097, %v3096
      %v3114 = vpack.c.b16 %v3099, %v3098
      %v3115 = vpack.c.b16 %v3101, %v3100
      %v3116 = vpack.c.b16 %v3103, %v3102
      %v3117 = vpack.c.b16 %v3105, %v3104
      %v3118 = vpack.c.b16 %v3107, %v3106
      %v3119 = vpack.c.b16 %v3109, %v3108
      %v3120 = vpack.c.b16 %v3111, %v3110
      %v3131 = vsel %vm433, %v3073, 0
      %3133 = vmatprep.subr.bf16.mxu0 0
      %3134 = vmatpush1.bf16.msra.mxu0 %v3112
      %3135 = vmatprep.subr.bf16.mxu0 0
      %3136 = vmatpush1.bf16.msra.mxu0 %v3113
      %3137 = vmatprep.subr.bf16.mxu0 0
      %3138 = vmatpush1.bf16.msra.mxu0 %v3114
      %3139 = vmatprep.subr.bf16.mxu0 0
      %3140 = vmatpush1.bf16.msra.mxu0 %v3115
      %3141 = vmatprep.subr.bf16.mxu0 0
      %3142 = vmatpush1.bf16.msra.mxu0 %v3116
      %3143 = vmatprep.subr.bf16.mxu0 0
      %3144 = vmatpush1.bf16.msra.mxu0 %v3117
      %3145 = vmatprep.subr.bf16.mxu0 0
      %3146 = vmatpush1.bf16.msra.mxu0 %v3118
      %3147 = vmatprep.subr.bf16.mxu0 0
      %3148 = vmatpush1.bf16.msra.mxu0 %v3119
      %3149 = vmatprep.subr.bf16.mxu0 0
      %3150 = vmatpush1.bf16.msra.mxu0 %v3120
      %3151 = vmatprep.subr.bf16.mxu0 0
      %3152 = vmatpush1.bf16.msra.mxu0 0
      %3153 = vmatprep.subr.bf16.mxu0 0
      %3154 = vmatpush1.bf16.msra.mxu0 0
      %3155 = vmatprep.subr.bf16.mxu0 0
      %3156 = vmatpush1.bf16.msra.mxu0 0
      %3157 = vmatprep.subr.bf16.mxu0 0
      %3158 = vmatpush1.bf16.msra.mxu0 0
      %3159 = vmatprep.subr.bf16.mxu0 0
      %3160 = vmatpush1.bf16.msra.mxu0 0
      %3161 = vmatprep.subr.bf16.mxu0 0
      %3162 = vmatpush1.bf16.msra.mxu0 0
      %3163 = vmatprep.subr.bf16.mxu0 0
      %3164 = vmatpush1.bf16.msra.mxu0 0
      %3165 = vmatprep.mubr.bf16.mxu0 %v3131
      %3166 = vmatmul.mubr.bf16.gmra.mrb[0].mxu0 %v3070
      %v3167 = vpop.f32.mrb[0].mxu0
      %v3168 = vadd.f32 0.0, %v3167
      %v3169 = vpop.f32.mrb[0].mxu0
      %v3170 = vpop.f32.mrb[0].mxu0
      %v3171 = vpop.f32.mrb[0].mxu0
      %3172 = vdwg.mxu0
      %v3191 = vunpack.c.l.b16 %v3032
      %v3192 = vunpack.c.l.b16 %v3033
      %v3193 = vunpack.c.l.b16 %v3034
      %v3194 = vunpack.c.l.b16 %v3035
      %v3195 = vunpack.c.l.b16 %v3036
      %v3196 = vunpack.c.l.b16 %v3037
      %v3197 = vunpack.c.l.b16 %v3038
      %v3198 = vunpack.c.l.b16 %v3039
      %v3199 = vunpack.c.l.b16 %v3040
      %v3200 = vunpack.c.l.b16 %v3041
      %v3201 = vunpack.c.l.b16 %v3042
      %v3202 = vunpack.c.l.b16 %v3043
      %v3203 = vunpack.c.l.b16 %v3044
      %v3204 = vunpack.c.l.b16 %v3045
      %v3205 = vunpack.c.l.b16 %v3046
      %v3206 = vunpack.c.l.b16 %v3047
      %v3207 = vunpack.c.l.b16 %v3048
      %v3208 = vunpack.c.l.b16 %v3049
      %v3209 = vpack.c.b16 %v3192, %v3191
      %v3210 = vpack.c.b16 %v3194, %v3193
      %v3211 = vpack.c.b16 %v3196, %v3195
      %v3212 = vpack.c.b16 %v3198, %v3197
      %v3213 = vpack.c.b16 %v3200, %v3199
      %v3214 = vpack.c.b16 %v3202, %v3201
      %v3215 = vpack.c.b16 %v3204, %v3203
      %v3216 = vpack.c.b16 %v3206, %v3205
      %v3217 = vpack.c.b16 %v3208, %v3207
      %v3227 = vsel %vm433, %v3031, 0
      %3229 = vmatprep.subr.bf16.mxu0 0
      %3230 = vmatpush1.bf16.msra.mxu0 %v3209
      %3231 = vmatprep.subr.bf16.mxu0 0
      %3232 = vmatpush1.bf16.msra.mxu0 %v3210
      %3233 = vmatprep.subr.bf16.mxu0 0
      %3234 = vmatpush1.bf16.msra.mxu0 %v3211
      %3235 = vmatprep.subr.bf16.mxu0 0
      %3236 = vmatpush1.bf16.msra.mxu0 %v3212
      %3237 = vmatprep.subr.bf16.mxu0 0
      %3238 = vmatpush1.bf16.msra.mxu0 %v3213
      %3239 = vmatprep.subr.bf16.mxu0 0
      %3240 = vmatpush1.bf16.msra.mxu0 %v3214
      %3241 = vmatprep.subr.bf16.mxu0 0
      %3242 = vmatpush1.bf16.msra.mxu0 %v3215
      %3243 = vmatprep.subr.bf16.mxu0 0
      %3244 = vmatpush1.bf16.msra.mxu0 %v3216
      %3245 = vmatprep.subr.bf16.mxu0 0
      %3246 = vmatpush1.bf16.msra.mxu0 %v3217
      %3247 = vmatprep.subr.bf16.mxu0 0
      %3248 = vmatpush1.bf16.msra.mxu0 0
      %3249 = vmatprep.subr.bf16.mxu0 0
      %3250 = vmatpush1.bf16.msra.mxu0 0
      %3251 = vmatprep.subr.bf16.mxu0 0
      %3252 = vmatpush1.bf16.msra.mxu0 0
      %3253 = vmatprep.subr.bf16.mxu0 0
      %3254 = vmatpush1.bf16.msra.mxu0 0
      %3255 = vmatprep.subr.bf16.mxu0 0
      %3256 = vmatpush1.bf16.msra.mxu0 0
      %3257 = vmatprep.subr.bf16.mxu0 0
      %3258 = vmatpush1.bf16.msra.mxu0 0
      %3259 = vmatprep.subr.bf16.mxu0 0
      %3260 = vmatpush1.bf16.msra.mxu0 0
      %3261 = vmatprep.mubr.bf16.mxu0 %v3227
      %3262 = vmatmul.mubr.bf16.gmra.mrb[0].mxu0 %v3030
      %v3263 = vpop.f32.mrb[0].mxu0
      %v3264 = vadd.f32 %v3168, %v3263
      %v3265 = vpop.f32.mrb[0].mxu0
      %v3266 = vpop.f32.mrb[0].mxu0
      %v3267 = vpop.f32.mrb[0].mxu0
      %3268 = vdwg.mxu0
      %s3269 = scalar_lea.vmem %s5, 144
      %v3270 = vld [vmem:[%s3269] sm:$0xf]
      %v3271 = vld [vmem:[%s3269 + $0x4] sm:$0xf]
      %v3272 = vld [vmem:[%s3269 + $0x8] sm:$0xf]
      %v3273 = vld [vmem:[%s3269 + $0xc] sm:$0xf]
      %v3274 = vld [vmem:[%s3269 + $0x10] sm:$0xf]
      %v3275 = vld [vmem:[%s3269 + $0x14] sm:$0xf]
      %v3276 = vld [vmem:[%s3269 + $0x18] sm:$0xf]
      %v3277 = vld [vmem:[%s3269 + $0x1c] sm:$0xf]
      %v3278 = vld [vmem:[%s3269 + $0x20] sm:$0xf]
      %v3279 = vld [vmem:[%s3269 + $0x24] sm:$0xf]
      %v3280 = vld [vmem:[%s3269 + $0x28] sm:$0xf]
      %v3281 = vld [vmem:[%s3269 + $0x2c] sm:$0xf]
      %v3282 = vld [vmem:[%s3269 + $0x30] sm:$0xf]
      %v3283 = vld [vmem:[%s3269 + $0x34] sm:$0xf]
      %v3284 = vld [vmem:[%s3269 + $0x38] sm:$0xf]
      %v3285 = vld [vmem:[%s3269 + $0x3c] sm:$0xf]
      %v3286 = vld [vmem:[%s3269 + $0x40] sm:$0xf]
      %v3287 = vld [vmem:[%s3269 + $0x44] sm:$0xf]
      %v3290 = vrot.slane %v3030, 1
      %v3291 = vrot.slane %v3031, 1
      %v3311 = vunpack.c.l.b16 %v3270
      %v3312 = vunpack.c.l.b16 %v3271
      %v3313 = vunpack.c.l.b16 %v3272
      %v3314 = vunpack.c.l.b16 %v3273
      %v3315 = vunpack.c.l.b16 %v3274
      %v3316 = vunpack.c.l.b16 %v3275
      %v3317 = vunpack.c.l.b16 %v3276
      %v3318 = vunpack.c.l.b16 %v3277
      %v3319 = vunpack.c.l.b16 %v3278
      %v3320 = vunpack.c.l.b16 %v3279
      %v3321 = vunpack.c.l.b16 %v3280
      %v3322 = vunpack.c.l.b16 %v3281
      %v3323 = vunpack.c.l.b16 %v3282
      %v3324 = vunpack.c.l.b16 %v3283
      %v3325 = vunpack.c.l.b16 %v3284
      %v3326 = vunpack.c.l.b16 %v3285
      %v3327 = vunpack.c.l.b16 %v3286
      %v3328 = vunpack.c.l.b16 %v3287
      %v3329 = vpack.c.b16 %v3312, %v3311
      %v3330 = vpack.c.b16 %v3314, %v3313
      %v3331 = vpack.c.b16 %v3316, %v3315
      %v3332 = vpack.c.b16 %v3318, %v3317
      %v3333 = vpack.c.b16 %v3320, %v3319
      %v3334 = vpack.c.b16 %v3322, %v3321
      %v3335 = vpack.c.b16 %v3324, %v3323
      %v3336 = vpack.c.b16 %v3326, %v3325
      %v3337 = vpack.c.b16 %v3328, %v3327
      %v3348 = vsel %vm433, %v3291, 0
      %3350 = vmatprep.subr.bf16.mxu0 0
      %3351 = vmatpush1.bf16.msra.mxu0 %v3329
      %3352 = vmatprep.subr.bf16.mxu0 0
      %3353 = vmatpush1.bf16.msra.mxu0 %v3330
      %3354 = vmatprep.subr.bf16.mxu0 0
      %3355 = vmatpush1.bf16.msra.mxu0 %v3331
      %3356 = vmatprep.subr.bf16.mxu0 0
      %3357 = vmatpush1.bf16.msra.mxu0 %v3332
      %3358 = vmatprep.subr.bf16.mxu0 0
      %3359 = vmatpush1.bf16.msra.mxu0 %v3333
      %3360 = vmatprep.subr.bf16.mxu0 0
      %3361 = vmatpush1.bf16.msra.mxu0 %v3334
      %3362 = vmatprep.subr.bf16.mxu0 0
      %3363 = vmatpush1.bf16.msra.mxu0 %v3335
      %3364 = vmatprep.subr.bf16.mxu0 0
      %3365 = vmatpush1.bf16.msra.mxu0 %v3336
      %3366 = vmatprep.subr.bf16.mxu0 0
      %3367 = vmatpush1.bf16.msra.mxu0 %v3337
      %3368 = vmatprep.subr.bf16.mxu0 0
      %3369 = vmatpush1.bf16.msra.mxu0 0
      %3370 = vmatprep.subr.bf16.mxu0 0
      %3371 = vmatpush1.bf16.msra.mxu0 0
      %3372 = vmatprep.subr.bf16.mxu0 0
      %3373 = vmatpush1.bf16.msra.mxu0 0
      %3374 = vmatprep.subr.bf16.mxu0 0
      %3375 = vmatpush1.bf16.msra.mxu0 0
      %3376 = vmatprep.subr.bf16.mxu0 0
      %3377 = vmatpush1.bf16.msra.mxu0 0
      %3378 = vmatprep.subr.bf16.mxu0 0
      %3379 = vmatpush1.bf16.msra.mxu0 0
      %3380 = vmatprep.subr.bf16.mxu0 0
      %3381 = vmatpush1.bf16.msra.mxu0 0
      %3382 = vmatprep.mubr.bf16.mxu0 %v3348
      %3383 = vmatmul.mubr.bf16.gmra.mrb[0].mxu0 %v3290
      %v3384 = vpop.f32.mrb[0].mxu0
      %v3385 = vadd.f32 0.0, %v3384
      %v3386 = vpop.f32.mrb[0].mxu0
      %v3387 = vpop.f32.mrb[0].mxu0
      %v3388 = vpop.f32.mrb[0].mxu0
      %3389 = vdwg.mxu0
      %v3390 = vadd.f32 %v3264, %v3385
      %s3391 = scalar_lea.vmem %s5, 216
      %v3392 = vld [vmem:[%s3391] sm:$0xf]
      %v3393 = vld [vmem:[%s3391 + $0x4] sm:$0xf]
      %v3394 = vld [vmem:[%s3391 + $0x8] sm:$0xf]
      %v3395 = vld [vmem:[%s3391 + $0xc] sm:$0xf]
      %v3396 = vld [vmem:[%s3391 + $0x10] sm:$0xf]
      %v3397 = vld [vmem:[%s3391 + $0x14] sm:$0xf]
      %v3398 = vld [vmem:[%s3391 + $0x18] sm:$0xf]
      %v3399 = vld [vmem:[%s3391 + $0x1c] sm:$0xf]
      %v3400 = vld [vmem:[%s3391 + $0x20] sm:$0xf]
      %v3401 = vld [vmem:[%s3391 + $0x24] sm:$0xf]
      %v3402 = vld [vmem:[%s3391 + $0x28] sm:$0xf]
      %v3403 = vld [vmem:[%s3391 + $0x2c] sm:$0xf]
      %v3404 = vld [vmem:[%s3391 + $0x30] sm:$0xf]
      %v3405 = vld [vmem:[%s3391 + $0x34] sm:$0xf]
      %v3406 = vld [vmem:[%s3391 + $0x38] sm:$0xf]
      %v3407 = vld [vmem:[%s3391 + $0x3c] sm:$0xf]
      %v3408 = vld [vmem:[%s3391 + $0x40] sm:$0xf]
      %v3409 = vld [vmem:[%s3391 + $0x44] sm:$0xf]
      %v3410 = vrot.slane %v3070, 1
      %v3411 = vrot.slane %v3073, 1
      %v3431 = vunpack.c.l.b16 %v3392
      %v3432 = vunpack.c.l.b16 %v3393
      %v3433 = vunpack.c.l.b16 %v3394
      %v3434 = vunpack.c.l.b16 %v3395
      %v3435 = vunpack.c.l.b16 %v3396
      %v3436 = vunpack.c.l.b16 %v3397
      %v3437 = vunpack.c.l.b16 %v3398
      %v3438 = vunpack.c.l.b16 %v3399
      %v3439 = vunpack.c.l.b16 %v3400
      %v3440 = vunpack.c.l.b16 %v3401
      %v3441 = vunpack.c.l.b16 %v3402
      %v3442 = vunpack.c.l.b16 %v3403
      %v3443 = vunpack.c.l.b16 %v3404
      %v3444 = vunpack.c.l.b16 %v3405
      %v3445 = vunpack.c.l.b16 %v3406
      %v3446 = vunpack.c.l.b16 %v3407
      %v3447 = vunpack.c.l.b16 %v3408
      %v3448 = vunpack.c.l.b16 %v3409
      %v3449 = vpack.c.b16 %v3432, %v3431
      %v3450 = vpack.c.b16 %v3434, %v3433
      %v3451 = vpack.c.b16 %v3436, %v3435
      %v3452 = vpack.c.b16 %v3438, %v3437
      %v3453 = vpack.c.b16 %v3440, %v3439
      %v3454 = vpack.c.b16 %v3442, %v3441
      %v3455 = vpack.c.b16 %v3444, %v3443
      %v3456 = vpack.c.b16 %v3446, %v3445
      %v3457 = vpack.c.b16 %v3448, %v3447
      %v3468 = vsel %vm433, %v3411, 0
      %3470 = vmatprep.subr.bf16.mxu0 0
      %3471 = vmatpush1.bf16.msra.mxu0 %v3449
      %3472 = vmatprep.subr.bf16.mxu0 0
      %3473 = vmatpush1.bf16.msra.mxu0 %v3450
      %3474 = vmatprep.subr.bf16.mxu0 0
      %3475 = vmatpush1.bf16.msra.mxu0 %v3451
      %3476 = vmatprep.subr.bf16.mxu0 0
      %3477 = vmatpush1.bf16.msra.mxu0 %v3452
      %3478 = vmatprep.subr.bf16.mxu0 0
      %3479 = vmatpush1.bf16.msra.mxu0 %v3453
      %3480 = vmatprep.subr.bf16.mxu0 0
      %3481 = vmatpush1.bf16.msra.mxu0 %v3454
      %3482 = vmatprep.subr.bf16.mxu0 0
      %3483 = vmatpush1.bf16.msra.mxu0 %v3455
      %3484 = vmatprep.subr.bf16.mxu0 0
      %3485 = vmatpush1.bf16.msra.mxu0 %v3456
      %3486 = vmatprep.subr.bf16.mxu0 0
      %3487 = vmatpush1.bf16.msra.mxu0 %v3457
      %3488 = vmatprep.subr.bf16.mxu0 0
      %3489 = vmatpush1.bf16.msra.mxu0 0
      %3490 = vmatprep.subr.bf16.mxu0 0
      %3491 = vmatpush1.bf16.msra.mxu0 0
      %3492 = vmatprep.subr.bf16.mxu0 0
      %3493 = vmatpush1.bf16.msra.mxu0 0
      %3494 = vmatprep.subr.bf16.mxu0 0
      %3495 = vmatpush1.bf16.msra.mxu0 0
      %3496 = vmatprep.subr.bf16.mxu0 0
      %3497 = vmatpush1.bf16.msra.mxu0 0
      %3498 = vmatprep.subr.bf16.mxu0 0
      %3499 = vmatpush1.bf16.msra.mxu0 0
      %3500 = vmatprep.subr.bf16.mxu0 0
      %3501 = vmatpush1.bf16.msra.mxu0 0
      %3502 = vmatprep.mubr.bf16.mxu0 %v3468
      %3503 = vmatmul.mubr.bf16.gmra.mrb[0].mxu0 %v3410
      %v3504 = vpop.f32.mrb[0].mxu0
      %v3505 = vadd.f32 0.0, %v3504
      %v3506 = vpop.f32.mrb[0].mxu0
      %v3507 = vpop.f32.mrb[0].mxu0
      %v3508 = vpop.f32.mrb[0].mxu0
      %3509 = vdwg.mxu0
      %v3510 = vadd.f32 %v3390, %v3505
      %s3511 = scalar_lea.vmem %s5, 288
      %v3512 = vld [vmem:[%s3511] sm:$0xf]
      %v3513 = vld [vmem:[%s3511 + $0x4] sm:$0xf]
      %v3514 = vld [vmem:[%s3511 + $0x8] sm:$0xf]
      %v3515 = vld [vmem:[%s3511 + $0xc] sm:$0xf]
      %v3516 = vld [vmem:[%s3511 + $0x10] sm:$0xf]
      %v3517 = vld [vmem:[%s3511 + $0x14] sm:$0xf]
      %v3518 = vld [vmem:[%s3511 + $0x18] sm:$0xf]
      %v3519 = vld [vmem:[%s3511 + $0x1c] sm:$0xf]
      %v3520 = vld [vmem:[%s3511 + $0x20] sm:$0xf]
      %v3521 = vld [vmem:[%s3511 + $0x24] sm:$0xf]
      %v3522 = vld [vmem:[%s3511 + $0x28] sm:$0xf]
      %v3523 = vld [vmem:[%s3511 + $0x2c] sm:$0xf]
      %v3524 = vld [vmem:[%s3511 + $0x30] sm:$0xf]
      %v3525 = vld [vmem:[%s3511 + $0x34] sm:$0xf]
      %v3526 = vld [vmem:[%s3511 + $0x38] sm:$0xf]
      %v3527 = vld [vmem:[%s3511 + $0x3c] sm:$0xf]
      %v3528 = vld [vmem:[%s3511 + $0x40] sm:$0xf]
      %v3529 = vld [vmem:[%s3511 + $0x44] sm:$0xf]
      %v3530 = vrot.slane %v3030, 2
      %v3531 = vrot.slane %v3031, 2
      %v3551 = vunpack.c.l.b16 %v3512
      %v3552 = vunpack.c.l.b16 %v3513
      %v3553 = vunpack.c.l.b16 %v3514
      %v3554 = vunpack.c.l.b16 %v3515
      %v3555 = vunpack.c.l.b16 %v3516
      %v3556 = vunpack.c.l.b16 %v3517
      %v3557 = vunpack.c.l.b16 %v3518
      %v3558 = vunpack.c.l.b16 %v3519
      %v3559 = vunpack.c.l.b16 %v3520
      %v3560 = vunpack.c.l.b16 %v3521
      %v3561 = vunpack.c.l.b16 %v3522
      %v3562 = vunpack.c.l.b16 %v3523
      %v3563 = vunpack.c.l.b16 %v3524
      %v3564 = vunpack.c.l.b16 %v3525
      %v3565 = vunpack.c.l.b16 %v3526
      %v3566 = vunpack.c.l.b16 %v3527
      %v3567 = vunpack.c.l.b16 %v3528
      %v3568 = vunpack.c.l.b16 %v3529
      %v3569 = vpack.c.b16 %v3552, %v3551
      %v3570 = vpack.c.b16 %v3554, %v3553
      %v3571 = vpack.c.b16 %v3556, %v3555
      %v3572 = vpack.c.b16 %v3558, %v3557
      %v3573 = vpack.c.b16 %v3560, %v3559
      %v3574 = vpack.c.b16 %v3562, %v3561
      %v3575 = vpack.c.b16 %v3564, %v3563
      %v3576 = vpack.c.b16 %v3566, %v3565
      %v3577 = vpack.c.b16 %v3568, %v3567
      %v3588 = vsel %vm433, %v3531, 0
      %3590 = vmatprep.subr.bf16.mxu0 0
      %3591 = vmatpush1.bf16.msra.mxu0 %v3569
      %3592 = vmatprep.subr.bf16.mxu0 0
      %3593 = vmatpush1.bf16.msra.mxu0 %v3570
      %3594 = vmatprep.subr.bf16.mxu0 0
      %3595 = vmatpush1.bf16.msra.mxu0 %v3571
      %3596 = vmatprep.subr.bf16.mxu0 0
      %3597 = vmatpush1.bf16.msra.mxu0 %v3572
      %3598 = vmatprep.subr.bf16.mxu0 0
      %3599 = vmatpush1.bf16.msra.mxu0 %v3573
      %3600 = vmatprep.subr.bf16.mxu0 0
      %3601 = vmatpush1.bf16.msra.mxu0 %v3574
      %3602 = vmatprep.subr.bf16.mxu0 0
      %3603 = vmatpush1.bf16.msra.mxu0 %v3575
      %3604 = vmatprep.subr.bf16.mxu0 0
      %3605 = vmatpush1.bf16.msra.mxu0 %v3576
      %3606 = vmatprep.subr.bf16.mxu0 0
      %3607 = vmatpush1.bf16.msra.mxu0 %v3577
      %3608 = vmatprep.subr.bf16.mxu0 0
      %3609 = vmatpush1.bf16.msra.mxu0 0
      %3610 = vmatprep.subr.bf16.mxu0 0
      %3611 = vmatpush1.bf16.msra.mxu0 0
      %3612 = vmatprep.subr.bf16.mxu0 0
      %3613 = vmatpush1.bf16.msra.mxu0 0
      %3614 = vmatprep.subr.bf16.mxu0 0
      %3615 = vmatpush1.bf16.msra.mxu0 0
      %3616 = vmatprep.subr.bf16.mxu0 0
      %3617 = vmatpush1.bf16.msra.mxu0 0
      %3618 = vmatprep.subr.bf16.mxu0 0
      %3619 = vmatpush1.bf16.msra.mxu0 0
      %3620 = vmatprep.subr.bf16.mxu0 0
      %3621 = vmatpush1.bf16.msra.mxu0 0
      %3622 = vmatprep.mubr.bf16.mxu0 %v3588
      %3623 = vmatmul.mubr.bf16.gmra.mrb[0].mxu0 %v3530
      %v3624 = vpop.f32.mrb[0].mxu0
      %v3625 = vadd.f32 0.0, %v3624
      %v3626 = vpop.f32.mrb[0].mxu0
      %v3627 = vpop.f32.mrb[0].mxu0
      %v3628 = vpop.f32.mrb[0].mxu0
      %3629 = vdwg.mxu0
      %v3630 = vadd.f32 %v3510, %v3625
      %s3631 = scalar_lea.vmem %s5, 360
      %v3632 = vld [vmem:[%s3631] sm:$0xf]
      %v3633 = vld [vmem:[%s3631 + $0x4] sm:$0xf]
      %v3634 = vld [vmem:[%s3631 + $0x8] sm:$0xf]
      %v3635 = vld [vmem:[%s3631 + $0xc] sm:$0xf]
      %v3636 = vld [vmem:[%s3631 + $0x10] sm:$0xf]
      %v3637 = vld [vmem:[%s3631 + $0x14] sm:$0xf]
      %v3638 = vld [vmem:[%s3631 + $0x18] sm:$0xf]
      %v3639 = vld [vmem:[%s3631 + $0x1c] sm:$0xf]
      %v3640 = vld [vmem:[%s3631 + $0x20] sm:$0xf]
      %v3641 = vld [vmem:[%s3631 + $0x24] sm:$0xf]
      %v3642 = vld [vmem:[%s3631 + $0x28] sm:$0xf]
      %v3643 = vld [vmem:[%s3631 + $0x2c] sm:$0xf]
      %v3644 = vld [vmem:[%s3631 + $0x30] sm:$0xf]
      %v3645 = vld [vmem:[%s3631 + $0x34] sm:$0xf]
      %v3646 = vld [vmem:[%s3631 + $0x38] sm:$0xf]
      %v3647 = vld [vmem:[%s3631 + $0x3c] sm:$0xf]
      %v3648 = vld [vmem:[%s3631 + $0x40] sm:$0xf]
      %v3649 = vld [vmem:[%s3631 + $0x44] sm:$0xf]
      %v3650 = vrot.slane %v3070, 2
      %v3651 = vrot.slane %v3073, 2
      %v3671 = vunpack.c.l.b16 %v3632
      %v3672 = vunpack.c.l.b16 %v3633
      %v3673 = vunpack.c.l.b16 %v3634
      %v3674 = vunpack.c.l.b16 %v3635
      %v3675 = vunpack.c.l.b16 %v3636
      %v3676 = vunpack.c.l.b16 %v3637
      %v3677 = vunpack.c.l.b16 %v3638
      %v3678 = vunpack.c.l.b16 %v3639
      %v3679 = vunpack.c.l.b16 %v3640
      %v3680 = vunpack.c.l.b16 %v3641
      %v3681 = vunpack.c.l.b16 %v3642
      %v3682 = vunpack.c.l.b16 %v3643
      %v3683 = vunpack.c.l.b16 %v3644
      %v3684 = vunpack.c.l.b16 %v3645
      %v3685 = vunpack.c.l.b16 %v3646
      %v3686 = vunpack.c.l.b16 %v3647
      %v3687 = vunpack.c.l.b16 %v3648
      %v3688 = vunpack.c.l.b16 %v3649
      %v3689 = vpack.c.b16 %v3672, %v3671
      %v3690 = vpack.c.b16 %v3674, %v3673
      %v3691 = vpack.c.b16 %v3676, %v3675
      %v3692 = vpack.c.b16 %v3678, %v3677
      %v3693 = vpack.c.b16 %v3680, %v3679
      %v3694 = vpack.c.b16 %v3682, %v3681
      %v3695 = vpack.c.b16 %v3684, %v3683
      %v3696 = vpack.c.b16 %v3686, %v3685
      %v3697 = vpack.c.b16 %v3688, %v3687
      %v3708 = vsel %vm433, %v3651, 0
      %3710 = vmatprep.subr.bf16.mxu0 0
      %3711 = vmatpush1.bf16.msra.mxu0 %v3689
      %3712 = vmatprep.subr.bf16.mxu0 0
      %3713 = vmatpush1.bf16.msra.mxu0 %v3690
      %3714 = vmatprep.subr.bf16.mxu0 0
      %3715 = vmatpush1.bf16.msra.mxu0 %v3691
      %3716 = vmatprep.subr.bf16.mxu0 0
      %3717 = vmatpush1.bf16.msra.mxu0 %v3692
      %3718 = vmatprep.subr.bf16.mxu0 0
      %3719 = vmatpush1.bf16.msra.mxu0 %v3693
      %3720 = vmatprep.subr.bf16.mxu0 0
      %3721 = vmatpush1.bf16.msra.mxu0 %v3694
      %3722 = vmatprep.subr.bf16.mxu0 0
      %3723 = vmatpush1.bf16.msra.mxu0 %v3695
      %3724 = vmatprep.subr.bf16.mxu0 0
      %3725 = vmatpush1.bf16.msra.mxu0 %v3696
      %3726 = vmatprep.subr.bf16.mxu0 0
      %3727 = vmatpush1.bf16.msra.mxu0 %v3697
      %3728 = vmatprep.subr.bf16.mxu0 0
      %3729 = vmatpush1.bf16.msra.mxu0 0
      %3730 = vmatprep.subr.bf16.mxu0 0
      %3731 = vmatpush1.bf16.msra.mxu0 0
      %3732 = vmatprep.subr.bf16.mxu0 0
      %3733 = vmatpush1.bf16.msra.mxu0 0
      %3734 = vmatprep.subr.bf16.mxu0 0
      %3735 = vmatpush1.bf16.msra.mxu0 0
      %3736 = vmatprep.subr.bf16.mxu0 0
      %3737 = vmatpush1.bf16.msra.mxu0 0
      %3738 = vmatprep.subr.bf16.mxu0 0
      %3739 = vmatpush1.bf16.msra.mxu0 0
      %3740 = vmatprep.subr.bf16.mxu0 0
      %3741 = vmatpush1.bf16.msra.mxu0 0
      %3742 = vmatprep.mubr.bf16.mxu0 %v3708
      %3743 = vmatmul.mubr.bf16.gmra.mrb[0].mxu0 %v3650
      %v3744 = vpop.f32.mrb[0].mxu0
      %v3745 = vadd.f32 0.0, %v3744
      %v3746 = vpop.f32.mrb[0].mxu0
      %v3747 = vpop.f32.mrb[0].mxu0
      %v3748 = vpop.f32.mrb[0].mxu0
      %3749 = vdwg.mxu0
      %v3750 = vadd.f32 %v3630, %v3745
      %s3751 = scalar_lea.vmem %s5, 432
      %v3752 = vld [vmem:[%s3751] sm:$0xf]
      %v3753 = vld [vmem:[%s3751 + $0x4] sm:$0xf]
      %v3754 = vld [vmem:[%s3751 + $0x8] sm:$0xf]
      %v3755 = vld [vmem:[%s3751 + $0xc] sm:$0xf]
      %v3756 = vld [vmem:[%s3751 + $0x10] sm:$0xf]
      %v3757 = vld [vmem:[%s3751 + $0x14] sm:$0xf]
      %v3758 = vld [vmem:[%s3751 + $0x18] sm:$0xf]
      %v3759 = vld [vmem:[%s3751 + $0x1c] sm:$0xf]
      %v3760 = vld [vmem:[%s3751 + $0x20] sm:$0xf]
      %v3761 = vld [vmem:[%s3751 + $0x24] sm:$0xf]
      %v3762 = vld [vmem:[%s3751 + $0x28] sm:$0xf]
      %v3763 = vld [vmem:[%s3751 + $0x2c] sm:$0xf]
      %v3764 = vld [vmem:[%s3751 + $0x30] sm:$0xf]
      %v3765 = vld [vmem:[%s3751 + $0x34] sm:$0xf]
      %v3766 = vld [vmem:[%s3751 + $0x38] sm:$0xf]
      %v3767 = vld [vmem:[%s3751 + $0x3c] sm:$0xf]
      %v3768 = vld [vmem:[%s3751 + $0x40] sm:$0xf]
      %v3769 = vld [vmem:[%s3751 + $0x44] sm:$0xf]
      %v3770 = vrot.slane %v3030, 3
      %v3771 = vrot.slane %v3031, 3
      %v3791 = vunpack.c.l.b16 %v3752
      %v3792 = vunpack.c.l.b16 %v3753
      %v3793 = vunpack.c.l.b16 %v3754
      %v3794 = vunpack.c.l.b16 %v3755
      %v3795 = vunpack.c.l.b16 %v3756
      %v3796 = vunpack.c.l.b16 %v3757
      %v3797 = vunpack.c.l.b16 %v3758
      %v3798 = vunpack.c.l.b16 %v3759
      %v3799 = vunpack.c.l.b16 %v3760
      %v3800 = vunpack.c.l.b16 %v3761
      %v3801 = vunpack.c.l.b16 %v3762
      %v3802 = vunpack.c.l.b16 %v3763
      %v3803 = vunpack.c.l.b16 %v3764
      %v3804 = vunpack.c.l.b16 %v3765
      %v3805 = vunpack.c.l.b16 %v3766
      %v3806 = vunpack.c.l.b16 %v3767
      %v3807 = vunpack.c.l.b16 %v3768
      %v3808 = vunpack.c.l.b16 %v3769
      %v3809 = vpack.c.b16 %v3792, %v3791
      %v3810 = vpack.c.b16 %v3794, %v3793
      %v3811 = vpack.c.b16 %v3796, %v3795
      %v3812 = vpack.c.b16 %v3798, %v3797
      %v3813 = vpack.c.b16 %v3800, %v3799
      %v3814 = vpack.c.b16 %v3802, %v3801
      %v3815 = vpack.c.b16 %v3804, %v3803
      %v3816 = vpack.c.b16 %v3806, %v3805
      %v3817 = vpack.c.b16 %v3808, %v3807
      %v3828 = vsel %vm433, %v3771, 0
      %3830 = vmatprep.subr.bf16.mxu0 0
      %3831 = vmatpush1.bf16.msra.mxu0 %v3809
      %3832 = vmatprep.subr.bf16.mxu0 0
      %3833 = vmatpush1.bf16.msra.mxu0 %v3810
      %3834 = vmatprep.subr.bf16.mxu0 0
      %3835 = vmatpush1.bf16.msra.mxu0 %v3811
      %3836 = vmatprep.subr.bf16.mxu0 0
      %3837 = vmatpush1.bf16.msra.mxu0 %v3812
      %3838 = vmatprep.subr.bf16.mxu0 0
      %3839 = vmatpush1.bf16.msra.mxu0 %v3813
      %3840 = vmatprep.subr.bf16.mxu0 0
      %3841 = vmatpush1.bf16.msra.mxu0 %v3814
      %3842 = vmatprep.subr.bf16.mxu0 0
      %3843 = vmatpush1.bf16.msra.mxu0 %v3815
      %3844 = vmatprep.subr.bf16.mxu0 0
      %3845 = vmatpush1.bf16.msra.mxu0 %v3816
      %3846 = vmatprep.subr.bf16.mxu0 0
      %3847 = vmatpush1.bf16.msra.mxu0 %v3817
      %3848 = vmatprep.subr.bf16.mxu0 0
      %3849 = vmatpush1.bf16.msra.mxu0 0
      %3850 = vmatprep.subr.bf16.mxu0 0
      %3851 = vmatpush1.bf16.msra.mxu0 0
      %3852 = vmatprep.subr.bf16.mxu0 0
      %3853 = vmatpush1.bf16.msra.mxu0 0
      %3854 = vmatprep.subr.bf16.mxu0 0
      %3855 = vmatpush1.bf16.msra.mxu0 0
      %3856 = vmatprep.subr.bf16.mxu0 0
      %3857 = vmatpush1.bf16.msra.mxu0 0
      %3858 = vmatprep.subr.bf16.mxu0 0
      %3859 = vmatpush1.bf16.msra.mxu0 0
      %3860 = vmatprep.subr.bf16.mxu0 0
      %3861 = vmatpush1.bf16.msra.mxu0 0
      %3862 = vmatprep.mubr.bf16.mxu0 %v3828
      %3863 = vmatmul.mubr.bf16.gmra.mrb[0].mxu0 %v3770
      %v3864 = vpop.f32.mrb[0].mxu0
      %v3865 = vadd.f32 0.0, %v3864
      %v3866 = vpop.f32.mrb[0].mxu0
      %v3867 = vpop.f32.mrb[0].mxu0
      %v3868 = vpop.f32.mrb[0].mxu0
      %3869 = vdwg.mxu0
      %v3870 = vadd.f32 %v3750, %v3865
      %s3871 = scalar_lea.vmem %s5, 504
      %v3872 = vld [vmem:[%s3871] sm:$0xf]
      %v3873 = vld [vmem:[%s3871 + $0x4] sm:$0xf]
      %v3874 = vld [vmem:[%s3871 + $0x8] sm:$0xf]
      %v3875 = vld [vmem:[%s3871 + $0xc] sm:$0xf]
      %v3876 = vld [vmem:[%s3871 + $0x10] sm:$0xf]
      %v3877 = vld [vmem:[%s3871 + $0x14] sm:$0xf]
      %v3878 = vld [vmem:[%s3871 + $0x18] sm:$0xf]
      %v3879 = vld [vmem:[%s3871 + $0x1c] sm:$0xf]
      %v3880 = vld [vmem:[%s3871 + $0x20] sm:$0xf]
      %v3881 = vld [vmem:[%s3871 + $0x24] sm:$0xf]
      %v3882 = vld [vmem:[%s3871 + $0x28] sm:$0xf]
      %v3883 = vld [vmem:[%s3871 + $0x2c] sm:$0xf]
      %v3884 = vld [vmem:[%s3871 + $0x30] sm:$0xf]
      %v3885 = vld [vmem:[%s3871 + $0x34] sm:$0xf]
      %v3886 = vld [vmem:[%s3871 + $0x38] sm:$0xf]
      %v3887 = vld [vmem:[%s3871 + $0x3c] sm:$0xf]
      %v3888 = vld [vmem:[%s3871 + $0x40] sm:$0xf]
      %v3889 = vld [vmem:[%s3871 + $0x44] sm:$0xf]
      %v3890 = vrot.slane %v3070, 3
      %v3891 = vrot.slane %v3073, 3
      %v3911 = vunpack.c.l.b16 %v3872
      %v3912 = vunpack.c.l.b16 %v3873
      %v3913 = vunpack.c.l.b16 %v3874
      %v3914 = vunpack.c.l.b16 %v3875
      %v3915 = vunpack.c.l.b16 %v3876
      %v3916 = vunpack.c.l.b16 %v3877
      %v3917 = vunpack.c.l.b16 %v3878
      %v3918 = vunpack.c.l.b16 %v3879
      %v3919 = vunpack.c.l.b16 %v3880
      %v3920 = vunpack.c.l.b16 %v3881
      %v3921 = vunpack.c.l.b16 %v3882
      %v3922 = vunpack.c.l.b16 %v3883
      %v3923 = vunpack.c.l.b16 %v3884
      %v3924 = vunpack.c.l.b16 %v3885
      %v3925 = vunpack.c.l.b16 %v3886
      %v3926 = vunpack.c.l.b16 %v3887
      %v3927 = vunpack.c.l.b16 %v3888
      %v3928 = vunpack.c.l.b16 %v3889
      %v3929 = vpack.c.b16 %v3912, %v3911
      %v3930 = vpack.c.b16 %v3914, %v3913
      %v3931 = vpack.c.b16 %v3916, %v3915
      %v3932 = vpack.c.b16 %v3918, %v3917
      %v3933 = vpack.c.b16 %v3920, %v3919
      %v3934 = vpack.c.b16 %v3922, %v3921
      %v3935 = vpack.c.b16 %v3924, %v3923
      %v3936 = vpack.c.b16 %v3926, %v3925
      %v3937 = vpack.c.b16 %v3928, %v3927
      %v3948 = vsel %vm433, %v3891, 0
      %3950 = vmatprep.subr.bf16.mxu0 0
      %3951 = vmatpush1.bf16.msra.mxu0 %v3929
      %3952 = vmatprep.subr.bf16.mxu0 0
      %3953 = vmatpush1.bf16.msra.mxu0 %v3930
      %3954 = vmatprep.subr.bf16.mxu0 0
      %3955 = vmatpush1.bf16.msra.mxu0 %v3931
      %3956 = vmatprep.subr.bf16.mxu0 0
      %3957 = vmatpush1.bf16.msra.mxu0 %v3932
      %3958 = vmatprep.subr.bf16.mxu0 0
      %3959 = vmatpush1.bf16.msra.mxu0 %v3933
      %3960 = vmatprep.subr.bf16.mxu0 0
      %3961 = vmatpush1.bf16.msra.mxu0 %v3934
      %3962 = vmatprep.subr.bf16.mxu0 0
      %3963 = vmatpush1.bf16.msra.mxu0 %v3935
      %3964 = vmatprep.subr.bf16.mxu0 0
      %3965 = vmatpush1.bf16.msra.mxu0 %v3936
      %3966 = vmatprep.subr.bf16.mxu0 0
      %3967 = vmatpush1.bf16.msra.mxu0 %v3937
      %3968 = vmatprep.subr.bf16.mxu0 0
      %3969 = vmatpush1.bf16.msra.mxu0 0
      %3970 = vmatprep.subr.bf16.mxu0 0
      %3971 = vmatpush1.bf16.msra.mxu0 0
      %3972 = vmatprep.subr.bf16.mxu0 0
      %3973 = vmatpush1.bf16.msra.mxu0 0
      %3974 = vmatprep.subr.bf16.mxu0 0
      %3975 = vmatpush1.bf16.msra.mxu0 0
      %3976 = vmatprep.subr.bf16.mxu0 0
      %3977 = vmatpush1.bf16.msra.mxu0 0
      %3978 = vmatprep.subr.bf16.mxu0 0
      %3979 = vmatpush1.bf16.msra.mxu0 0
      %3980 = vmatprep.subr.bf16.mxu0 0
      %3981 = vmatpush1.bf16.msra.mxu0 0
      %3982 = vmatprep.mubr.bf16.mxu0 %v3948
      %3983 = vmatmul.mubr.bf16.gmra.mrb[0].mxu0 %v3890
      %v3984 = vpop.f32.mrb[0].mxu0
      %v3985 = vadd.f32 0.0, %v3984
      %v3986 = vpop.f32.mrb[0].mxu0
      %v3987 = vpop.f32.mrb[0].mxu0
      %v3988 = vpop.f32.mrb[0].mxu0
      %3989 = vdwg.mxu0
      %v3990 = vadd.f32 %v3870, %v3985
      %s3991 = scalar_lea.vmem %s5, 576
      %v3992 = vld [vmem:[%s3991] sm:$0xf]
      %v3993 = vld [vmem:[%s3991 + $0x4] sm:$0xf]
      %v3994 = vld [vmem:[%s3991 + $0x8] sm:$0xf]
      %v3995 = vld [vmem:[%s3991 + $0xc] sm:$0xf]
      %v3996 = vld [vmem:[%s3991 + $0x10] sm:$0xf]
      %v3997 = vld [vmem:[%s3991 + $0x14] sm:$0xf]
      %v3998 = vld [vmem:[%s3991 + $0x18] sm:$0xf]
      %v3999 = vld [vmem:[%s3991 + $0x1c] sm:$0xf]
      %v4000 = vld [vmem:[%s3991 + $0x20] sm:$0xf]
      %v4001 = vld [vmem:[%s3991 + $0x24] sm:$0xf]
      %v4002 = vld [vmem:[%s3991 + $0x28] sm:$0xf]
      %v4003 = vld [vmem:[%s3991 + $0x2c] sm:$0xf]
      %v4004 = vld [vmem:[%s3991 + $0x30] sm:$0xf]
      %v4005 = vld [vmem:[%s3991 + $0x34] sm:$0xf]
      %v4006 = vld [vmem:[%s3991 + $0x38] sm:$0xf]
      %v4007 = vld [vmem:[%s3991 + $0x3c] sm:$0xf]
      %v4008 = vld [vmem:[%s3991 + $0x40] sm:$0xf]
      %v4009 = vld [vmem:[%s3991 + $0x44] sm:$0xf]
      %v4010 = vrot.slane %v3030, 4
      %v4011 = vrot.slane %v3031, 4
      %v4031 = vunpack.c.l.b16 %v3992
      %v4032 = vunpack.c.l.b16 %v3993
      %v4033 = vunpack.c.l.b16 %v3994
      %v4034 = vunpack.c.l.b16 %v3995
      %v4035 = vunpack.c.l.b16 %v3996
      %v4036 = vunpack.c.l.b16 %v3997
      %v4037 = vunpack.c.l.b16 %v3998
      %v4038 = vunpack.c.l.b16 %v3999
      %v4039 = vunpack.c.l.b16 %v4000
      %v4040 = vunpack.c.l.b16 %v4001
      %v4041 = vunpack.c.l.b16 %v4002
      %v4042 = vunpack.c.l.b16 %v4003
      %v4043 = vunpack.c.l.b16 %v4004
      %v4044 = vunpack.c.l.b16 %v4005
      %v4045 = vunpack.c.l.b16 %v4006
      %v4046 = vunpack.c.l.b16 %v4007
      %v4047 = vunpack.c.l.b16 %v4008
      %v4048 = vunpack.c.l.b16 %v4009
      %v4049 = vpack.c.b16 %v4032, %v4031
      %v4050 = vpack.c.b16 %v4034, %v4033
      %v4051 = vpack.c.b16 %v4036, %v4035
      %v4052 = vpack.c.b16 %v4038, %v4037
      %v4053 = vpack.c.b16 %v4040, %v4039
      %v4054 = vpack.c.b16 %v4042, %v4041
      %v4055 = vpack.c.b16 %v4044, %v4043
      %v4056 = vpack.c.b16 %v4046, %v4045
      %v4057 = vpack.c.b16 %v4048, %v4047
      %v4068 = vsel %vm433, %v4011, 0
      %4070 = vmatprep.subr.bf16.mxu0 0
      %4071 = vmatpush1.bf16.msra.mxu0 %v4049
      %4072 = vmatprep.subr.bf16.mxu0 0
      %4073 = vmatpush1.bf16.msra.mxu0 %v4050
      %4074 = vmatprep.subr.bf16.mxu0 0
      %4075 = vmatpush1.bf16.msra.mxu0 %v4051
      %4076 = vmatprep.subr.bf16.mxu0 0
      %4077 = vmatpush1.bf16.msra.mxu0 %v4052
      %4078 = vmatprep.subr.bf16.mxu0 0
      %4079 = vmatpush1.bf16.msra.mxu0 %v4053
      %4080 = vmatprep.subr.bf16.mxu0 0
      %4081 = vmatpush1.bf16.msra.mxu0 %v4054
      %4082 = vmatprep.subr.bf16.mxu0 0
      %4083 = vmatpush1.bf16.msra.mxu0 %v4055
      %4084 = vmatprep.subr.bf16.mxu0 0
      %4085 = vmatpush1.bf16.msra.mxu0 %v4056
      %4086 = vmatprep.subr.bf16.mxu0 0
      %4087 = vmatpush1.bf16.msra.mxu0 %v4057
      %4088 = vmatprep.subr.bf16.mxu0 0
      %4089 = vmatpush1.bf16.msra.mxu0 0
      %4090 = vmatprep.subr.bf16.mxu0 0
      %4091 = vmatpush1.bf16.msra.mxu0 0
      %4092 = vmatprep.subr.bf16.mxu0 0
      %4093 = vmatpush1.bf16.msra.mxu0 0
      %4094 = vmatprep.subr.bf16.mxu0 0
      %4095 = vmatpush1.bf16.msra.mxu0 0
      %4096 = vmatprep.subr.bf16.mxu0 0
      %4097 = vmatpush1.bf16.msra.mxu0 0
      %4098 = vmatprep.subr.bf16.mxu0 0
      %4099 = vmatpush1.bf16.msra.mxu0 0
      %4100 = vmatprep.subr.bf16.mxu0 0
      %4101 = vmatpush1.bf16.msra.mxu0 0
      %4102 = vmatprep.mubr.bf16.mxu0 %v4068
      %4103 = vmatmul.mubr.bf16.gmra.mrb[0].mxu0 %v4010
      %v4104 = vpop.f32.mrb[0].mxu0
      %v4105 = vadd.f32 0.0, %v4104
      %v4106 = vpop.f32.mrb[0].mxu0
      %v4107 = vpop.f32.mrb[0].mxu0
      %v4108 = vpop.f32.mrb[0].mxu0
      %4109 = vdwg.mxu0
      %v4110 = vadd.f32 %v3990, %v4105
      %s4111 = scalar_lea.vmem %s5, 648
      %v4112 = vld [vmem:[%s4111] sm:$0xf]
      %v4113 = vld [vmem:[%s4111 + $0x4] sm:$0xf]
      %v4114 = vld [vmem:[%s4111 + $0x8] sm:$0xf]
      %v4115 = vld [vmem:[%s4111 + $0xc] sm:$0xf]
      %v4116 = vld [vmem:[%s4111 + $0x10] sm:$0xf]
      %v4117 = vld [vmem:[%s4111 + $0x14] sm:$0xf]
      %v4118 = vld [vmem:[%s4111 + $0x18] sm:$0xf]
      %v4119 = vld [vmem:[%s4111 + $0x1c] sm:$0xf]
      %v4120 = vld [vmem:[%s4111 + $0x20] sm:$0xf]
      %v4121 = vld [vmem:[%s4111 + $0x24] sm:$0xf]
      %v4122 = vld [vmem:[%s4111 + $0x28] sm:$0xf]
      %v4123 = vld [vmem:[%s4111 + $0x2c] sm:$0xf]
      %v4124 = vld [vmem:[%s4111 + $0x30] sm:$0xf]
      %v4125 = vld [vmem:[%s4111 + $0x34] sm:$0xf]
      %v4126 = vld [vmem:[%s4111 + $0x38] sm:$0xf]
      %v4127 = vld [vmem:[%s4111 + $0x3c] sm:$0xf]
      %v4128 = vld [vmem:[%s4111 + $0x40] sm:$0xf]
      %v4129 = vld [vmem:[%s4111 + $0x44] sm:$0xf]
      %v4130 = vrot.slane %v3070, 4
      %v4131 = vrot.slane %v3073, 4
      %v4151 = vunpack.c.l.b16 %v4112
      %v4152 = vunpack.c.l.b16 %v4113
      %v4153 = vunpack.c.l.b16 %v4114
      %v4154 = vunpack.c.l.b16 %v4115
      %v4155 = vunpack.c.l.b16 %v4116
      %v4156 = vunpack.c.l.b16 %v4117
      %v4157 = vunpack.c.l.b16 %v4118
      %v4158 = vunpack.c.l.b16 %v4119
      %v4159 = vunpack.c.l.b16 %v4120
      %v4160 = vunpack.c.l.b16 %v4121
      %v4161 = vunpack.c.l.b16 %v4122
      %v4162 = vunpack.c.l.b16 %v4123
      %v4163 = vunpack.c.l.b16 %v4124
      %v4164 = vunpack.c.l.b16 %v4125
      %v4165 = vunpack.c.l.b16 %v4126
      %v4166 = vunpack.c.l.b16 %v4127
      %v4167 = vunpack.c.l.b16 %v4128
      %v4168 = vunpack.c.l.b16 %v4129
      %v4169 = vpack.c.b16 %v4152, %v4151
      %v4170 = vpack.c.b16 %v4154, %v4153
      %v4171 = vpack.c.b16 %v4156, %v4155
      %v4172 = vpack.c.b16 %v4158, %v4157
      %v4173 = vpack.c.b16 %v4160, %v4159
      %v4174 = vpack.c.b16 %v4162, %v4161
      %v4175 = vpack.c.b16 %v4164, %v4163
      %v4176 = vpack.c.b16 %v4166, %v4165
      %v4177 = vpack.c.b16 %v4168, %v4167
      %v4188 = vsel %vm433, %v4131, 0
      %4190 = vmatprep.subr.bf16.mxu0 0
      %4191 = vmatpush1.bf16.msra.mxu0 %v4169
      %4192 = vmatprep.subr.bf16.mxu0 0
      %4193 = vmatpush1.bf16.msra.mxu0 %v4170
      %4194 = vmatprep.subr.bf16.mxu0 0
      %4195 = vmatpush1.bf16.msra.mxu0 %v4171
      %4196 = vmatprep.subr.bf16.mxu0 0
      %4197 = vmatpush1.bf16.msra.mxu0 %v4172
      %4198 = vmatprep.subr.bf16.mxu0 0
      %4199 = vmatpush1.bf16.msra.mxu0 %v4173
      %4200 = vmatprep.subr.bf16.mxu0 0
      %4201 = vmatpush1.bf16.msra.mxu0 %v4174
      %4202 = vmatprep.subr.bf16.mxu0 0
      %4203 = vmatpush1.bf16.msra.mxu0 %v4175
      %4204 = vmatprep.subr.bf16.mxu0 0
      %4205 = vmatpush1.bf16.msra.mxu0 %v4176
      %4206 = vmatprep.subr.bf16.mxu0 0
      %4207 = vmatpush1.bf16.msra.mxu0 %v4177
      %4208 = vmatprep.subr.bf16.mxu0 0
      %4209 = vmatpush1.bf16.msra.mxu0 0
      %4210 = vmatprep.subr.bf16.mxu0 0
      %4211 = vmatpush1.bf16.msra.mxu0 0
      %4212 = vmatprep.subr.bf16.mxu0 0
      %4213 = vmatpush1.bf16.msra.mxu0 0
      %4214 = vmatprep.subr.bf16.mxu0 0
      %4215 = vmatpush1.bf16.msra.mxu0 0
      %4216 = vmatprep.subr.bf16.mxu0 0
      %4217 = vmatpush1.bf16.msra.mxu0 0
      %4218 = vmatprep.subr.bf16.mxu0 0
      %4219 = vmatpush1.bf16.msra.mxu0 0
      %4220 = vmatprep.subr.bf16.mxu0 0
      %4221 = vmatpush1.bf16.msra.mxu0 0
      %4222 = vmatprep.mubr.bf16.mxu0 %v4188
      %4223 = vmatmul.mubr.bf16.gmra.mrb[0].mxu0 %v4130
      %v4224 = vpop.f32.mrb[0].mxu0
      %v4225 = vadd.f32 0.0, %v4224
      %v4226 = vpop.f32.mrb[0].mxu0
      %v4227 = vpop.f32.mrb[0].mxu0
      %v4228 = vpop.f32.mrb[0].mxu0
      %4229 = vdwg.mxu0
      %v4230 = vadd.f32 %v4110, %v4225
      %s4231 = scalar_lea.vmem %s5, 720
      %v4232 = vld [vmem:[%s4231] sm:$0xf]
      %v4233 = vld [vmem:[%s4231 + $0x4] sm:$0xf]
      %v4234 = vld [vmem:[%s4231 + $0x8] sm:$0xf]
      %v4235 = vld [vmem:[%s4231 + $0xc] sm:$0xf]
      %v4236 = vld [vmem:[%s4231 + $0x10] sm:$0xf]
      %v4237 = vld [vmem:[%s4231 + $0x14] sm:$0xf]
      %v4238 = vld [vmem:[%s4231 + $0x18] sm:$0xf]
      %v4239 = vld [vmem:[%s4231 + $0x1c] sm:$0xf]
      %v4240 = vld [vmem:[%s4231 + $0x20] sm:$0xf]
      %v4241 = vld [vmem:[%s4231 + $0x24] sm:$0xf]
      %v4242 = vld [vmem:[%s4231 + $0x28] sm:$0xf]
      %v4243 = vld [vmem:[%s4231 + $0x2c] sm:$0xf]
      %v4244 = vld [vmem:[%s4231 + $0x30] sm:$0xf]
      %v4245 = vld [vmem:[%s4231 + $0x34] sm:$0xf]
      %v4246 = vld [vmem:[%s4231 + $0x38] sm:$0xf]
      %v4247 = vld [vmem:[%s4231 + $0x3c] sm:$0xf]
      %v4248 = vld [vmem:[%s4231 + $0x40] sm:$0xf]
      %v4249 = vld [vmem:[%s4231 + $0x44] sm:$0xf]
      %v4250 = vrot.slane %v3030, 5
      %v4251 = vrot.slane %v3031, 5
      %v4271 = vunpack.c.l.b16 %v4232
      %v4272 = vunpack.c.l.b16 %v4233
      %v4273 = vunpack.c.l.b16 %v4234
      %v4274 = vunpack.c.l.b16 %v4235
      %v4275 = vunpack.c.l.b16 %v4236
      %v4276 = vunpack.c.l.b16 %v4237
      %v4277 = vunpack.c.l.b16 %v4238
      %v4278 = vunpack.c.l.b16 %v4239
      %v4279 = vunpack.c.l.b16 %v4240
      %v4280 = vunpack.c.l.b16 %v4241
      %v4281 = vunpack.c.l.b16 %v4242
      %v4282 = vunpack.c.l.b16 %v4243
      %v4283 = vunpack.c.l.b16 %v4244
      %v4284 = vunpack.c.l.b16 %v4245
      %v4285 = vunpack.c.l.b16 %v4246
      %v4286 = vunpack.c.l.b16 %v4247
      %v4287 = vunpack.c.l.b16 %v4248
      %v4288 = vunpack.c.l.b16 %v4249
      %v4289 = vpack.c.b16 %v4272, %v4271
      %v4290 = vpack.c.b16 %v4274, %v4273
      %v4291 = vpack.c.b16 %v4276, %v4275
      %v4292 = vpack.c.b16 %v4278, %v4277
      %v4293 = vpack.c.b16 %v4280, %v4279
      %v4294 = vpack.c.b16 %v4282, %v4281
      %v4295 = vpack.c.b16 %v4284, %v4283
      %v4296 = vpack.c.b16 %v4286, %v4285
      %v4297 = vpack.c.b16 %v4288, %v4287
      %v4308 = vsel %vm433, %v4251, 0
      %4310 = vmatprep.subr.bf16.mxu0 0
      %4311 = vmatpush1.bf16.msra.mxu0 %v4289
      %4312 = vmatprep.subr.bf16.mxu0 0
      %4313 = vmatpush1.bf16.msra.mxu0 %v4290
      %4314 = vmatprep.subr.bf16.mxu0 0
      %4315 = vmatpush1.bf16.msra.mxu0 %v4291
      %4316 = vmatprep.subr.bf16.mxu0 0
      %4317 = vmatpush1.bf16.msra.mxu0 %v4292
      %4318 = vmatprep.subr.bf16.mxu0 0
      %4319 = vmatpush1.bf16.msra.mxu0 %v4293
      %4320 = vmatprep.subr.bf16.mxu0 0
      %4321 = vmatpush1.bf16.msra.mxu0 %v4294
      %4322 = vmatprep.subr.bf16.mxu0 0
      %4323 = vmatpush1.bf16.msra.mxu0 %v4295
      %4324 = vmatprep.subr.bf16.mxu0 0
      %4325 = vmatpush1.bf16.msra.mxu0 %v4296
      %4326 = vmatprep.subr.bf16.mxu0 0
      %4327 = vmatpush1.bf16.msra.mxu0 %v4297
      %4328 = vmatprep.subr.bf16.mxu0 0
      %4329 = vmatpush1.bf16.msra.mxu0 0
      %4330 = vmatprep.subr.bf16.mxu0 0
      %4331 = vmatpush1.bf16.msra.mxu0 0
      %4332 = vmatprep.subr.bf16.mxu0 0
      %4333 = vmatpush1.bf16.msra.mxu0 0
      %4334 = vmatprep.subr.bf16.mxu0 0
      %4335 = vmatpush1.bf16.msra.mxu0 0
      %4336 = vmatprep.subr.bf16.mxu0 0
      %4337 = vmatpush1.bf16.msra.mxu0 0
      %4338 = vmatprep.subr.bf16.mxu0 0
      %4339 = vmatpush1.bf16.msra.mxu0 0
      %4340 = vmatprep.subr.bf16.mxu0 0
      %4341 = vmatpush1.bf16.msra.mxu0 0
      %4342 = vmatprep.mubr.bf16.mxu0 %v4308
      %4343 = vmatmul.mubr.bf16.gmra.mrb[0].mxu0 %v4250
      %v4344 = vpop.f32.mrb[0].mxu0
      %v4345 = vadd.f32 0.0, %v4344
      %v4346 = vpop.f32.mrb[0].mxu0
      %v4347 = vpop.f32.mrb[0].mxu0
      %v4348 = vpop.f32.mrb[0].mxu0
      %4349 = vdwg.mxu0
      %v4350 = vadd.f32 %v4230, %v4345
      %s4351 = scalar_lea.vmem %s5, 792
      %v4352 = vld [vmem:[%s4351] sm:$0xf]
      %v4353 = vld [vmem:[%s4351 + $0x4] sm:$0xf]
      %v4354 = vld [vmem:[%s4351 + $0x8] sm:$0xf]
      %v4355 = vld [vmem:[%s4351 + $0xc] sm:$0xf]
      %v4356 = vld [vmem:[%s4351 + $0x10] sm:$0xf]
      %v4357 = vld [vmem:[%s4351 + $0x14] sm:$0xf]
      %v4358 = vld [vmem:[%s4351 + $0x18] sm:$0xf]
      %v4359 = vld [vmem:[%s4351 + $0x1c] sm:$0xf]
      %v4360 = vld [vmem:[%s4351 + $0x20] sm:$0xf]
      %v4361 = vld [vmem:[%s4351 + $0x24] sm:$0xf]
      %v4362 = vld [vmem:[%s4351 + $0x28] sm:$0xf]
      %v4363 = vld [vmem:[%s4351 + $0x2c] sm:$0xf]
      %v4364 = vld [vmem:[%s4351 + $0x30] sm:$0xf]
      %v4365 = vld [vmem:[%s4351 + $0x34] sm:$0xf]
      %v4366 = vld [vmem:[%s4351 + $0x38] sm:$0xf]
      %v4367 = vld [vmem:[%s4351 + $0x3c] sm:$0xf]
      %v4368 = vld [vmem:[%s4351 + $0x40] sm:$0xf]
      %v4369 = vld [vmem:[%s4351 + $0x44] sm:$0xf]
      %v4370 = vrot.slane %v3070, 5
      %v4371 = vrot.slane %v3073, 5
      %v4391 = vunpack.c.l.b16 %v4352
      %v4392 = vunpack.c.l.b16 %v4353
      %v4393 = vunpack.c.l.b16 %v4354
      %v4394 = vunpack.c.l.b16 %v4355
      %v4395 = vunpack.c.l.b16 %v4356
      %v4396 = vunpack.c.l.b16 %v4357
      %v4397 = vunpack.c.l.b16 %v4358
      %v4398 = vunpack.c.l.b16 %v4359
      %v4399 = vunpack.c.l.b16 %v4360
      %v4400 = vunpack.c.l.b16 %v4361
      %v4401 = vunpack.c.l.b16 %v4362
      %v4402 = vunpack.c.l.b16 %v4363
      %v4403 = vunpack.c.l.b16 %v4364
      %v4404 = vunpack.c.l.b16 %v4365
      %v4405 = vunpack.c.l.b16 %v4366
      %v4406 = vunpack.c.l.b16 %v4367
      %v4407 = vunpack.c.l.b16 %v4368
      %v4408 = vunpack.c.l.b16 %v4369
      %v4409 = vpack.c.b16 %v4392, %v4391
      %v4410 = vpack.c.b16 %v4394, %v4393
      %v4411 = vpack.c.b16 %v4396, %v4395
      %v4412 = vpack.c.b16 %v4398, %v4397
      %v4413 = vpack.c.b16 %v4400, %v4399
      %v4414 = vpack.c.b16 %v4402, %v4401
      %v4415 = vpack.c.b16 %v4404, %v4403
      %v4416 = vpack.c.b16 %v4406, %v4405
      %v4417 = vpack.c.b16 %v4408, %v4407
      %v4428 = vsel %vm433, %v4371, 0
      %4430 = vmatprep.subr.bf16.mxu0 0
      %4431 = vmatpush1.bf16.msra.mxu0 %v4409
      %4432 = vmatprep.subr.bf16.mxu0 0
      %4433 = vmatpush1.bf16.msra.mxu0 %v4410
      %4434 = vmatprep.subr.bf16.mxu0 0
      %4435 = vmatpush1.bf16.msra.mxu0 %v4411
      %4436 = vmatprep.subr.bf16.mxu0 0
      %4437 = vmatpush1.bf16.msra.mxu0 %v4412
      %4438 = vmatprep.subr.bf16.mxu0 0
      %4439 = vmatpush1.bf16.msra.mxu0 %v4413
      %4440 = vmatprep.subr.bf16.mxu0 0
      %4441 = vmatpush1.bf16.msra.mxu0 %v4414
      %4442 = vmatprep.subr.bf16.mxu0 0
      %4443 = vmatpush1.bf16.msra.mxu0 %v4415
      %4444 = vmatprep.subr.bf16.mxu0 0
      %4445 = vmatpush1.bf16.msra.mxu0 %v4416
      %4446 = vmatprep.subr.bf16.mxu0 0
      %4447 = vmatpush1.bf16.msra.mxu0 %v4417
      %4448 = vmatprep.subr.bf16.mxu0 0
      %4449 = vmatpush1.bf16.msra.mxu0 0
      %4450 = vmatprep.subr.bf16.mxu0 0
      %4451 = vmatpush1.bf16.msra.mxu0 0
      %4452 = vmatprep.subr.bf16.mxu0 0
      %4453 = vmatpush1.bf16.msra.mxu0 0
      %4454 = vmatprep.subr.bf16.mxu0 0
      %4455 = vmatpush1.bf16.msra.mxu0 0
      %4456 = vmatprep.subr.bf16.mxu0 0
      %4457 = vmatpush1.bf16.msra.mxu0 0
      %4458 = vmatprep.subr.bf16.mxu0 0
      %4459 = vmatpush1.bf16.msra.mxu0 0
      %4460 = vmatprep.subr.bf16.mxu0 0
      %4461 = vmatpush1.bf16.msra.mxu0 0
      %4462 = vmatprep.mubr.bf16.mxu0 %v4428
      %4463 = vmatmul.mubr.bf16.gmra.mrb[0].mxu0 %v4370
      %v4464 = vpop.f32.mrb[0].mxu0
      %v4465 = vadd.f32 0.0, %v4464
      %v4466 = vpop.f32.mrb[0].mxu0
      %v4467 = vpop.f32.mrb[0].mxu0
      %v4468 = vpop.f32.mrb[0].mxu0
      %4469 = vdwg.mxu0
      %v4470 = vadd.f32 %v4350, %v4465
      %s4471 = scalar_lea.vmem %s5, 864
      %v4472 = vld [vmem:[%s4471] sm:$0xf]
      %v4473 = vld [vmem:[%s4471 + $0x4] sm:$0xf]
      %v4474 = vld [vmem:[%s4471 + $0x8] sm:$0xf]
      %v4475 = vld [vmem:[%s4471 + $0xc] sm:$0xf]
      %v4476 = vld [vmem:[%s4471 + $0x10] sm:$0xf]
      %v4477 = vld [vmem:[%s4471 + $0x14] sm:$0xf]
      %v4478 = vld [vmem:[%s4471 + $0x18] sm:$0xf]
      %v4479 = vld [vmem:[%s4471 + $0x1c] sm:$0xf]
      %v4480 = vld [vmem:[%s4471 + $0x20] sm:$0xf]
      %v4481 = vld [vmem:[%s4471 + $0x24] sm:$0xf]
      %v4482 = vld [vmem:[%s4471 + $0x28] sm:$0xf]
      %v4483 = vld [vmem:[%s4471 + $0x2c] sm:$0xf]
      %v4484 = vld [vmem:[%s4471 + $0x30] sm:$0xf]
      %v4485 = vld [vmem:[%s4471 + $0x34] sm:$0xf]
      %v4486 = vld [vmem:[%s4471 + $0x38] sm:$0xf]
      %v4487 = vld [vmem:[%s4471 + $0x3c] sm:$0xf]
      %v4488 = vld [vmem:[%s4471 + $0x40] sm:$0xf]
      %v4489 = vld [vmem:[%s4471 + $0x44] sm:$0xf]
      %v4490 = vrot.slane %v3030, 6
      %v4491 = vrot.slane %v3031, 6
      %v4511 = vunpack.c.l.b16 %v4472
      %v4512 = vunpack.c.l.b16 %v4473
      %v4513 = vunpack.c.l.b16 %v4474
      %v4514 = vunpack.c.l.b16 %v4475
      %v4515 = vunpack.c.l.b16 %v4476
      %v4516 = vunpack.c.l.b16 %v4477
      %v4517 = vunpack.c.l.b16 %v4478
      %v4518 = vunpack.c.l.b16 %v4479
      %v4519 = vunpack.c.l.b16 %v4480
      %v4520 = vunpack.c.l.b16 %v4481
      %v4521 = vunpack.c.l.b16 %v4482
      %v4522 = vunpack.c.l.b16 %v4483
      %v4523 = vunpack.c.l.b16 %v4484
      %v4524 = vunpack.c.l.b16 %v4485
      %v4525 = vunpack.c.l.b16 %v4486
      %v4526 = vunpack.c.l.b16 %v4487
      %v4527 = vunpack.c.l.b16 %v4488
      %v4528 = vunpack.c.l.b16 %v4489
      %v4529 = vpack.c.b16 %v4512, %v4511
      %v4530 = vpack.c.b16 %v4514, %v4513
      %v4531 = vpack.c.b16 %v4516, %v4515
      %v4532 = vpack.c.b16 %v4518, %v4517
      %v4533 = vpack.c.b16 %v4520, %v4519
      %v4534 = vpack.c.b16 %v4522, %v4521
      %v4535 = vpack.c.b16 %v4524, %v4523
      %v4536 = vpack.c.b16 %v4526, %v4525
      %v4537 = vpack.c.b16 %v4528, %v4527
      %v4548 = vsel %vm433, %v4491, 0
      %4550 = vmatprep.subr.bf16.mxu0 0
      %4551 = vmatpush1.bf16.msra.mxu0 %v4529
      %4552 = vmatprep.subr.bf16.mxu0 0
      %4553 = vmatpush1.bf16.msra.mxu0 %v4530
      %4554 = vmatprep.subr.bf16.mxu0 0
      %4555 = vmatpush1.bf16.msra.mxu0 %v4531
      %4556 = vmatprep.subr.bf16.mxu0 0
      %4557 = vmatpush1.bf16.msra.mxu0 %v4532
      %4558 = vmatprep.subr.bf16.mxu0 0
      %4559 = vmatpush1.bf16.msra.mxu0 %v4533
      %4560 = vmatprep.subr.bf16.mxu0 0
      %4561 = vmatpush1.bf16.msra.mxu0 %v4534
      %4562 = vmatprep.subr.bf16.mxu0 0
      %4563 = vmatpush1.bf16.msra.mxu0 %v4535
      %4564 = vmatprep.subr.bf16.mxu0 0
      %4565 = vmatpush1.bf16.msra.mxu0 %v4536
      %4566 = vmatprep.subr.bf16.mxu0 0
      %4567 = vmatpush1.bf16.msra.mxu0 %v4537
      %4568 = vmatprep.subr.bf16.mxu0 0
      %4569 = vmatpush1.bf16.msra.mxu0 0
      %4570 = vmatprep.subr.bf16.mxu0 0
      %4571 = vmatpush1.bf16.msra.mxu0 0
      %4572 = vmatprep.subr.bf16.mxu0 0
      %4573 = vmatpush1.bf16.msra.mxu0 0
      %4574 = vmatprep.subr.bf16.mxu0 0
      %4575 = vmatpush1.bf16.msra.mxu0 0
      %4576 = vmatprep.subr.bf16.mxu0 0
      %4577 = vmatpush1.bf16.msra.mxu0 0
      %4578 = vmatprep.subr.bf16.mxu0 0
      %4579 = vmatpush1.bf16.msra.mxu0 0
      %4580 = vmatprep.subr.bf16.mxu0 0
      %4581 = vmatpush1.bf16.msra.mxu0 0
      %4582 = vmatprep.mubr.bf16.mxu0 %v4548
      %4583 = vmatmul.mubr.bf16.gmra.mrb[0].mxu0 %v4490
      %v4584 = vpop.f32.mrb[0].mxu0
      %v4585 = vadd.f32 0.0, %v4584
      %v4586 = vpop.f32.mrb[0].mxu0
      %v4587 = vpop.f32.mrb[0].mxu0
      %v4588 = vpop.f32.mrb[0].mxu0
      %4589 = vdwg.mxu0
      %v4590 = vadd.f32 %v4470, %v4585
      %s4591 = scalar_lea.vmem %s5, 936
      %v4592 = vld [vmem:[%s4591] sm:$0xf]
      %v4593 = vld [vmem:[%s4591 + $0x4] sm:$0xf]
      %v4594 = vld [vmem:[%s4591 + $0x8] sm:$0xf]
      %v4595 = vld [vmem:[%s4591 + $0xc] sm:$0xf]
      %v4596 = vld [vmem:[%s4591 + $0x10] sm:$0xf]
      %v4597 = vld [vmem:[%s4591 + $0x14] sm:$0xf]
      %v4598 = vld [vmem:[%s4591 + $0x18] sm:$0xf]
      %v4599 = vld [vmem:[%s4591 + $0x1c] sm:$0xf]
      %v4600 = vld [vmem:[%s4591 + $0x20] sm:$0xf]
      %v4601 = vld [vmem:[%s4591 + $0x24] sm:$0xf]
      %v4602 = vld [vmem:[%s4591 + $0x28] sm:$0xf]
      %v4603 = vld [vmem:[%s4591 + $0x2c] sm:$0xf]
      %v4604 = vld [vmem:[%s4591 + $0x30] sm:$0xf]
      %v4605 = vld [vmem:[%s4591 + $0x34] sm:$0xf]
      %v4606 = vld [vmem:[%s4591 + $0x38] sm:$0xf]
      %v4607 = vld [vmem:[%s4591 + $0x3c] sm:$0xf]
      %v4608 = vld [vmem:[%s4591 + $0x40] sm:$0xf]
      %v4609 = vld [vmem:[%s4591 + $0x44] sm:$0xf]
      %v4610 = vrot.slane %v3070, 6
      %v4611 = vrot.slane %v3073, 6
      %v4631 = vunpack.c.l.b16 %v4592
      %v4632 = vunpack.c.l.b16 %v4593
      %v4633 = vunpack.c.l.b16 %v4594
      %v4634 = vunpack.c.l.b16 %v4595
      %v4635 = vunpack.c.l.b16 %v4596
      %v4636 = vunpack.c.l.b16 %v4597
      %v4637 = vunpack.c.l.b16 %v4598
      %v4638 = vunpack.c.l.b16 %v4599
      %v4639 = vunpack.c.l.b16 %v4600
      %v4640 = vunpack.c.l.b16 %v4601
      %v4641 = vunpack.c.l.b16 %v4602
      %v4642 = vunpack.c.l.b16 %v4603
      %v4643 = vunpack.c.l.b16 %v4604
      %v4644 = vunpack.c.l.b16 %v4605
      %v4645 = vunpack.c.l.b16 %v4606
      %v4646 = vunpack.c.l.b16 %v4607
      %v4647 = vunpack.c.l.b16 %v4608
      %v4648 = vunpack.c.l.b16 %v4609
      %v4649 = vpack.c.b16 %v4632, %v4631
      %v4650 = vpack.c.b16 %v4634, %v4633
      %v4651 = vpack.c.b16 %v4636, %v4635
      %v4652 = vpack.c.b16 %v4638, %v4637
      %v4653 = vpack.c.b16 %v4640, %v4639
      %v4654 = vpack.c.b16 %v4642, %v4641
      %v4655 = vpack.c.b16 %v4644, %v4643
      %v4656 = vpack.c.b16 %v4646, %v4645
      %v4657 = vpack.c.b16 %v4648, %v4647
      %v4668 = vsel %vm433, %v4611, 0
      %4670 = vmatprep.subr.bf16.mxu0 0
      %4671 = vmatpush1.bf16.msra.mxu0 %v4649
      %4672 = vmatprep.subr.bf16.mxu0 0
      %4673 = vmatpush1.bf16.msra.mxu0 %v4650
      %4674 = vmatprep.subr.bf16.mxu0 0
      %4675 = vmatpush1.bf16.msra.mxu0 %v4651
      %4676 = vmatprep.subr.bf16.mxu0 0
      %4677 = vmatpush1.bf16.msra.mxu0 %v4652
      %4678 = vmatprep.subr.bf16.mxu0 0
      %4679 = vmatpush1.bf16.msra.mxu0 %v4653
      %4680 = vmatprep.subr.bf16.mxu0 0
      %4681 = vmatpush1.bf16.msra.mxu0 %v4654
      %4682 = vmatprep.subr.bf16.mxu0 0
      %4683 = vmatpush1.bf16.msra.mxu0 %v4655
      %4684 = vmatprep.subr.bf16.mxu0 0
      %4685 = vmatpush1.bf16.msra.mxu0 %v4656
      %4686 = vmatprep.subr.bf16.mxu0 0
      %4687 = vmatpush1.bf16.msra.mxu0 %v4657
      %4688 = vmatprep.subr.bf16.mxu0 0
      %4689 = vmatpush1.bf16.msra.mxu0 0
      %4690 = vmatprep.subr.bf16.mxu0 0
      %4691 = vmatpush1.bf16.msra.mxu0 0
      %4692 = vmatprep.subr.bf16.mxu0 0
      %4693 = vmatpush1.bf16.msra.mxu0 0
      %4694 = vmatprep.subr.bf16.mxu0 0
      %4695 = vmatpush1.bf16.msra.mxu0 0
      %4696 = vmatprep.subr.bf16.mxu0 0
      %4697 = vmatpush1.bf16.msra.mxu0 0
      %4698 = vmatprep.subr.bf16.mxu0 0
      %4699 = vmatpush1.bf16.msra.mxu0 0
      %4700 = vmatprep.subr.bf16.mxu0 0
      %4701 = vmatpush1.bf16.msra.mxu0 0
      %4702 = vmatprep.mubr.bf16.mxu0 %v4668
      %4703 = vmatmul.mubr.bf16.gmra.mrb[0].mxu0 %v4610
      %v4704 = vpop.f32.mrb[0].mxu0
      %v4705 = vadd.f32 0.0, %v4704
      %v4706 = vpop.f32.mrb[0].mxu0
      %v4707 = vpop.f32.mrb[0].mxu0
      %v4708 = vpop.f32.mrb[0].mxu0
      %4709 = vdwg.mxu0
      %v4710 = vadd.f32 %v4590, %v4705
      %s4711 = scalar_lea.vmem %s5, 1008
      %v4712 = vld [vmem:[%s4711] sm:$0xf]
      %v4713 = vld [vmem:[%s4711 + $0x4] sm:$0xf]
      %v4714 = vld [vmem:[%s4711 + $0x8] sm:$0xf]
      %v4715 = vld [vmem:[%s4711 + $0xc] sm:$0xf]
      %v4716 = vld [vmem:[%s4711 + $0x10] sm:$0xf]
      %v4717 = vld [vmem:[%s4711 + $0x14] sm:$0xf]
      %v4718 = vld [vmem:[%s4711 + $0x18] sm:$0xf]
      %v4719 = vld [vmem:[%s4711 + $0x1c] sm:$0xf]
      %v4720 = vld [vmem:[%s4711 + $0x20] sm:$0xf]
      %v4721 = vld [vmem:[%s4711 + $0x24] sm:$0xf]
      %v4722 = vld [vmem:[%s4711 + $0x28] sm:$0xf]
      %v4723 = vld [vmem:[%s4711 + $0x2c] sm:$0xf]
      %v4724 = vld [vmem:[%s4711 + $0x30] sm:$0xf]
      %v4725 = vld [vmem:[%s4711 + $0x34] sm:$0xf]
      %v4726 = vld [vmem:[%s4711 + $0x38] sm:$0xf]
      %v4727 = vld [vmem:[%s4711 + $0x3c] sm:$0xf]
      %v4728 = vld [vmem:[%s4711 + $0x40] sm:$0xf]
      %v4729 = vld [vmem:[%s4711 + $0x44] sm:$0xf]
      %v4730 = vrot.slane %v3030, 7
      %v4731 = vrot.slane %v3031, 7
      %v4751 = vunpack.c.l.b16 %v4712
      %v4752 = vunpack.c.l.b16 %v4713
      %v4753 = vunpack.c.l.b16 %v4714
      %v4754 = vunpack.c.l.b16 %v4715
      %v4755 = vunpack.c.l.b16 %v4716
      %v4756 = vunpack.c.l.b16 %v4717
      %v4757 = vunpack.c.l.b16 %v4718
      %v4758 = vunpack.c.l.b16 %v4719
      %v4759 = vunpack.c.l.b16 %v4720
      %v4760 = vunpack.c.l.b16 %v4721
      %v4761 = vunpack.c.l.b16 %v4722
      %v4762 = vunpack.c.l.b16 %v4723
      %v4763 = vunpack.c.l.b16 %v4724
      %v4764 = vunpack.c.l.b16 %v4725
      %v4765 = vunpack.c.l.b16 %v4726
      %v4766 = vunpack.c.l.b16 %v4727
      %v4767 = vunpack.c.l.b16 %v4728
      %v4768 = vunpack.c.l.b16 %v4729
      %v4769 = vpack.c.b16 %v4752, %v4751
      %v4770 = vpack.c.b16 %v4754, %v4753
      %v4771 = vpack.c.b16 %v4756, %v4755
      %v4772 = vpack.c.b16 %v4758, %v4757
      %v4773 = vpack.c.b16 %v4760, %v4759
      %v4774 = vpack.c.b16 %v4762, %v4761
      %v4775 = vpack.c.b16 %v4764, %v4763
      %v4776 = vpack.c.b16 %v4766, %v4765
      %v4777 = vpack.c.b16 %v4768, %v4767
      %v4788 = vsel %vm433, %v4731, 0
      %4790 = vmatprep.subr.bf16.mxu0 0
      %4791 = vmatpush1.bf16.msra.mxu0 %v4769
      %4792 = vmatprep.subr.bf16.mxu0 0
      %4793 = vmatpush1.bf16.msra.mxu0 %v4770
      %4794 = vmatprep.subr.bf16.mxu0 0
      %4795 = vmatpush1.bf16.msra.mxu0 %v4771
      %4796 = vmatprep.subr.bf16.mxu0 0
      %4797 = vmatpush1.bf16.msra.mxu0 %v4772
      %4798 = vmatprep.subr.bf16.mxu0 0
      %4799 = vmatpush1.bf16.msra.mxu0 %v4773
      %4800 = vmatprep.subr.bf16.mxu0 0
      %4801 = vmatpush1.bf16.msra.mxu0 %v4774
      %4802 = vmatprep.subr.bf16.mxu0 0
      %4803 = vmatpush1.bf16.msra.mxu0 %v4775
      %4804 = vmatprep.subr.bf16.mxu0 0
      %4805 = vmatpush1.bf16.msra.mxu0 %v4776
      %4806 = vmatprep.subr.bf16.mxu0 0
      %4807 = vmatpush1.bf16.msra.mxu0 %v4777
      %4808 = vmatprep.subr.bf16.mxu0 0
      %4809 = vmatpush1.bf16.msra.mxu0 0
      %4810 = vmatprep.subr.bf16.mxu0 0
      %4811 = vmatpush1.bf16.msra.mxu0 0
      %4812 = vmatprep.subr.bf16.mxu0 0
      %4813 = vmatpush1.bf16.msra.mxu0 0
      %4814 = vmatprep.subr.bf16.mxu0 0
      %4815 = vmatpush1.bf16.msra.mxu0 0
      %4816 = vmatprep.subr.bf16.mxu0 0
      %4817 = vmatpush1.bf16.msra.mxu0 0
      %4818 = vmatprep.subr.bf16.mxu0 0
      %4819 = vmatpush1.bf16.msra.mxu0 0
      %4820 = vmatprep.subr.bf16.mxu0 0
      %4821 = vmatpush1.bf16.msra.mxu0 0
      %4822 = vmatprep.mubr.bf16.mxu0 %v4788
      %4823 = vmatmul.mubr.bf16.gmra.mrb[0].mxu0 %v4730
      %v4824 = vpop.f32.mrb[0].mxu0
      %v4825 = vadd.f32 0.0, %v4824
      %v4826 = vpop.f32.mrb[0].mxu0
      %v4827 = vpop.f32.mrb[0].mxu0
      %v4828 = vpop.f32.mrb[0].mxu0
      %4829 = vdwg.mxu0
      %v4830 = vadd.f32 %v4710, %v4825
      %s4831 = scalar_lea.vmem %s5, 1080
      %v4832 = vld [vmem:[%s4831] sm:$0xf]
      %v4833 = vld [vmem:[%s4831 + $0x4] sm:$0xf]
      %v4834 = vld [vmem:[%s4831 + $0x8] sm:$0xf]
      %v4835 = vld [vmem:[%s4831 + $0xc] sm:$0xf]
      %v4836 = vld [vmem:[%s4831 + $0x10] sm:$0xf]
      %v4837 = vld [vmem:[%s4831 + $0x14] sm:$0xf]
      %v4838 = vld [vmem:[%s4831 + $0x18] sm:$0xf]
      %v4839 = vld [vmem:[%s4831 + $0x1c] sm:$0xf]
      %v4840 = vld [vmem:[%s4831 + $0x20] sm:$0xf]
      %v4841 = vld [vmem:[%s4831 + $0x24] sm:$0xf]
      %v4842 = vld [vmem:[%s4831 + $0x28] sm:$0xf]
      %v4843 = vld [vmem:[%s4831 + $0x2c] sm:$0xf]
      %v4844 = vld [vmem:[%s4831 + $0x30] sm:$0xf]
      %v4845 = vld [vmem:[%s4831 + $0x34] sm:$0xf]
      %v4846 = vld [vmem:[%s4831 + $0x38] sm:$0xf]
      %v4847 = vld [vmem:[%s4831 + $0x3c] sm:$0xf]
      %v4848 = vld [vmem:[%s4831 + $0x40] sm:$0xf]
      %v4849 = vld [vmem:[%s4831 + $0x44] sm:$0xf]
      %v4850 = vrot.slane %v3070, 7
      %v4851 = vrot.slane %v3073, 7
      %v4871 = vunpack.c.l.b16 %v4832
      %v4872 = vunpack.c.l.b16 %v4833
      %v4873 = vunpack.c.l.b16 %v4834
      %v4874 = vunpack.c.l.b16 %v4835
      %v4875 = vunpack.c.l.b16 %v4836
      %v4876 = vunpack.c.l.b16 %v4837
      %v4877 = vunpack.c.l.b16 %v4838
      %v4878 = vunpack.c.l.b16 %v4839
      %v4879 = vunpack.c.l.b16 %v4840
      %v4880 = vunpack.c.l.b16 %v4841
      %v4881 = vunpack.c.l.b16 %v4842
      %v4882 = vunpack.c.l.b16 %v4843
      %v4883 = vunpack.c.l.b16 %v4844
      %v4884 = vunpack.c.l.b16 %v4845
      %v4885 = vunpack.c.l.b16 %v4846
      %v4886 = vunpack.c.l.b16 %v4847
      %v4887 = vunpack.c.l.b16 %v4848
      %v4888 = vunpack.c.l.b16 %v4849
      %v4889 = vpack.c.b16 %v4872, %v4871
      %v4890 = vpack.c.b16 %v4874, %v4873
      %v4891 = vpack.c.b16 %v4876, %v4875
      %v4892 = vpack.c.b16 %v4878, %v4877
      %v4893 = vpack.c.b16 %v4880, %v4879
      %v4894 = vpack.c.b16 %v4882, %v4881
      %v4895 = vpack.c.b16 %v4884, %v4883
      %v4896 = vpack.c.b16 %v4886, %v4885
      %v4897 = vpack.c.b16 %v4888, %v4887
      %v4908 = vsel %vm433, %v4851, 0
      %4910 = vmatprep.subr.bf16.mxu0 0
      %4911 = vmatpush1.bf16.msra.mxu0 %v4889
      %4912 = vmatprep.subr.bf16.mxu0 0
      %4913 = vmatpush1.bf16.msra.mxu0 %v4890
      %4914 = vmatprep.subr.bf16.mxu0 0
      %4915 = vmatpush1.bf16.msra.mxu0 %v4891
      %4916 = vmatprep.subr.bf16.mxu0 0
      %4917 = vmatpush1.bf16.msra.mxu0 %v4892
      %4918 = vmatprep.subr.bf16.mxu0 0
      %4919 = vmatpush1.bf16.msra.mxu0 %v4893
      %4920 = vmatprep.subr.bf16.mxu0 0
      %4921 = vmatpush1.bf16.msra.mxu0 %v4894
      %4922 = vmatprep.subr.bf16.mxu0 0
      %4923 = vmatpush1.bf16.msra.mxu0 %v4895
      %4924 = vmatprep.subr.bf16.mxu0 0
      %4925 = vmatpush1.bf16.msra.mxu0 %v4896
      %4926 = vmatprep.subr.bf16.mxu0 0
      %4927 = vmatpush1.bf16.msra.mxu0 %v4897
      %4928 = vmatprep.subr.bf16.mxu0 0
      %4929 = vmatpush1.bf16.msra.mxu0 0
      %4930 = vmatprep.subr.bf16.mxu0 0
      %4931 = vmatpush1.bf16.msra.mxu0 0
      %4932 = vmatprep.subr.bf16.mxu0 0
      %4933 = vmatpush1.bf16.msra.mxu0 0
      %4934 = vmatprep.subr.bf16.mxu0 0
      %4935 = vmatpush1.bf16.msra.mxu0 0
      %4936 = vmatprep.subr.bf16.mxu0 0
      %4937 = vmatpush1.bf16.msra.mxu0 0
      %4938 = vmatprep.subr.bf16.mxu0 0
      %4939 = vmatpush1.bf16.msra.mxu0 0
      %4940 = vmatprep.subr.bf16.mxu0 0
      %4941 = vmatpush1.bf16.msra.mxu0 0
      %4942 = vmatprep.mubr.bf16.mxu0 %v4908
      %4943 = vmatmul.mubr.bf16.gmra.mrb[0].mxu0 %v4850
      %v4944 = vpop.f32.mrb[0].mxu0
      %v4945 = vadd.f32 0.0, %v4944
      %v4946 = vpop.f32.mrb[0].mxu0
      %v4947 = vpop.f32.mrb[0].mxu0
      %v4948 = vpop.f32.mrb[0].mxu0
      %4949 = vdwg.mxu0
      %v4950 = vadd.f32 %v4830, %v4945
      %v4951 = vld [vmem:[%s6] sm:$0x1]
      %v4952 = vadd.f32 %v4950, %v4951
      %v4953 = vmax.f32 %v4952, 0.0
      %v4954 = vpack.c.bf16 %v4953, %v4953
      %v4955 = vld [vmem:[%s7] sm:$0xf]
      %v4956 = vld [vmem:[%s7 + $0x4] sm:$0xf]
      %v4957 = vld [vmem:[%s7 + $0x8] sm:$0xf]
      %v4958 = vld [vmem:[%s7 + $0xc] sm:$0xf]
      %v4959 = vld [vmem:[%s7 + $0x10] sm:$0xf]
      %v4960 = vld [vmem:[%s7 + $0x14] sm:$0xf]
      %v4961 = vld [vmem:[%s7 + $0x18] sm:$0xf]
      %v4962 = vld [vmem:[%s7 + $0x1c] sm:$0xf]
      %v4963 = vld [vmem:[%s7 + $0x20] sm:$0xf]
      %v4964 = vld [vmem:[%s7 + $0x24] sm:$0xf]
      %v4965 = vld [vmem:[%s7 + $0x28] sm:$0xf]
      %v4966 = vld [vmem:[%s7 + $0x2c] sm:$0xf]
      %v4967 = vld [vmem:[%s7 + $0x30] sm:$0xf]
      %v4968 = vld [vmem:[%s7 + $0x34] sm:$0xf]
      %v4969 = vld [vmem:[%s7 + $0x38] sm:$0xf]
      %v4970 = vld [vmem:[%s7 + $0x3c] sm:$0xf]
      %v4971 = vld [vmem:[%s8] sm:$0x1]
      %v4988 = vunpack.c.l.b16 %v4955
      %v4989 = vunpack.c.l.b16 %v4956
      %v4990 = vunpack.c.l.b16 %v4957
      %v4991 = vunpack.c.l.b16 %v4958
      %v4992 = vunpack.c.l.b16 %v4959
      %v4993 = vunpack.c.l.b16 %v4960
      %v4994 = vunpack.c.l.b16 %v4961
      %v4995 = vunpack.c.l.b16 %v4962
      %v4996 = vunpack.c.l.b16 %v4963
      %v4997 = vunpack.c.l.b16 %v4964
      %v4998 = vunpack.c.l.b16 %v4965
      %v4999 = vunpack.c.l.b16 %v4966
      %v5000 = vunpack.c.l.b16 %v4967
      %v5001 = vunpack.c.l.b16 %v4968
      %v5002 = vunpack.c.l.b16 %v4969
      %v5003 = vunpack.c.l.b16 %v4970
      %v5004 = vpack.c.b16 %v4989, %v4988
      %v5005 = vpack.c.b16 %v4991, %v4990
      %v5006 = vpack.c.b16 %v4993, %v4992
      %v5007 = vpack.c.b16 %v4995, %v4994
      %v5008 = vpack.c.b16 %v4997, %v4996
      %v5009 = vpack.c.b16 %v4999, %v4998
      %v5010 = vpack.c.b16 %v5001, %v5000
      %v5011 = vpack.c.b16 %v5003, %v5002
      %5020 = vmatprep.subr.bf16.mxu0 0
      %5021 = vmatpush1.bf16.msra.mxu0 %v5004
      %5022 = vmatprep.subr.bf16.mxu0 0
      %5023 = vmatpush1.bf16.msra.mxu0 %v5005
      %5024 = vmatprep.subr.bf16.mxu0 0
      %5025 = vmatpush1.bf16.msra.mxu0 %v5006
      %5026 = vmatprep.subr.bf16.mxu0 0
      %5027 = vmatpush1.bf16.msra.mxu0 %v5007
      %5028 = vmatprep.subr.bf16.mxu0 0
      %5029 = vmatpush1.bf16.msra.mxu0 %v5008
      %5030 = vmatprep.subr.bf16.mxu0 0
      %5031 = vmatpush1.bf16.msra.mxu0 %v5009
      %5032 = vmatprep.subr.bf16.mxu0 0
      %5033 = vmatpush1.bf16.msra.mxu0 %v5010
      %5034 = vmatprep.subr.bf16.mxu0 0
      %5035 = vmatpush1.bf16.msra.mxu0 %v5011
      %5036 = vmatprep.subr.bf16.mxu0 0
      %5037 = vmatpush1.bf16.msra.mxu0 0
      %5038 = vmatprep.subr.bf16.mxu0 0
      %5039 = vmatpush1.bf16.msra.mxu0 0
      %5040 = vmatprep.subr.bf16.mxu0 0
      %5041 = vmatpush1.bf16.msra.mxu0 0
      %5042 = vmatprep.subr.bf16.mxu0 0
      %5043 = vmatpush1.bf16.msra.mxu0 0
      %5044 = vmatprep.subr.bf16.mxu0 0
      %5045 = vmatpush1.bf16.msra.mxu0 0
      %5046 = vmatprep.subr.bf16.mxu0 0
      %5047 = vmatpush1.bf16.msra.mxu0 0
      %5048 = vmatprep.subr.bf16.mxu0 0
      %5049 = vmatpush1.bf16.msra.mxu0 0
      %5050 = vmatprep.subr.bf16.mxu0 0
      %5051 = vmatpush1.bf16.msra.mxu0 0
      %5052 = vmatprep.mubr.bf16.mxu0 0
      %5053 = vmatmul.mubr.bf16.gmra.mrb[0].mxu0 %v4954
      %v5054 = vpop.f32.mrb[0].mxu0
      %v5055 = vadd.f32 %v4971, %v5054
      %v5056 = vpop.f32.mrb[0].mxu0
      %v5057 = vpop.f32.mrb[0].mxu0
      %v5058 = vpop.f32.mrb[0].mxu0
      %5059 = vdwg.mxu0
      %v5060 = vmax.f32 %v5055, 0.0
      %v5061 = vpack.c.bf16 %v5060, %v5060
      %v5062 = vld [vmem:[%s9] sm:$0xf]
      %v5063 = vld [vmem:[%s9 + $0x4] sm:$0xf]
      %v5064 = vld [vmem:[%s9 + $0x8] sm:$0xf]
      %v5065 = vld [vmem:[%s9 + $0xc] sm:$0xf]
      %v5066 = vld [vmem:[%s9 + $0x10] sm:$0xf]
      %v5067 = vld [vmem:[%s9 + $0x14] sm:$0xf]
      %v5068 = vld [vmem:[%s9 + $0x18] sm:$0xf]
      %v5069 = vld [vmem:[%s9 + $0x1c] sm:$0xf]
      %v5070 = vld [vmem:[%s9 + $0x20] sm:$0xf]
      %v5071 = vld [vmem:[%s9 + $0x24] sm:$0xf]
      %v5072 = vld [vmem:[%s9 + $0x28] sm:$0xf]
      %v5073 = vld [vmem:[%s9 + $0x2c] sm:$0xf]
      %v5074 = vld [vmem:[%s9 + $0x30] sm:$0xf]
      %v5075 = vld [vmem:[%s9 + $0x34] sm:$0xf]
      %v5076 = vld [vmem:[%s9 + $0x38] sm:$0xf]
      %v5077 = vld [vmem:[%s9 + $0x3c] sm:$0xf]
      %v5078 = vld [vmem:[%s10] sm:$0x1]
      %v5095 = vunpack.c.l.b16 %v5062
      %v5096 = vunpack.c.l.b16 %v5063
      %v5097 = vunpack.c.l.b16 %v5064
      %v5098 = vunpack.c.l.b16 %v5065
      %v5099 = vunpack.c.l.b16 %v5066
      %v5100 = vunpack.c.l.b16 %v5067
      %v5101 = vunpack.c.l.b16 %v5068
      %v5102 = vunpack.c.l.b16 %v5069
      %v5103 = vunpack.c.l.b16 %v5070
      %v5104 = vunpack.c.l.b16 %v5071
      %v5105 = vunpack.c.l.b16 %v5072
      %v5106 = vunpack.c.l.b16 %v5073
      %v5107 = vunpack.c.l.b16 %v5074
      %v5108 = vunpack.c.l.b16 %v5075
      %v5109 = vunpack.c.l.b16 %v5076
      %v5110 = vunpack.c.l.b16 %v5077
      %v5111 = vpack.c.b16 %v5096, %v5095
      %v5112 = vpack.c.b16 %v5098, %v5097
      %v5113 = vpack.c.b16 %v5100, %v5099
      %v5114 = vpack.c.b16 %v5102, %v5101
      %v5115 = vpack.c.b16 %v5104, %v5103
      %v5116 = vpack.c.b16 %v5106, %v5105
      %v5117 = vpack.c.b16 %v5108, %v5107
      %v5118 = vpack.c.b16 %v5110, %v5109
      %5127 = vmatprep.subr.bf16.mxu0 0
      %5128 = vmatpush1.bf16.msra.mxu0 %v5111
      %5129 = vmatprep.subr.bf16.mxu0 0
      %5130 = vmatpush1.bf16.msra.mxu0 %v5112
      %5131 = vmatprep.subr.bf16.mxu0 0
      %5132 = vmatpush1.bf16.msra.mxu0 %v5113
      %5133 = vmatprep.subr.bf16.mxu0 0
      %5134 = vmatpush1.bf16.msra.mxu0 %v5114
      %5135 = vmatprep.subr.bf16.mxu0 0
      %5136 = vmatpush1.bf16.msra.mxu0 %v5115
      %5137 = vmatprep.subr.bf16.mxu0 0
      %5138 = vmatpush1.bf16.msra.mxu0 %v5116
      %5139 = vmatprep.subr.bf16.mxu0 0
      %5140 = vmatpush1.bf16.msra.mxu0 %v5117
      %5141 = vmatprep.subr.bf16.mxu0 0
      %5142 = vmatpush1.bf16.msra.mxu0 %v5118
      %5143 = vmatprep.subr.bf16.mxu0 0
      %5144 = vmatpush1.bf16.msra.mxu0 0
      %5145 = vmatprep.subr.bf16.mxu0 0
      %5146 = vmatpush1.bf16.msra.mxu0 0
      %5147 = vmatprep.subr.bf16.mxu0 0
      %5148 = vmatpush1.bf16.msra.mxu0 0
      %5149 = vmatprep.subr.bf16.mxu0 0
      %5150 = vmatpush1.bf16.msra.mxu0 0
      %5151 = vmatprep.subr.bf16.mxu0 0
      %5152 = vmatpush1.bf16.msra.mxu0 0
      %5153 = vmatprep.subr.bf16.mxu0 0
      %5154 = vmatpush1.bf16.msra.mxu0 0
      %5155 = vmatprep.subr.bf16.mxu0 0
      %5156 = vmatpush1.bf16.msra.mxu0 0
      %5157 = vmatprep.subr.bf16.mxu0 0
      %5158 = vmatpush1.bf16.msra.mxu0 0
      %5159 = vmatprep.mubr.bf16.mxu0 0
      %5160 = vmatmul.mubr.bf16.gmra.mrb[0].mxu0 %v5061
      %v5161 = vpop.f32.mrb[0].mxu0
      %v5162 = vadd.f32 %v5078, %v5161
      %v5163 = vpop.f32.mrb[0].mxu0
      %v5164 = vpop.f32.mrb[0].mxu0
      %v5165 = vpop.f32.mrb[0].mxu0
      %5166 = vdwg.mxu0
      %v5167 = vlaneseq
      %v5168 = vshrl.u32 %v5167, 7
      %v5169 = vsub.s32 0, %v5168
      %v5170 = vrot.slane %v5162, %v5169
      %5171 = vst [vmem:[%s384] sm:$0xff] %v5170
      %p5172 = scmp.lt.s32.totalorder %s22, 1
      %s5173 = scalar_select %p5172, %s22, 1
      %s5174 = smul.addr %s5173, 8
      %s5175 = scalar_lea.vmem %s11, %s5174
      // Predicated region
      $region65: #{lenet_forward.1} parent=63 // pred_check
        %p5176 = pneg %p276
      $region66: #{lenet_forward.1} parent=63 // pred_check_branch
        %5178 = sbr.rel (%p5176) target = $region68
      $region67: #{lenet_forward.1} parent=63 // pred_region
        _
      $region68: #{lenet_forward.1} parent=63 // pred_fallthru
        _
    $region64: #{lenet_forward.1} parent=5 // pred_fallthru
      _
    %p5179 = scmp.le.s32.totalorder 2, %s17
    // Predicated region
    $region69: #{lenet_forward.1} parent=5 // pred_check
      %p5180 = pneg %p5179
    $region70: #{lenet_forward.1} parent=5 // pred_check_branch
      %5182 = sbr.rel (%p5180) target = $region72
    $region71: #{lenet_forward.1} parent=5 // pred_region
      %s5183 = ssub.s32 %s17, 2
      // Predicated region
      $region73: #{lenet_forward.1} parent=71 // pred_check
        %p5184 = pneg %p282
      $region74: #{lenet_forward.1} parent=71 // pred_check_branch
        %5186 = sbr.rel (%p5184) target = $region76
      $region75: #{lenet_forward.1} parent=71 // pred_region
        %p5187 = scmp.lt.s32.totalorder %s23, 1
        %s5188 = scalar_select %p5187, %s23, 1
        %s5189 = smul.addr %s5188, 8
        %s5190 = scalar_lea.vmem %s11, %s5189
      $region76: #{lenet_forward.1} parent=71 // pred_fallthru
        _
    $region72: #{lenet_forward.1} parent=5 // pred_fallthru
      _
  $region6: #{lenet_forward.1} parent=0 // loop_footer
    %s21 = sadd.s32 1, %s17
  $region7: #{lenet_forward.1} parent=0 // loop_footer_branch
    %16 = sbr.rel target = $region3
  $region8: #{lenet_forward.1} parent=0 // loop_exit
    _

</llo_original>
